<compile_context>
chip_gen: v7x
topology: tpu7x:2x2x1
jax: 0.10.0
libtpu: 0.0.40
codegen_flags: <defaults>
</compile_context>

<pallas_src>
import functools

import jax
import jax.numpy as jnp
from jax.experimental import pallas as pl
from jax.experimental.pallas import tpu as pltpu

EPS = 1e-5
LANES = 128
TAP_GROUP = 2                       # taps per matmul (K = TAP_GROUP*Cp); 1 on v5e
VMEM_LIMIT = 48 * 1024 * 1024       # re-derive per generation (<= 64 MiB on v7x)


# ----------------------------- shared conv helper ----------------------------

def _conv3x3(tap_fn, w_ref, mt, cp, group=TAP_GROUP):
    """3x3 conv as grouped per-tap matmuls accumulated in f32.

    tap_fn(t) returns the (mt, cp) bf16 activation for tap t = kh*3 + kw.
    Weights are stacked along K in w_ref ((9*cp, cp)), so a group of
    consecutive taps is a contiguous static slice of the weight ref.
    """
    acc = None
    t = 0
    while t < 9:
        g = min(group, 9 - t)
        if g == 1:
            lhs = tap_fn(t)
        else:
            lhs = jnp.concatenate([tap_fn(t + j) for j in range(g)], axis=-1)
        d = jnp.dot(lhs, w_ref[t * cp:(t + g) * cp, :],
                    preferred_element_type=jnp.float32)
        acc = d if acc is None else acc + d
        t += g
    return acc


# ------------------------------- Pallas kernels ------------------------------

def _pass1_kernel(p00_ref, p01_ref, p10_ref, p11_ref, w1_ref, wex_ref,
                  acc1_ref, acce_ref, stats_ref, *, m_total):
    """conv1 (3x3, stride 2) + 1x1 stride-2 shortcut; BN stats accumulation.

    stats_ref rows while accumulating: [sum1, sumsq1, sumE, sumsqE, ...]
    after the last grid step they hold:  [mu1,  rstd1,  muE,  rstdE, ...]
    """
    bt, hpp, wpp, cp = p00_ref.shape
    ho, wo = hpp - 1, wpp - 1
    mt = bt * ho * wo
    i = pl.program_id(0)

    @pl.when(i == 0)
    def _init():
        stats_ref[...] = jnp.zeros_like(stats_ref)

    phases = ((p00_ref, p01_ref), (p10_ref, p11_ref))

    def tap1(t):
        kh, kw = divmod(t, 3)
        ph = phases[kh % 2][kw % 2]
        return ph[:, kh // 2:kh // 2 + ho, kw // 2:kw // 2 + wo, :].reshape(mt, cp)

    acc1 = _conv3x3(tap1, w1_ref, mt, cp)

    # 1x1 stride-2 shortcut conv == phase (1, 1) at offset (0, 0)
    xs = p11_ref[:, 0:ho, 0:wo, :].reshape(mt, cp)
    acce = jnp.dot(xs, wex_ref[...], preferred_element_type=jnp.float32)

    acc1_ref[...] = acc1
    acce_ref[...] = acce

    # per-channel sum / sum-of-squares (XLU reduce; MXU stays on the convs)
    stats_ref[0:1, :] = stats_ref[0:1, :] + jnp.sum(acc1, axis=0, keepdims=True)
    stats_ref[1:2, :] = stats_ref[1:2, :] + jnp.sum(acc1 * acc1, axis=0, keepdims=True)
    stats_ref[2:3, :] = stats_ref[2:3, :] + jnp.sum(acce, axis=0, keepdims=True)
    stats_ref[3:4, :] = stats_ref[3:4, :] + jnp.sum(acce * acce, axis=0, keepdims=True)

    @pl.when(i == pl.num_programs(0) - 1)
    def _finalize():
        inv_m = 1.0 / m_total
        s1, q1 = stats_ref[0:1, :], stats_ref[1:2, :]
        se, qe = stats_ref[2:3, :], stats_ref[3:4, :]
        mu1 = s1 * inv_m
        var1 = jnp.maximum(q1 * inv_m - mu1 * mu1, 0.0)   # clamp rounding
        mue = se * inv_m
        vare = jnp.maximum(qe * inv_m - mue * mue, 0.0)
        stats_ref[0:1, :] = mu1
        stats_ref[1:2, :] = jax.lax.rsqrt(var1 + EPS)
        stats_ref[2:3, :] = mue
        stats_ref[3:4, :] = jax.lax.rsqrt(vare + EPS)


def _pass2_kernel(acc1_ref, stats1_ref, g1_ref, b1_ref, w2_ref,
                  acc2_ref, stats2_ref, hpad_ref, *, m_total):
    """BN1 (global stats) + ReLU + conv2 (3x3, stride 1); BN2 stats accumulation."""
    mt, cp = acc1_ref.shape
    bt, hp2, wp2, _ = hpad_ref.shape
    ho, wo = hp2 - 2, wp2 - 2
    i = pl.program_id(0)

    @pl.when(i == 0)
    def _init():
        stats2_ref[...] = jnp.zeros_like(stats2_ref)
        # zero only the 1-pixel halo ring, once; the interior is rewritten below
        hpad_ref[:, 0:1, :, :] = jnp.zeros((bt, 1, wp2, cp), hpad_ref.dtype)
        hpad_ref[:, hp2 - 1:hp2, :, :] = jnp.zeros((bt, 1, wp2, cp), hpad_ref.dtype)
        hpad_ref[:, :, 0:1, :] = jnp.zeros((bt, hp2, 1, cp), hpad_ref.dtype)
        hpad_ref[:, :, wp2 - 1:wp2, :] = jnp.zeros((bt, hp2, 1, cp), hpad_ref.dtype)

    mu1, rstd1 = stats1_ref[0:1, :], stats1_ref[1:2, :]
    h = jnp.maximum((acc1_ref[...] - mu1) * rstd1 * g1_ref[...] + b1_ref[...], 0.0)
    hpad_ref[:, 1:1 + ho, 1:1 + wo, :] = h.reshape(bt, ho, wo, cp).astype(hpad_ref.dtype)

    def tap2(t):
        kh, kw = divmod(t, 3)
        return hpad_ref[:, kh:kh + ho, kw:kw + wo, :].reshape(mt, cp)

    acc2 = _conv3x3(tap2, w2_ref, mt, cp)
    acc2_ref[...] = acc2

    stats2_ref[0:1, :] = stats2_ref[0:1, :] + jnp.sum(acc2, axis=0, keepdims=True)
    stats2_ref[1:2, :] = stats2_ref[1:2, :] + jnp.sum(acc2 * acc2, axis=0, keepdims=True)

    @pl.when(i == pl.num_programs(0) - 1)
    def _finalize():
        inv_m = 1.0 / m_total
        s2, q2 = stats2_ref[0:1, :], stats2_ref[1:2, :]
        mu2 = s2 * inv_m
        var2 = jnp.maximum(q2 * inv_m - mu2 * mu2, 0.0)
        stats2_ref[0:1, :] = mu2
        stats2_ref[1:2, :] = jax.lax.rsqrt(var2 + EPS)


def _pass3_kernel(acc2_ref, acce_ref, stats1_ref, stats2_ref,
                  g2_ref, b2_ref, ge_ref, be_ref, out_ref):
    """BN2(main) + BN(shortcut) + residual add + ReLU; bf16 lane-dense output."""
    mu2, rstd2 = stats2_ref[0:1, :], stats2_ref[1:2, :]
    mue, rstde = stats1_ref[2:3, :], stats1_ref[3:4, :]
    main = (acc2_ref[...] - mu2) * rstd2 * g2_ref[...] + b2_ref[...]
    extra = (acce_ref[...] - mue) * rstde * ge_ref[...] + be_ref[...]
    out_ref[...] = jnp.maximum(main + extra, 0.0).astype(out_ref.dtype)


# ------------------------------- wrapper (JAX) -------------------------------

def _pad_last(a, cp):
    pad = cp - a.shape[-1]
    if pad:
        a = jnp.pad(a, [(0, 0)] * (a.ndim - 1) + [(0, pad)])
    return a


def restnet_down_block(x_nchw, params, stride=(2, 1), batch_tile=1,
                       nchw_f32_out=True):
    """Forward pass matching RestNetDownBlock.forward (train-mode BatchNorm)."""
    s0, s1 = stride
    assert s0 == 2 and s1 == 1, "kernel specialised to the standard (2, 1) down block"

    x = jnp.transpose(x_nchw, (0, 2, 3, 1)).astype(jnp.float32)   # NHWC
    n, h, w, cin = x.shape
    cout = params["w1"].shape[-1]
    assert h % 2 == 0 and w % 2 == 0
    ho, wo = h // 2, w // 2
    assert n % batch_tile == 0
    bt = batch_tile
    nt = n // bt
    mt = bt * ho * wo
    m = n * ho * wo
    assert mt % 8 == 0
    cp = LANES * max(pl.cdiv(cin, LANES), pl.cdiv(cout, LANES))   # lane-dense width

    # Preprocessing: channel pad + 1px spatial pad + bf16 cast + 4 stride-2
    # phases.  XLA fuses the transpose/pad/cast/slice chain into one pass.
    # TODO(synk): move the phase extraction in-kernel (strided DMA) to drop it.
    xp = jnp.pad(_pad_last(x, cp), ((0, 0), (1, 1), (1, 1), (0, 0))).astype(jnp.bfloat16)
    p00 = xp[:, 0::2, 0::2, :]
    p01 = xp[:, 0::2, 1::2, :]
    p10 = xp[:, 1::2, 0::2, :]
    p11 = xp[:, 1::2, 1::2, :]

    # weights: zero-pad channels, stack the 9 taps along K, cast to bf16
    w1 = _pad_last(jnp.pad(params["w1"], ((0, 0), (0, 0), (0, cp - cin), (0, 0))), cp)
    w1 = w1.reshape(9 * cp, cp).astype(jnp.bfloat16)
    w2 = _pad_last(jnp.pad(params["w2"], ((0, 0), (0, 0), (0, cp - cout), (0, 0))), cp)
    w2 = w2.reshape(9 * cp, cp).astype(jnp.bfloat16)
    wex = _pad_last(jnp.pad(params["wex"], ((0, 0), (0, 0), (0, cp - cin), (0, 0))), cp)
    wex = wex.reshape(cp, cp).astype(jnp.bfloat16)

    g1, bt1 = _pad_last(params["g1"], cp), _pad_last(params["beta1"], cp)
    g2, bt2 = _pad_last(params["g2"], cp), _pad_last(params["beta2"], cp)
    ge, bte = _pad_last(params["ge"], cp), _pad_last(params["betae"], cp)

    phase_spec = pl.BlockSpec((bt, ho + 1, wo + 1, cp), lambda i: (i, 0, 0, 0))
    row_spec = pl.BlockSpec((mt, cp), lambda i: (i, 0))

    def full2d(r):
        return pl.BlockSpec((r, cp), lambda i: (0, 0))

    cparams_red = pltpu.CompilerParams(dimension_semantics=("arbitrary",),
                                       vmem_limit_bytes=VMEM_LIMIT)
    cparams_par = pltpu.CompilerParams(dimension_semantics=("parallel",),
                                       vmem_limit_bytes=VMEM_LIMIT)

    # ---- pass 1: conv1 + shortcut conv, accumulate BN1 / BN_extra stats ----
    acc1, acce, stats1 = pl.pallas_call(
        functools.partial(_pass1_kernel, m_total=float(m)),
        grid=(nt,),
        in_specs=[phase_spec, phase_spec, phase_spec, phase_spec,
                  full2d(9 * cp), full2d(cp)],
        out_specs=(row_spec, row_spec, full2d(8)),
        out_shape=(jax.ShapeDtypeStruct((m, cp), jnp.float32),
                   jax.ShapeDtypeStruct((m, cp), jnp.float32),
                   jax.ShapeDtypeStruct((8, cp), jnp.float32)),
        compiler_params=cparams_red,
    )(p00, p01, p10, p11, w1, wex)

    # ---- pass 2: BN1 + ReLU + conv2, accumulate BN2 stats ----
    acc2, stats2 = pl.pallas_call(
        functools.partial(_pass2_kernel, m_total=float(m)),
        grid=(nt,),
        in_specs=[row_spec, full2d(8), full2d(1), full2d(1), full2d(9 * cp)],
        out_specs=(row_spec, full2d(8)),
        out_shape=(jax.ShapeDtypeStruct((m, cp), jnp.float32),
                   jax.ShapeDtypeStruct((8, cp), jnp.float32)),
        scratch_shapes=[pltpu.VMEM((bt, ho + 2, wo + 2, cp), jnp.bfloat16)],
        compiler_params=cparams_red,
    )(acc1, stats1, g1, bt1, w2)

    # ---- pass 3: BN2 + BN_extra + residual add + ReLU (parallel over tiles) ----
    out = pl.pallas_call(
        _pass3_kernel,
        grid=(nt,),
        in_specs=[row_spec, row_spec, full2d(8), full2d(8),
                  full2d(1), full2d(1), full2d(1), full2d(1)],
        out_specs=row_spec,
        out_shape=jax.ShapeDtypeStruct((m, cp), jnp.bfloat16),
        compiler_params=cparams_par,
    )(acc2, acce, stats1, stats2, g2, bt2, ge, bte)

    out = out.reshape(n, ho, wo, cp)[..., :cout]
    if nchw_f32_out:
        out = jnp.transpose(out, (0, 3, 1, 2)).astype(jnp.float32)   # NCHW
    return out


def init_params(key, in_channels, out_channels):
    ks = jax.random.split(key, 6)
    f32 = jnp.float32
    return {
        # conv weights in HWIO; biases kept for the reference (the Pallas kernels
        # drop them — exactly cancelled by train-mode BN mean subtraction).
        "w1": 0.1 * jax.random.normal(ks[0], (3, 3, in_channels, out_channels), f32),
        "b1": 0.1 * jax.random.normal(ks[1], (1, out_channels), f32),
        "w2": 0.1 * jax.random.normal(ks[2], (3, 3, out_channels, out_channels), f32),
        "b2": 0.1 * jax.random.normal(ks[3], (1, out_channels), f32),
        "wex": 0.1 * jax.random.normal(ks[4], (1, 1, in_channels, out_channels), f32),
        "bex": 0.1 * jax.random.normal(ks[5], (1, out_channels), f32),
        # BatchNorm affine params (PyTorch init: weight=1, bias=0)
        "g1": jnp.ones((1, out_channels), f32), "beta1": jnp.zeros((1, out_channels), f32),
        "g2": jnp.ones((1, out_channels), f32), "beta2": jnp.zeros((1, out_channels), f32),
        "ge": jnp.ones((1, out_channels), f32), "betae": jnp.zeros((1, out_channels), f32),
    }


# ----------------------------- pure-JAX reference ----------------------------

def _ref_forward(x_nchw, params, stride):
    s0, s1 = stride

    def conv(x, w_hwio, b, s, pad):
        w = jnp.transpose(w_hwio, (3, 2, 0, 1))  # -> OIHW
        y = jax.lax.conv_general_dilated(
            x, w, (s, s), pad,
            dimension_numbers=("NCHW", "OIHW", "NCHW"),
            preferred_element_type=jnp.float32)
        return y + b.reshape(1, -1, 1, 1)

    def bn(y, g, be):
        mu = y.mean(axis=(0, 2, 3), keepdims=True)
        var = ((y - mu) ** 2).mean(axis=(0, 2, 3), keepdims=True)
        return (y - mu) * jax.lax.rsqrt(var + EPS) * g.reshape(1, -1, 1, 1) \
            + be.reshape(1, -1, 1, 1)

    out1 = jax.nn.relu(bn(conv(x_nchw, params["w1"], params["b1"], s0,
                               [(1, 1), (1, 1)]), params["g1"], params["beta1"]))
    out2 = bn(conv(out1, params["w2"], params["b2"], s1, [(1, 1), (1, 1)]),
              params["g2"], params["beta2"])
    extra = bn(conv(x_nchw, params["wex"], params["bex"], s0, [(0, 0), (0, 0)]),
               params["ge"], params["betae"])
    return jax.nn.relu(extra + out2)


# ----------------------------------- main -------------------------------------

if __name__ == "__main__":
    key = jax.random.PRNGKey(0)
    kx, kp = jax.random.split(key)

    N, Cin, H, W = 2, 4, 16, 16
    Cout = 8
    stride = (2, 1)  # standard ResNet down-block strides

    x = jax.random.normal(kx, (N, Cin, H, W), jnp.float32)
    params = init_params(kp, Cin, Cout)

    fwd = jax.jit(functools.partial(restnet_down_block, stride=stride, batch_tile=1))
    out = jax.block_until_ready(fwd(x, params))

    ref = jax.block_until_ready(_ref_forward(x, params, stride))
    assert out.shape == ref.shape == (N, Cout, H // 2, W // 2), out.shape
    max_err = float(jnp.max(jnp.abs(out - ref)))
    assert jnp.allclose(out, ref, atol=5e-2, rtol=5e-2), max_err

    print("KERNEL_OK")
</pallas_src>

<mosaic_0001>
module attributes {stable_mosaic.version = 11 : i64} {
  func.func @_pass1_kernel(%arg0: i32, %arg1: memref<1x9x9x128xbf16, #tpu.memory_space<vmem>>, %arg2: memref<1x9x9x128xbf16, #tpu.memory_space<vmem>>, %arg3: memref<1x9x9x128xbf16, #tpu.memory_space<vmem>>, %arg4: memref<1x9x9x128xbf16, #tpu.memory_space<vmem>>, %arg5: memref<1152x128xbf16, #tpu.memory_space<vmem>>, %arg6: memref<128x128xbf16, #tpu.memory_space<vmem>>, %arg7: memref<64x128xf32, #tpu.memory_space<vmem>>, %arg8: memref<64x128xf32, #tpu.memory_space<vmem>>, %arg9: memref<8x128xf32, #tpu.memory_space<vmem>>) attributes {dimension_semantics = [#tpu.dimension_semantics<arbitrary>], iteration_bounds = array<i64: 2>, scalar_prefetch = 0 : i64, scratch_operands = 0 : i64, tpu.core_type = #tpu.core_type<tc>, window_params = [{transform_indices = @transform_0, window_bounds = array<i64: 1, 9, 9, 128>}, {transform_indices = @transform_1, window_bounds = array<i64: 1, 9, 9, 128>}, {transform_indices = @transform_2, window_bounds = array<i64: 1, 9, 9, 128>}, {transform_indices = @transform_3, window_bounds = array<i64: 1, 9, 9, 128>}, {pipeline_mode = #tpu.pipeline_mode<synchronous>, transform_indices = @transform_4, window_bounds = array<i64: 1152, 128>}, {pipeline_mode = #tpu.pipeline_mode<synchronous>, transform_indices = @transform_5, window_bounds = array<i64: 128, 128>}, {transform_indices = @transform_6, window_bounds = array<i64: 64, 128>}, {transform_indices = @transform_7, window_bounds = array<i64: 64, 128>}, {pipeline_mode = #tpu.pipeline_mode<synchronous>, transform_indices = @transform_8, window_bounds = array<i64: 8, 128>}]} {
    %c0_i32 = arith.constant 0 : i32
    %0 = arith.cmpi eq, %arg0, %c0_i32 : i32
    %1 = arith.extui %0 : i1 to i32
    %c0_i32_0 = arith.constant 0 : i32
    %2 = arith.cmpi ne, %1, %c0_i32_0 : i32
    scf.if %2 {
      %cst_75 = arith.constant 0.000000e+00 : f32
      %70 = vector.broadcast %cst_75 : f32 to vector<8x128xf32>
      %c0_76 = arith.constant 0 : index
      %c0_77 = arith.constant 0 : index
      %71 = vector.load %arg9[%c0_76, %c0_77] : memref<8x128xf32, #tpu.memory_space<vmem>>, vector<8x128xf32>
      tpu.vector_store %arg9[%c0_76, %c0_77], %70 {strides = array<i32>} : memref<8x128xf32, #tpu.memory_space<vmem>>, vector<8x128xf32>,
    } else {
    }
    %c0 = arith.constant 0 : index
    %c0_1 = arith.constant 0 : index
    %c0_2 = arith.constant 0 : index
    %c0_3 = arith.constant 0 : index
    %3 = vector.load %arg1[%c0, %c0_1, %c0_2, %c0_3] : memref<1x9x9x128xbf16, #tpu.memory_space<vmem>>, vector<1x8x8x128xbf16>
    %4 = vector.shape_cast %3 : vector<1x8x8x128xbf16> to vector<64x128xbf16>
    %c0_4 = arith.constant 0 : index
    %c0_5 = arith.constant 0 : index
    %c0_6 = arith.constant 0 : index
    %c0_7 = arith.constant 0 : index
    %5 = vector.load %arg2[%c0_4, %c0_5, %c0_6, %c0_7] : memref<1x9x9x128xbf16, #tpu.memory_space<vmem>>, vector<1x8x8x128xbf16>
    %6 = vector.shape_cast %5 : vector<1x8x8x128xbf16> to vector<64x128xbf16>
    %7 = tpu.concatenate %4, %6 in 1 : vector<64x128xbf16>, vector<64x128xbf16> -> vector<64x256xbf16>
    %c0_8 = arith.constant 0 : index
    %c0_9 = arith.constant 0 : index
    %8 = vector.load %arg5[%c0_8, %c0_9] : memref<1152x128xbf16, #tpu.memory_space<vmem>>, vector<256x128xbf16>
    %cst = arith.constant dense<0.000000e+00> : vector<64x128xf32>
    %9 = tpu.matmul %7, %8, %cst {dimension_numbers = #tpu.dot_dimension_numbers<[1], [0], [0], [1], [0, 0, 1, 1], [], []>} : vector<64x256xbf16>, vector<256x128xbf16>, vector<64x128xf32> -> vector<64x128xf32>
    %c0_10 = arith.constant 0 : index
    %c0_11 = arith.constant 0 : index
    %c1 = arith.constant 1 : index
    %c0_12 = arith.constant 0 : index
    %10 = vector.load %arg1[%c0_10, %c0_11, %c1, %c0_12] : memref<1x9x9x128xbf16, #tpu.memory_space<vmem>>, vector<1x8x8x128xbf16>
    %11 = vector.shape_cast %10 : vector<1x8x8x128xbf16> to vector<64x128xbf16>
    %c0_13 = arith.constant 0 : index
    %c0_14 = arith.constant 0 : index
    %c0_15 = arith.constant 0 : index
    %c0_16 = arith.constant 0 : index
    %12 = vector.load %arg3[%c0_13, %c0_14, %c0_15, %c0_16] : memref<1x9x9x128xbf16, #tpu.memory_space<vmem>>, vector<1x8x8x128xbf16>
    %13 = vector.shape_cast %12 : vector<1x8x8x128xbf16> to vector<64x128xbf16>
    %14 = tpu.concatenate %11, %13 in 1 : vector<64x128xbf16>, vector<64x128xbf16> -> vector<64x256xbf16>
    %c256 = arith.constant 256 : index
    %c0_17 = arith.constant 0 : index
    %15 = vector.load %arg5[%c256, %c0_17] : memref<1152x128xbf16, #tpu.memory_space<vmem>>, vector<256x128xbf16>
    %cst_18 = arith.constant dense<0.000000e+00> : vector<64x128xf32>
    %16 = tpu.matmul %14, %15, %cst_18 {dimension_numbers = #tpu.dot_dimension_numbers<[1], [0], [0], [1], [0, 0, 1, 1], [], []>} : vector<64x256xbf16>, vector<256x128xbf16>, vector<64x128xf32> -> vector<64x128xf32>
    %17 = arith.addf %9, %16 : vector<64x128xf32>
    %c0_19 = arith.constant 0 : index
    %c0_20 = arith.constant 0 : index
    %c0_21 = arith.constant 0 : index
    %c0_22 = arith.constant 0 : index
    %18 = vector.load %arg4[%c0_19, %c0_20, %c0_21, %c0_22] : memref<1x9x9x128xbf16, #tpu.memory_space<vmem>>, vector<1x8x8x128xbf16>
    %19 = vector.shape_cast %18 : vector<1x8x8x128xbf16> to vector<64x128xbf16>
    %c0_23 = arith.constant 0 : index
    %c0_24 = arith.constant 0 : index
    %c1_25 = arith.constant 1 : index
    %c0_26 = arith.constant 0 : index
    %20 = vector.load %arg3[%c0_23, %c0_24, %c1_25, %c0_26] : memref<1x9x9x128xbf16, #tpu.memory_space<vmem>>, vector<1x8x8x128xbf16>
    %21 = vector.shape_cast %20 : vector<1x8x8x128xbf16> to vector<64x128xbf16>
    %22 = tpu.concatenate %19, %21 in 1 : vector<64x128xbf16>, vector<64x128xbf16> -> vector<64x256xbf16>
    %c512 = arith.constant 512 : index
    %c0_27 = arith.constant 0 : index
    %23 = vector.load %arg5[%c512, %c0_27] : memref<1152x128xbf16, #tpu.memory_space<vmem>>, vector<256x128xbf16>
    %cst_28 = arith.constant dense<0.000000e+00> : vector<64x128xf32>
    %24 = tpu.matmul %22, %23, %cst_28 {dimension_numbers = #tpu.dot_dimension_numbers<[1], [0], [0], [1], [0, 0, 1, 1], [], []>} : vector<64x256xbf16>, vector<256x128xbf16>, vector<64x128xf32> -> vector<64x128xf32>
    %25 = arith.addf %17, %24 : vector<64x128xf32>
    %c0_29 = arith.constant 0 : index
    %c1_30 = arith.constant 1 : index
    %c0_31 = arith.constant 0 : index
    %c0_32 = arith.constant 0 : index
    %26 = vector.load %arg1[%c0_29, %c1_30, %c0_31, %c0_32] : memref<1x9x9x128xbf16, #tpu.memory_space<vmem>>, vector<1x8x8x128xbf16>
    %27 = vector.shape_cast %26 : vector<1x8x8x128xbf16> to vector<64x128xbf16>
    %c0_33 = arith.constant 0 : index
    %c1_34 = arith.constant 1 : index
    %c0_35 = arith.constant 0 : index
    %c0_36 = arith.constant 0 : index
    %28 = vector.load %arg2[%c0_33, %c1_34, %c0_35, %c0_36] : memref<1x9x9x128xbf16, #tpu.memory_space<vmem>>, vector<1x8x8x128xbf16>
    %29 = vector.shape_cast %28 : vector<1x8x8x128xbf16> to vector<64x128xbf16>
    %30 = tpu.concatenate %27, %29 in 1 : vector<64x128xbf16>, vector<64x128xbf16> -> vector<64x256xbf16>
    %c768 = arith.constant 768 : index
    %c0_37 = arith.constant 0 : index
    %31 = vector.load %arg5[%c768, %c0_37] : memref<1152x128xbf16, #tpu.memory_space<vmem>>, vector<256x128xbf16>
    %cst_38 = arith.constant dense<0.000000e+00> : vector<64x128xf32>
    %32 = tpu.matmul %30, %31, %cst_38 {dimension_numbers = #tpu.dot_dimension_numbers<[1], [0], [0], [1], [0, 0, 1, 1], [], []>} : vector<64x256xbf16>, vector<256x128xbf16>, vector<64x128xf32> -> vector<64x128xf32>
    %33 = arith.addf %25, %32 : vector<64x128xf32>
    %c0_39 = arith.constant 0 : index
    %c1_40 = arith.constant 1 : index
    %c1_41 = arith.constant 1 : index
    %c0_42 = arith.constant 0 : index
    %34 = vector.load %arg1[%c0_39, %c1_40, %c1_41, %c0_42] : memref<1x9x9x128xbf16, #tpu.memory_space<vmem>>, vector<1x8x8x128xbf16>
    %35 = vector.shape_cast %34 : vector<1x8x8x128xbf16> to vector<64x128xbf16>
    %c1024 = arith.constant 1024 : index
    %c0_43 = arith.constant 0 : index
    %36 = vector.load %arg5[%c1024, %c0_43] : memref<1152x128xbf16, #tpu.memory_space<vmem>>, vector<128x128xbf16>
    %cst_44 = arith.constant dense<0.000000e+00> : vector<64x128xf32>
    %37 = tpu.matmul %35, %36, %cst_44 {dimension_numbers = #tpu.dot_dimension_numbers<[1], [0], [0], [1], [0, 0, 1, 1], [], []>} : vector<64x128xbf16>, vector<128x128xbf16>, vector<64x128xf32> -> vector<64x128xf32>
    %38 = arith.addf %33, %37 : vector<64x128xf32>
    %c0_45 = arith.constant 0 : index
    %c0_46 = arith.constant 0 : index
    %c0_47 = arith.constant 0 : index
    %c0_48 = arith.constant 0 : index
    %39 = vector.load %arg4[%c0_45, %c0_46, %c0_47, %c0_48] : memref<1x9x9x128xbf16, #tpu.memory_space<vmem>>, vector<1x8x8x128xbf16>
    %40 = vector.shape_cast %39 : vector<1x8x8x128xbf16> to vector<64x128xbf16>
    %c0_49 = arith.constant 0 : index
    %c0_50 = arith.constant 0 : index
    %41 = vector.load %arg6[%c0_49, %c0_50] : memref<128x128xbf16, #tpu.memory_space<vmem>>, vector<128x128xbf16>
    %cst_51 = arith.constant dense<0.000000e+00> : vector<64x128xf32>
    %42 = tpu.matmul %40, %41, %cst_51 {dimension_numbers = #tpu.dot_dimension_numbers<[1], [0], [0], [1], [0, 0, 1, 1], [], []>} : vector<64x128xbf16>, vector<128x128xbf16>, vector<64x128xf32> -> vector<64x128xf32>
    %c0_52 = arith.constant 0 : index
    %c0_53 = arith.constant 0 : index
    %43 = vector.load %arg7[%c0_52, %c0_53] : memref<64x128xf32, #tpu.memory_space<vmem>>, vector<64x128xf32>
    tpu.vector_store %arg7[%c0_52, %c0_53], %38 {strides = array<i32>} : memref<64x128xf32, #tpu.memory_space<vmem>>, vector<64x128xf32>,
    %c0_54 = arith.constant 0 : index
    %c0_55 = arith.constant 0 : index
    %44 = vector.load %arg8[%c0_54, %c0_55] : memref<64x128xf32, #tpu.memory_space<vmem>>, vector<64x128xf32>
    tpu.vector_store %arg8[%c0_54, %c0_55], %42 {strides = array<i32>} : memref<64x128xf32, #tpu.memory_space<vmem>>, vector<64x128xf32>,
    %c0_56 = arith.constant 0 : index
    %c0_57 = arith.constant 0 : index
    %45 = vector.load %arg9[%c0_56, %c0_57] : memref<8x128xf32, #tpu.memory_space<vmem>>, vector<1x128xf32>
    %cst_58 = arith.constant dense<0.000000e+00> : vector<128xf32>
    %46 = vector.multi_reduction <add>, %38, %cst_58 [0] : vector<64x128xf32> to vector<128xf32>
    %47 = vector.shape_cast %46 : vector<128xf32> to vector<1x128xf32>
    %48 = arith.addf %45, %47 : vector<1x128xf32>
    %c0_59 = arith.constant 0 : index
    %c0_60 = arith.constant 0 : index
    %49 = vector.load %arg9[%c0_59, %c0_60] : memref<8x128xf32, #tpu.memory_space<vmem>>, vector<1x128xf32>
    tpu.vector_store %arg9[%c0_59, %c0_60], %48 {strides = array<i32>} : memref<8x128xf32, #tpu.memory_space<vmem>>, vector<1x128xf32>,
    %c1_61 = arith.constant 1 : index
    %c0_62 = arith.constant 0 : index
    %50 = vector.load %arg9[%c1_61, %c0_62] : memref<8x128xf32, #tpu.memory_space<vmem>>, vector<1x128xf32>
    %51 = arith.mulf %38, %38 : vector<64x128xf32>
    %cst_63 = arith.constant dense<0.000000e+00> : vector<128xf32>
    %52 = vector.multi_reduction <add>, %51, %cst_63 [0] : vector<64x128xf32> to vector<128xf32>
    %53 = vector.shape_cast %52 : vector<128xf32> to vector<1x128xf32>
    %54 = arith.addf %50, %53 : vector<1x128xf32>
    %c1_64 = arith.constant 1 : index
    %c0_65 = arith.constant 0 : index
    %55 = vector.load %arg9[%c1_64, %c0_65] : memref<8x128xf32, #tpu.memory_space<vmem>>, vector<1x128xf32>
    tpu.vector_store %arg9[%c1_64, %c0_65], %54 {strides = array<i32>} : memref<8x128xf32, #tpu.memory_space<vmem>>, vector<1x128xf32>,
    %c2 = arith.constant 2 : index
    %c0_66 = arith.constant 0 : index
    %56 = vector.load %arg9[%c2, %c0_66] : memref<8x128xf32, #tpu.memory_space<vmem>>, vector<1x128xf32>
    %cst_67 = arith.constant dense<0.000000e+00> : vector<128xf32>
    %57 = vector.multi_reduction <add>, %42, %cst_67 [0] : vector<64x128xf32> to vector<128xf32>
    %58 = vector.shape_cast %57 : vector<128xf32> to vector<1x128xf32>
    %59 = arith.addf %56, %58 : vector<1x128xf32>
    %c2_68 = arith.constant 2 : index
    %c0_69 = arith.constant 0 : index
    %60 = vector.load %arg9[%c2_68, %c0_69] : memref<8x128xf32, #tpu.memory_space<vmem>>, vector<1x128xf32>
    tpu.vector_store %arg9[%c2_68, %c0_69], %59 {strides = array<i32>} : memref<8x128xf32, #tpu.memory_space<vmem>>, vector<1x128xf32>,
    %c3 = arith.constant 3 : index
    %c0_70 = arith.constant 0 : index
    %61 = vector.load %arg9[%c3, %c0_70] : memref<8x128xf32, #tpu.memory_space<vmem>>, vector<1x128xf32>
    %62 = arith.mulf %42, %42 : vector<64x128xf32>
    %cst_71 = arith.constant dense<0.000000e+00> : vector<128xf32>
    %63 = vector.multi_reduction <add>, %62, %cst_71 [0] : vector<64x128xf32> to vector<128xf32>
    %64 = vector.shape_cast %63 : vector<128xf32> to vector<1x128xf32>
    %65 = arith.addf %61, %64 : vector<1x128xf32>
    %c3_72 = arith.constant 3 : index
    %c0_73 = arith.constant 0 : index
    %66 = vector.load %arg9[%c3_72, %c0_73] : memref<8x128xf32, #tpu.memory_space<vmem>>, vector<1x128xf32>
    tpu.vector_store %arg9[%c3_72, %c0_73], %65 {strides = array<i32>} : memref<8x128xf32, #tpu.memory_space<vmem>>, vector<1x128xf32>,
    %c1_i32 = arith.constant 1 : i32
    %67 = arith.cmpi eq, %arg0, %c1_i32 : i32
    %68 = arith.extui %67 : i1 to i32
    %c0_i32_74 = arith.constant 0 : i32
    %69 = arith.cmpi ne, %68, %c0_i32_74 : i32
    scf.if %69 {
      %c0_75 = arith.constant 0 : index
      %c0_76 = arith.constant 0 : index
      %70 = vector.load %arg9[%c0_75, %c0_76] : memref<8x128xf32, #tpu.memory_space<vmem>>, vector<1x128xf32>
      %c1_77 = arith.constant 1 : index
      %c0_78 = arith.constant 0 : index
      %71 = vector.load %arg9[%c1_77, %c0_78] : memref<8x128xf32, #tpu.memory_space<vmem>>, vector<1x128xf32>
      %c2_79 = arith.constant 2 : index
      %c0_80 = arith.constant 0 : index
      %72 = vector.load %arg9[%c2_79, %c0_80] : memref<8x128xf32, #tpu.memory_space<vmem>>, vector<1x128xf32>
      %c3_81 = arith.constant 3 : index
      %c0_82 = arith.constant 0 : index
      %73 = vector.load %arg9[%c3_81, %c0_82] : memref<8x128xf32, #tpu.memory_space<vmem>>, vector<1x128xf32>
      %cst_83 = arith.constant 7.812500e-03 : f32
      %74 = vector.broadcast %cst_83 : f32 to vector<1x128xf32>
      %75 = arith.mulf %70, %74 : vector<1x128xf32>
      %cst_84 = arith.constant 7.812500e-03 : f32
      %76 = vector.broadcast %cst_84 : f32 to vector<1x128xf32>
      %77 = arith.mulf %71, %76 : vector<1x128xf32>
      %78 = arith.mulf %75, %75 : vector<1x128xf32>
      %79 = arith.subf %77, %78 : vector<1x128xf32>
      %cst_85 = arith.constant 0.000000e+00 : f32
      %80 = vector.broadcast %cst_85 : f32 to vector<1x128xf32>
      %81 = arith.maximumf %79, %80 : vector<1x128xf32>
      %cst_86 = arith.constant 7.812500e-03 : f32
      %82 = vector.broadcast %cst_86 : f32 to vector<1x128xf32>
      %83 = arith.mulf %72, %82 : vector<1x128xf32>
      %cst_87 = arith.constant 7.812500e-03 : f32
      %84 = vector.broadcast %cst_87 : f32 to vector<1x128xf32>
      %85 = arith.mulf %73, %84 : vector<1x128xf32>
      %86 = arith.mulf %83, %83 : vector<1x128xf32>
      %87 = arith.subf %85, %86 : vector<1x128xf32>
      %cst_88 = arith.constant 0.000000e+00 : f32
      %88 = vector.broadcast %cst_88 : f32 to vector<1x128xf32>
      %89 = arith.maximumf %87, %88 : vector<1x128xf32>
      %c0_89 = arith.constant 0 : index
      %c0_90 = arith.constant 0 : index
      %90 = vector.load %arg9[%c0_89, %c0_90] : memref<8x128xf32, #tpu.memory_space<vmem>>, vector<1x128xf32>
      tpu.vector_store %arg9[%c0_89, %c0_90], %75 {strides = array<i32>} : memref<8x128xf32, #tpu.memory_space<vmem>>, vector<1x128xf32>,
      %cst_91 = arith.constant 9.99999974E-6 : f32
      %91 = vector.broadcast %cst_91 : f32 to vector<1x128xf32>
      %92 = arith.addf %81, %91 : vector<1x128xf32>
      %93 = math.rsqrt %92 : vector<1x128xf32>
      %c1_92 = arith.constant 1 : index
      %c0_93 = arith.constant 0 : index
      %94 = vector.load %arg9[%c1_92, %c0_93] : memref<8x128xf32, #tpu.memory_space<vmem>>, vector<1x128xf32>
      tpu.vector_store %arg9[%c1_92, %c0_93], %93 {strides = array<i32>} : memref<8x128xf32, #tpu.memory_space<vmem>>, vector<1x128xf32>,
      %c2_94 = arith.constant 2 : index
      %c0_95 = arith.constant 0 : index
      %95 = vector.load %arg9[%c2_94, %c0_95] : memref<8x128xf32, #tpu.memory_space<vmem>>, vector<1x128xf32>
      tpu.vector_store %arg9[%c2_94, %c0_95], %83 {strides = array<i32>} : memref<8x128xf32, #tpu.memory_space<vmem>>, vector<1x128xf32>,
      %cst_96 = arith.constant 9.99999974E-6 : f32
      %96 = vector.broadcast %cst_96 : f32 to vector<1x128xf32>
      %97 = arith.addf %89, %96 : vector<1x128xf32>
      %98 = math.rsqrt %97 : vector<1x128xf32>
      %c3_97 = arith.constant 3 : index
      %c0_98 = arith.constant 0 : index
      %99 = vector.load %arg9[%c3_97, %c0_98] : memref<8x128xf32, #tpu.memory_space<vmem>>, vector<1x128xf32>
      tpu.vector_store %arg9[%c3_97, %c0_98], %98 {strides = array<i32>} : memref<8x128xf32, #tpu.memory_space<vmem>>, vector<1x128xf32>,
    } else {
    }
    return
  }
  func.func @transform_0(%arg0: i32) -> (i32, i32, i32, i32) {
    %c0_i32 = arith.constant 0 : i32
    %c0_i32_0 = arith.constant 0 : i32
    %c0_i32_1 = arith.constant 0 : i32
    %c0_i32_2 = arith.constant 0 : i32
    return %arg0, %c0_i32, %c0_i32_0, %c0_i32_1 : i32, i32, i32, i32
  }
  func.func @transform_1(%arg0: i32) -> (i32, i32, i32, i32) {
    %c0_i32 = arith.constant 0 : i32
    %c0_i32_0 = arith.constant 0 : i32
    %c0_i32_1 = arith.constant 0 : i32
    %c0_i32_2 = arith.constant 0 : i32
    return %arg0, %c0_i32, %c0_i32_0, %c0_i32_1 : i32, i32, i32, i32
  }
  func.func @transform_2(%arg0: i32) -> (i32, i32, i32, i32) {
    %c0_i32 = arith.constant 0 : i32
    %c0_i32_0 = arith.constant 0 : i32
    %c0_i32_1 = arith.constant 0 : i32
    %c0_i32_2 = arith.constant 0 : i32
    return %arg0, %c0_i32, %c0_i32_0, %c0_i32_1 : i32, i32, i32, i32
  }
  func.func @transform_3(%arg0: i32) -> (i32, i32, i32, i32) {
    %c0_i32 = arith.constant 0 : i32
    %c0_i32_0 = arith.constant 0 : i32
    %c0_i32_1 = arith.constant 0 : i32
    %c0_i32_2 = arith.constant 0 : i32
    return %arg0, %c0_i32, %c0_i32_0, %c0_i32_1 : i32, i32, i32, i32
  }
  func.func @transform_4(%arg0: i32) -> (i32, i32) {
    %c0_i32 = arith.constant 0 : i32
    %c0_i32_0 = arith.constant 0 : i32
    %c0_i32_1 = arith.constant 0 : i32
    return %c0_i32, %c0_i32_0 : i32, i32
  }
  func.func @transform_5(%arg0: i32) -> (i32, i32) {
    %c0_i32 = arith.constant 0 : i32
    %c0_i32_0 = arith.constant 0 : i32
    %c0_i32_1 = arith.constant 0 : i32
    return %c0_i32, %c0_i32_0 : i32, i32
  }
  func.func @transform_6(%arg0: i32) -> (i32, i32) {
    %c0_i32 = arith.constant 0 : i32
    %c0_i32_0 = arith.constant 0 : i32
    return %arg0, %c0_i32 : i32, i32
  }
  func.func @transform_7(%arg0: i32) -> (i32, i32) {
    %c0_i32 = arith.constant 0 : i32
    %c0_i32_0 = arith.constant 0 : i32
    return %arg0, %c0_i32 : i32, i32
  }
  func.func @transform_8(%arg0: i32) -> (i32, i32) {
    %c0_i32 = arith.constant 0 : i32
    %c0_i32_0 = arith.constant 0 : i32
    %c0_i32_1 = arith.constant 0 : i32
    return %c0_i32, %c0_i32_0 : i32, i32
  }
}

module attributes {stable_mosaic.version = 11 : i64} {
  func.func @_pass2_kernel(%arg0: i32, %arg1: memref<64x128xf32, #tpu.memory_space<vmem>>, %arg2: memref<8x128xf32, #tpu.memory_space<vmem>>, %arg3: memref<1x128xf32, #tpu.memory_space<vmem>>, %arg4: memref<1x128xf32, #tpu.memory_space<vmem>>, %arg5: memref<1152x128xbf16, #tpu.memory_space<vmem>>, %arg6: memref<64x128xf32, #tpu.memory_space<vmem>>, %arg7: memref<8x128xf32, #tpu.memory_space<vmem>>, %arg8: memref<1x10x10x128xbf16, #tpu.memory_space<vmem>>) attributes {dimension_semantics = [#tpu.dimension_semantics<arbitrary>], iteration_bounds = array<i64: 2>, scalar_prefetch = 0 : i64, scratch_operands = 1 : i64, tpu.core_type = #tpu.core_type<tc>, window_params = [{transform_indices = @transform_0, window_bounds = array<i64: 64, 128>}, {pipeline_mode = #tpu.pipeline_mode<synchronous>, transform_indices = @transform_1, window_bounds = array<i64: 8, 128>}, {pipeline_mode = #tpu.pipeline_mode<synchronous>, transform_indices = @transform_2, window_bounds = array<i64: 1, 128>}, {pipeline_mode = #tpu.pipeline_mode<synchronous>, transform_indices = @transform_3, window_bounds = array<i64: 1, 128>}, {pipeline_mode = #tpu.pipeline_mode<synchronous>, transform_indices = @transform_4, window_bounds = array<i64: 1152, 128>}, {transform_indices = @transform_5, window_bounds = array<i64: 64, 128>}, {pipeline_mode = #tpu.pipeline_mode<synchronous>, transform_indices = @transform_6, window_bounds = array<i64: 8, 128>}]} {
    %c0_i32 = arith.constant 0 : i32
    %0 = arith.cmpi eq, %arg0, %c0_i32 : i32
    %1 = arith.extui %0 : i1 to i32
    %c0_i32_0 = arith.constant 0 : i32
    %2 = arith.cmpi ne, %1, %c0_i32_0 : i32
    scf.if %2 {
      %cst_72 = arith.constant 0.000000e+00 : f32
      %72 = vector.broadcast %cst_72 : f32 to vector<8x128xf32>
      %c0_73 = arith.constant 0 : index
      %c0_74 = arith.constant 0 : index
      %73 = vector.load %arg7[%c0_73, %c0_74] : memref<8x128xf32, #tpu.memory_space<vmem>>, vector<8x128xf32>
      tpu.vector_store %arg7[%c0_73, %c0_74], %72 {strides = array<i32>} : memref<8x128xf32, #tpu.memory_space<vmem>>, vector<8x128xf32>,
      %cst_75 = arith.constant 0.000000e+00 : bf16
      %74 = vector.broadcast %cst_75 : bf16 to vector<1x1x10x128xbf16>
      %c0_76 = arith.constant 0 : index
      %c0_77 = arith.constant 0 : index
      %c0_78 = arith.constant 0 : index
      %c0_79 = arith.constant 0 : index
      %75 = vector.load %arg8[%c0_76, %c0_77, %c0_78, %c0_79] : memref<1x10x10x128xbf16, #tpu.memory_space<vmem>>, vector<1x1x10x128xbf16>
      tpu.vector_store %arg8[%c0_76, %c0_77, %c0_78, %c0_79], %74 {strides = array<i32>} : memref<1x10x10x128xbf16, #tpu.memory_space<vmem>>, vector<1x1x10x128xbf16>,
      %cst_80 = arith.constant 0.000000e+00 : bf16
      %76 = vector.broadcast %cst_80 : bf16 to vector<1x1x10x128xbf16>
      %c0_81 = arith.constant 0 : index
      %c9 = arith.constant 9 : index
      %c0_82 = arith.constant 0 : index
      %c0_83 = arith.constant 0 : index
      %77 = vector.load %arg8[%c0_81, %c9, %c0_82, %c0_83] : memref<1x10x10x128xbf16, #tpu.memory_space<vmem>>, vector<1x1x10x128xbf16>
      tpu.vector_store %arg8[%c0_81, %c9, %c0_82, %c0_83], %76 {strides = array<i32>} : memref<1x10x10x128xbf16, #tpu.memory_space<vmem>>, vector<1x1x10x128xbf16>,
      %cst_84 = arith.constant 0.000000e+00 : bf16
      %78 = vector.broadcast %cst_84 : bf16 to vector<1x10x1x128xbf16>
      %c0_85 = arith.constant 0 : index
      %c0_86 = arith.constant 0 : index
      %c0_87 = arith.constant 0 : index
      %c0_88 = arith.constant 0 : index
      %79 = vector.load %arg8[%c0_85, %c0_86, %c0_87, %c0_88] : memref<1x10x10x128xbf16, #tpu.memory_space<vmem>>, vector<1x10x1x128xbf16>
      tpu.vector_store %arg8[%c0_85, %c0_86, %c0_87, %c0_88], %78 {strides = array<i32>} : memref<1x10x10x128xbf16, #tpu.memory_space<vmem>>, vector<1x10x1x128xbf16>,
      %cst_89 = arith.constant 0.000000e+00 : bf16
      %80 = vector.broadcast %cst_89 : bf16 to vector<1x10x1x128xbf16>
      %c0_90 = arith.constant 0 : index
      %c0_91 = arith.constant 0 : index
      %c9_92 = arith.constant 9 : index
      %c0_93 = arith.constant 0 : index
      %81 = vector.load %arg8[%c0_90, %c0_91, %c9_92, %c0_93] : memref<1x10x10x128xbf16, #tpu.memory_space<vmem>>, vector<1x10x1x128xbf16>
      tpu.vector_store %arg8[%c0_90, %c0_91, %c9_92, %c0_93], %80 {strides = array<i32>} : memref<1x10x10x128xbf16, #tpu.memory_space<vmem>>, vector<1x10x1x128xbf16>,
    } else {
    }
    %c0 = arith.constant 0 : index
    %c0_1 = arith.constant 0 : index
    %3 = vector.load %arg2[%c0, %c0_1] : memref<8x128xf32, #tpu.memory_space<vmem>>, vector<1x128xf32>
    %c1 = arith.constant 1 : index
    %c0_2 = arith.constant 0 : index
    %4 = vector.load %arg2[%c1, %c0_2] : memref<8x128xf32, #tpu.memory_space<vmem>>, vector<1x128xf32>
    %c0_3 = arith.constant 0 : index
    %c0_4 = arith.constant 0 : index
    %5 = vector.load %arg1[%c0_3, %c0_4] : memref<64x128xf32, #tpu.memory_space<vmem>>, vector<64x128xf32>
    %6 = vector.broadcast %3 : vector<1x128xf32> to vector<64x128xf32>
    %7 = arith.subf %5, %6 : vector<64x128xf32>
    %8 = vector.broadcast %4 : vector<1x128xf32> to vector<64x128xf32>
    %9 = arith.mulf %7, %8 : vector<64x128xf32>
    %c0_5 = arith.constant 0 : index
    %c0_6 = arith.constant 0 : index
    %10 = vector.load %arg3[%c0_5, %c0_6] : memref<1x128xf32, #tpu.memory_space<vmem>>, vector<1x128xf32>
    %11 = vector.broadcast %10 : vector<1x128xf32> to vector<64x128xf32>
    %12 = arith.mulf %9, %11 : vector<64x128xf32>
    %c0_7 = arith.constant 0 : index
    %c0_8 = arith.constant 0 : index
    %13 = vector.load %arg4[%c0_7, %c0_8] : memref<1x128xf32, #tpu.memory_space<vmem>>, vector<1x128xf32>
    %14 = vector.broadcast %13 : vector<1x128xf32> to vector<64x128xf32>
    %15 = arith.addf %12, %14 : vector<64x128xf32>
    %cst = arith.constant 0.000000e+00 : f32
    %16 = vector.broadcast %cst : f32 to vector<64x128xf32>
    %17 = arith.maximumf %15, %16 : vector<64x128xf32>
    %18 = vector.shape_cast %17 : vector<64x128xf32> to vector<1x8x8x128xf32>
    %19 = arith.truncf %18 : vector<1x8x8x128xf32> to vector<1x8x8x128xbf16>
    %c0_9 = arith.constant 0 : index
    %c1_10 = arith.constant 1 : index
    %c1_11 = arith.constant 1 : index
    %c0_12 = arith.constant 0 : index
    %20 = vector.load %arg8[%c0_9, %c1_10, %c1_11, %c0_12] : memref<1x10x10x128xbf16, #tpu.memory_space<vmem>>, vector<1x8x8x128xbf16>
    tpu.vector_store %arg8[%c0_9, %c1_10, %c1_11, %c0_12], %19 {strides = array<i32>} : memref<1x10x10x128xbf16, #tpu.memory_space<vmem>>, vector<1x8x8x128xbf16>,
    %c0_13 = arith.constant 0 : index
    %c0_14 = arith.constant 0 : index
    %c0_15 = arith.constant 0 : index
    %c0_16 = arith.constant 0 : index
    %21 = vector.load %arg8[%c0_13, %c0_14, %c0_15, %c0_16] : memref<1x10x10x128xbf16, #tpu.memory_space<vmem>>, vector<1x8x8x128xbf16>
    %22 = vector.shape_cast %21 : vector<1x8x8x128xbf16> to vector<64x128xbf16>
    %c0_17 = arith.constant 0 : index
    %c0_18 = arith.constant 0 : index
    %c1_19 = arith.constant 1 : index
    %c0_20 = arith.constant 0 : index
    %23 = vector.load %arg8[%c0_17, %c0_18, %c1_19, %c0_20] : memref<1x10x10x128xbf16, #tpu.memory_space<vmem>>, vector<1x8x8x128xbf16>
    %24 = vector.shape_cast %23 : vector<1x8x8x128xbf16> to vector<64x128xbf16>
    %25 = tpu.concatenate %22, %24 in 1 : vector<64x128xbf16>, vector<64x128xbf16> -> vector<64x256xbf16>
    %c0_21 = arith.constant 0 : index
    %c0_22 = arith.constant 0 : index
    %26 = vector.load %arg5[%c0_21, %c0_22] : memref<1152x128xbf16, #tpu.memory_space<vmem>>, vector<256x128xbf16>
    %cst_23 = arith.constant dense<0.000000e+00> : vector<64x128xf32>
    %27 = tpu.matmul %25, %26, %cst_23 {dimension_numbers = #tpu.dot_dimension_numbers<[1], [0], [0], [1], [0, 0, 1, 1], [], []>} : vector<64x256xbf16>, vector<256x128xbf16>, vector<64x128xf32> -> vector<64x128xf32>
    %c0_24 = arith.constant 0 : index
    %c0_25 = arith.constant 0 : index
    %c2 = arith.constant 2 : index
    %c0_26 = arith.constant 0 : index
    %28 = vector.load %arg8[%c0_24, %c0_25, %c2, %c0_26] : memref<1x10x10x128xbf16, #tpu.memory_space<vmem>>, vector<1x8x8x128xbf16>
    %29 = vector.shape_cast %28 : vector<1x8x8x128xbf16> to vector<64x128xbf16>
    %c0_27 = arith.constant 0 : index
    %c1_28 = arith.constant 1 : index
    %c0_29 = arith.constant 0 : index
    %c0_30 = arith.constant 0 : index
    %30 = vector.load %arg8[%c0_27, %c1_28, %c0_29, %c0_30] : memref<1x10x10x128xbf16, #tpu.memory_space<vmem>>, vector<1x8x8x128xbf16>
    %31 = vector.shape_cast %30 : vector<1x8x8x128xbf16> to vector<64x128xbf16>
    %32 = tpu.concatenate %29, %31 in 1 : vector<64x128xbf16>, vector<64x128xbf16> -> vector<64x256xbf16>
    %c256 = arith.constant 256 : index
    %c0_31 = arith.constant 0 : index
    %33 = vector.load %arg5[%c256, %c0_31] : memref<1152x128xbf16, #tpu.memory_space<vmem>>, vector<256x128xbf16>
    %cst_32 = arith.constant dense<0.000000e+00> : vector<64x128xf32>
    %34 = tpu.matmul %32, %33, %cst_32 {dimension_numbers = #tpu.dot_dimension_numbers<[1], [0], [0], [1], [0, 0, 1, 1], [], []>} : vector<64x256xbf16>, vector<256x128xbf16>, vector<64x128xf32> -> vector<64x128xf32>
    %35 = arith.addf %27, %34 : vector<64x128xf32>
    %c0_33 = arith.constant 0 : index
    %c1_34 = arith.constant 1 : index
    %c1_35 = arith.constant 1 : index
    %c0_36 = arith.constant 0 : index
    %36 = vector.load %arg8[%c0_33, %c1_34, %c1_35, %c0_36] : memref<1x10x10x128xbf16, #tpu.memory_space<vmem>>, vector<1x8x8x128xbf16>
    %37 = vector.shape_cast %36 : vector<1x8x8x128xbf16> to vector<64x128xbf16>
    %c0_37 = arith.constant 0 : index
    %c1_38 = arith.constant 1 : index
    %c2_39 = arith.constant 2 : index
    %c0_40 = arith.constant 0 : index
    %38 = vector.load %arg8[%c0_37, %c1_38, %c2_39, %c0_40] : memref<1x10x10x128xbf16, #tpu.memory_space<vmem>>, vector<1x8x8x128xbf16>
    %39 = vector.shape_cast %38 : vector<1x8x8x128xbf16> to vector<64x128xbf16>
    %40 = tpu.concatenate %37, %39 in 1 : vector<64x128xbf16>, vector<64x128xbf16> -> vector<64x256xbf16>
    %c512 = arith.constant 512 : index
    %c0_41 = arith.constant 0 : index
    %41 = vector.load %arg5[%c512, %c0_41] : memref<1152x128xbf16, #tpu.memory_space<vmem>>, vector<256x128xbf16>
    %cst_42 = arith.constant dense<0.000000e+00> : vector<64x128xf32>
    %42 = tpu.matmul %40, %41, %cst_42 {dimension_numbers = #tpu.dot_dimension_numbers<[1], [0], [0], [1], [0, 0, 1, 1], [], []>} : vector<64x256xbf16>, vector<256x128xbf16>, vector<64x128xf32> -> vector<64x128xf32>
    %43 = arith.addf %35, %42 : vector<64x128xf32>
    %c0_43 = arith.constant 0 : index
    %c2_44 = arith.constant 2 : index
    %c0_45 = arith.constant 0 : index
    %c0_46 = arith.constant 0 : index
    %44 = vector.load %arg8[%c0_43, %c2_44, %c0_45, %c0_46] : memref<1x10x10x128xbf16, #tpu.memory_space<vmem>>, vector<1x8x8x128xbf16>
    %45 = vector.shape_cast %44 : vector<1x8x8x128xbf16> to vector<64x128xbf16>
    %c0_47 = arith.constant 0 : index
    %c2_48 = arith.constant 2 : index
    %c1_49 = arith.constant 1 : index
    %c0_50 = arith.constant 0 : index
    %46 = vector.load %arg8[%c0_47, %c2_48, %c1_49, %c0_50] : memref<1x10x10x128xbf16, #tpu.memory_space<vmem>>, vector<1x8x8x128xbf16>
    %47 = vector.shape_cast %46 : vector<1x8x8x128xbf16> to vector<64x128xbf16>
    %48 = tpu.concatenate %45, %47 in 1 : vector<64x128xbf16>, vector<64x128xbf16> -> vector<64x256xbf16>
    %c768 = arith.constant 768 : index
    %c0_51 = arith.constant 0 : index
    %49 = vector.load %arg5[%c768, %c0_51] : memref<1152x128xbf16, #tpu.memory_space<vmem>>, vector<256x128xbf16>
    %cst_52 = arith.constant dense<0.000000e+00> : vector<64x128xf32>
    %50 = tpu.matmul %48, %49, %cst_52 {dimension_numbers = #tpu.dot_dimension_numbers<[1], [0], [0], [1], [0, 0, 1, 1], [], []>} : vector<64x256xbf16>, vector<256x128xbf16>, vector<64x128xf32> -> vector<64x128xf32>
    %51 = arith.addf %43, %50 : vector<64x128xf32>
    %c0_53 = arith.constant 0 : index
    %c2_54 = arith.constant 2 : index
    %c2_55 = arith.constant 2 : index
    %c0_56 = arith.constant 0 : index
    %52 = vector.load %arg8[%c0_53, %c2_54, %c2_55, %c0_56] : memref<1x10x10x128xbf16, #tpu.memory_space<vmem>>, vector<1x8x8x128xbf16>
    %53 = vector.shape_cast %52 : vector<1x8x8x128xbf16> to vector<64x128xbf16>
    %c1024 = arith.constant 1024 : index
    %c0_57 = arith.constant 0 : index
    %54 = vector.load %arg5[%c1024, %c0_57] : memref<1152x128xbf16, #tpu.memory_space<vmem>>, vector<128x128xbf16>
    %cst_58 = arith.constant dense<0.000000e+00> : vector<64x128xf32>
    %55 = tpu.matmul %53, %54, %cst_58 {dimension_numbers = #tpu.dot_dimension_numbers<[1], [0], [0], [1], [0, 0, 1, 1], [], []>} : vector<64x128xbf16>, vector<128x128xbf16>, vector<64x128xf32> -> vector<64x128xf32>
    %56 = arith.addf %51, %55 : vector<64x128xf32>
    %c0_59 = arith.constant 0 : index
    %c0_60 = arith.constant 0 : index
    %57 = vector.load %arg6[%c0_59, %c0_60] : memref<64x128xf32, #tpu.memory_space<vmem>>, vector<64x128xf32>
    tpu.vector_store %arg6[%c0_59, %c0_60], %56 {strides = array<i32>} : memref<64x128xf32, #tpu.memory_space<vmem>>, vector<64x128xf32>,
    %c0_61 = arith.constant 0 : index
    %c0_62 = arith.constant 0 : index
    %58 = vector.load %arg7[%c0_61, %c0_62] : memref<8x128xf32, #tpu.memory_space<vmem>>, vector<1x128xf32>
    %cst_63 = arith.constant dense<0.000000e+00> : vector<128xf32>
    %59 = vector.multi_reduction <add>, %56, %cst_63 [0] : vector<64x128xf32> to vector<128xf32>
    %60 = vector.shape_cast %59 : vector<128xf32> to vector<1x128xf32>
    %61 = arith.addf %58, %60 : vector<1x128xf32>
    %c0_64 = arith.constant 0 : index
    %c0_65 = arith.constant 0 : index
    %62 = vector.load %arg7[%c0_64, %c0_65] : memref<8x128xf32, #tpu.memory_space<vmem>>, vector<1x128xf32>
    tpu.vector_store %arg7[%c0_64, %c0_65], %61 {strides = array<i32>} : memref<8x128xf32, #tpu.memory_space<vmem>>, vector<1x128xf32>,
    %c1_66 = arith.constant 1 : index
    %c0_67 = arith.constant 0 : index
    %63 = vector.load %arg7[%c1_66, %c0_67] : memref<8x128xf32, #tpu.memory_space<vmem>>, vector<1x128xf32>
    %64 = arith.mulf %56, %56 : vector<64x128xf32>
    %cst_68 = arith.constant dense<0.000000e+00> : vector<128xf32>
    %65 = vector.multi_reduction <add>, %64, %cst_68 [0] : vector<64x128xf32> to vector<128xf32>
    %66 = vector.shape_cast %65 : vector<128xf32> to vector<1x128xf32>
    %67 = arith.addf %63, %66 : vector<1x128xf32>
    %c1_69 = arith.constant 1 : index
    %c0_70 = arith.constant 0 : index
    %68 = vector.load %arg7[%c1_69, %c0_70] : memref<8x128xf32, #tpu.memory_space<vmem>>, vector<1x128xf32>
    tpu.vector_store %arg7[%c1_69, %c0_70], %67 {strides = array<i32>} : memref<8x128xf32, #tpu.memory_space<vmem>>, vector<1x128xf32>,
    %c1_i32 = arith.constant 1 : i32
    %69 = arith.cmpi eq, %arg0, %c1_i32 : i32
    %70 = arith.extui %69 : i1 to i32
    %c0_i32_71 = arith.constant 0 : i32
    %71 = arith.cmpi ne, %70, %c0_i32_71 : i32
    scf.if %71 {
      %c0_72 = arith.constant 0 : index
      %c0_73 = arith.constant 0 : index
      %72 = vector.load %arg7[%c0_72, %c0_73] : memref<8x128xf32, #tpu.memory_space<vmem>>, vector<1x128xf32>
      %c1_74 = arith.constant 1 : index
      %c0_75 = arith.constant 0 : index
      %73 = vector.load %arg7[%c1_74, %c0_75] : memref<8x128xf32, #tpu.memory_space<vmem>>, vector<1x128xf32>
      %cst_76 = arith.constant 7.812500e-03 : f32
      %74 = vector.broadcast %cst_76 : f32 to vector<1x128xf32>
      %75 = arith.mulf %72, %74 : vector<1x128xf32>
      %cst_77 = arith.constant 7.812500e-03 : f32
      %76 = vector.broadcast %cst_77 : f32 to vector<1x128xf32>
      %77 = arith.mulf %73, %76 : vector<1x128xf32>
      %78 = arith.mulf %75, %75 : vector<1x128xf32>
      %79 = arith.subf %77, %78 : vector<1x128xf32>
      %cst_78 = arith.constant 0.000000e+00 : f32
      %80 = vector.broadcast %cst_78 : f32 to vector<1x128xf32>
      %81 = arith.maximumf %79, %80 : vector<1x128xf32>
      %c0_79 = arith.constant 0 : index
      %c0_80 = arith.constant 0 : index
      %82 = vector.load %arg7[%c0_79, %c0_80] : memref<8x128xf32, #tpu.memory_space<vmem>>, vector<1x128xf32>
      tpu.vector_store %arg7[%c0_79, %c0_80], %75 {strides = array<i32>} : memref<8x128xf32, #tpu.memory_space<vmem>>, vector<1x128xf32>,
      %cst_81 = arith.constant 9.99999974E-6 : f32
      %83 = vector.broadcast %cst_81 : f32 to vector<1x128xf32>
      %84 = arith.addf %81, %83 : vector<1x128xf32>
      %85 = math.rsqrt %84 : vector<1x128xf32>
      %c1_82 = arith.constant 1 : index
      %c0_83 = arith.constant 0 : index
      %86 = vector.load %arg7[%c1_82, %c0_83] : memref<8x128xf32, #tpu.memory_space<vmem>>, vector<1x128xf32>
      tpu.vector_store %arg7[%c1_82, %c0_83], %85 {strides = array<i32>} : memref<8x128xf32, #tpu.memory_space<vmem>>, vector<1x128xf32>,
    } else {
    }
    return
  }
  func.func @transform_0(%arg0: i32) -> (i32, i32) {
    %c0_i32 = arith.constant 0 : i32
    %c0_i32_0 = arith.constant 0 : i32
    return %arg0, %c0_i32 : i32, i32
  }
  func.func @transform_1(%arg0: i32) -> (i32, i32) {
    %c0_i32 = arith.constant 0 : i32
    %c0_i32_0 = arith.constant 0 : i32
    %c0_i32_1 = arith.constant 0 : i32
    return %c0_i32, %c0_i32_0 : i32, i32
  }
  func.func @transform_2(%arg0: i32) -> (i32, i32) {
    %c0_i32 = arith.constant 0 : i32
    %c0_i32_0 = arith.constant 0 : i32
    %c0_i32_1 = arith.constant 0 : i32
    return %c0_i32, %c0_i32_0 : i32, i32
  }
  func.func @transform_3(%arg0: i32) -> (i32, i32) {
    %c0_i32 = arith.constant 0 : i32
    %c0_i32_0 = arith.constant 0 : i32
    %c0_i32_1 = arith.constant 0 : i32
    return %c0_i32, %c0_i32_0 : i32, i32
  }
  func.func @transform_4(%arg0: i32) -> (i32, i32) {
    %c0_i32 = arith.constant 0 : i32
    %c0_i32_0 = arith.constant 0 : i32
    %c0_i32_1 = arith.constant 0 : i32
    return %c0_i32, %c0_i32_0 : i32, i32
  }
  func.func @transform_5(%arg0: i32) -> (i32, i32) {
    %c0_i32 = arith.constant 0 : i32
    %c0_i32_0 = arith.constant 0 : i32
    return %arg0, %c0_i32 : i32, i32
  }
  func.func @transform_6(%arg0: i32) -> (i32, i32) {
    %c0_i32 = arith.constant 0 : i32
    %c0_i32_0 = arith.constant 0 : i32
    %c0_i32_1 = arith.constant 0 : i32
    return %c0_i32, %c0_i32_0 : i32, i32
  }
}

module attributes {stable_mosaic.version = 11 : i64} {
  func.func @_pass3_kernel(%arg0: i32, %arg1: memref<64x128xf32, #tpu.memory_space<vmem>>, %arg2: memref<64x128xf32, #tpu.memory_space<vmem>>, %arg3: memref<8x128xf32, #tpu.memory_space<vmem>>, %arg4: memref<8x128xf32, #tpu.memory_space<vmem>>, %arg5: memref<1x128xf32, #tpu.memory_space<vmem>>, %arg6: memref<1x128xf32, #tpu.memory_space<vmem>>, %arg7: memref<1x128xf32, #tpu.memory_space<vmem>>, %arg8: memref<1x128xf32, #tpu.memory_space<vmem>>, %arg9: memref<64x128xbf16, #tpu.memory_space<vmem>>) attributes {dimension_semantics = [#tpu.dimension_semantics<parallel>], iteration_bounds = array<i64: 2>, scalar_prefetch = 0 : i64, scratch_operands = 0 : i64, tpu.core_type = #tpu.core_type<tc>, window_params = [{transform_indices = @transform_0, window_bounds = array<i64: 64, 128>}, {transform_indices = @transform_1, window_bounds = array<i64: 64, 128>}, {pipeline_mode = #tpu.pipeline_mode<synchronous>, transform_indices = @transform_2, window_bounds = array<i64: 8, 128>}, {pipeline_mode = #tpu.pipeline_mode<synchronous>, transform_indices = @transform_3, window_bounds = array<i64: 8, 128>}, {pipeline_mode = #tpu.pipeline_mode<synchronous>, transform_indices = @transform_4, window_bounds = array<i64: 1, 128>}, {pipeline_mode = #tpu.pipeline_mode<synchronous>, transform_indices = @transform_5, window_bounds = array<i64: 1, 128>}, {pipeline_mode = #tpu.pipeline_mode<synchronous>, transform_indices = @transform_6, window_bounds = array<i64: 1, 128>}, {pipeline_mode = #tpu.pipeline_mode<synchronous>, transform_indices = @transform_7, window_bounds = array<i64: 1, 128>}, {transform_indices = @transform_8, window_bounds = array<i64: 64, 128>}]} {
    %c0 = arith.constant 0 : index
    %c0_0 = arith.constant 0 : index
    %0 = vector.load %arg4[%c0, %c0_0] : memref<8x128xf32, #tpu.memory_space<vmem>>, vector<1x128xf32>
    %c1 = arith.constant 1 : index
    %c0_1 = arith.constant 0 : index
    %1 = vector.load %arg4[%c1, %c0_1] : memref<8x128xf32, #tpu.memory_space<vmem>>, vector<1x128xf32>
    %c2 = arith.constant 2 : index
    %c0_2 = arith.constant 0 : index
    %2 = vector.load %arg3[%c2, %c0_2] : memref<8x128xf32, #tpu.memory_space<vmem>>, vector<1x128xf32>
    %c3 = arith.constant 3 : index
    %c0_3 = arith.constant 0 : index
    %3 = vector.load %arg3[%c3, %c0_3] : memref<8x128xf32, #tpu.memory_space<vmem>>, vector<1x128xf32>
    %c0_4 = arith.constant 0 : index
    %c0_5 = arith.constant 0 : index
    %4 = vector.load %arg1[%c0_4, %c0_5] : memref<64x128xf32, #tpu.memory_space<vmem>>, vector<64x128xf32>
    %5 = vector.broadcast %0 : vector<1x128xf32> to vector<64x128xf32>
    %6 = arith.subf %4, %5 : vector<64x128xf32>
    %7 = vector.broadcast %1 : vector<1x128xf32> to vector<64x128xf32>
    %8 = arith.mulf %6, %7 : vector<64x128xf32>
    %c0_6 = arith.constant 0 : index
    %c0_7 = arith.constant 0 : index
    %9 = vector.load %arg5[%c0_6, %c0_7] : memref<1x128xf32, #tpu.memory_space<vmem>>, vector<1x128xf32>
    %10 = vector.broadcast %9 : vector<1x128xf32> to vector<64x128xf32>
    %11 = arith.mulf %8, %10 : vector<64x128xf32>
    %c0_8 = arith.constant 0 : index
    %c0_9 = arith.constant 0 : index
    %12 = vector.load %arg6[%c0_8, %c0_9] : memref<1x128xf32, #tpu.memory_space<vmem>>, vector<1x128xf32>
    %13 = vector.broadcast %12 : vector<1x128xf32> to vector<64x128xf32>
    %14 = arith.addf %11, %13 : vector<64x128xf32>
    %c0_10 = arith.constant 0 : index
    %c0_11 = arith.constant 0 : index
    %15 = vector.load %arg2[%c0_10, %c0_11] : memref<64x128xf32, #tpu.memory_space<vmem>>, vector<64x128xf32>
    %16 = vector.broadcast %2 : vector<1x128xf32> to vector<64x128xf32>
    %17 = arith.subf %15, %16 : vector<64x128xf32>
    %18 = vector.broadcast %3 : vector<1x128xf32> to vector<64x128xf32>
    %19 = arith.mulf %17, %18 : vector<64x128xf32>
    %c0_12 = arith.constant 0 : index
    %c0_13 = arith.constant 0 : index
    %20 = vector.load %arg7[%c0_12, %c0_13] : memref<1x128xf32, #tpu.memory_space<vmem>>, vector<1x128xf32>
    %21 = vector.broadcast %20 : vector<1x128xf32> to vector<64x128xf32>
    %22 = arith.mulf %19, %21 : vector<64x128xf32>
    %c0_14 = arith.constant 0 : index
    %c0_15 = arith.constant 0 : index
    %23 = vector.load %arg8[%c0_14, %c0_15] : memref<1x128xf32, #tpu.memory_space<vmem>>, vector<1x128xf32>
    %24 = vector.broadcast %23 : vector<1x128xf32> to vector<64x128xf32>
    %25 = arith.addf %22, %24 : vector<64x128xf32>
    %26 = arith.addf %14, %25 : vector<64x128xf32>
    %cst = arith.constant 0.000000e+00 : f32
    %27 = vector.broadcast %cst : f32 to vector<64x128xf32>
    %28 = arith.maximumf %26, %27 : vector<64x128xf32>
    %29 = arith.truncf %28 : vector<64x128xf32> to vector<64x128xbf16>
    %c0_16 = arith.constant 0 : index
    %c0_17 = arith.constant 0 : index
    %30 = vector.load %arg9[%c0_16, %c0_17] : memref<64x128xbf16, #tpu.memory_space<vmem>>, vector<64x128xbf16>
    tpu.vector_store %arg9[%c0_16, %c0_17], %29 {strides = array<i32>} : memref<64x128xbf16, #tpu.memory_space<vmem>>, vector<64x128xbf16>,
    return
  }
  func.func @transform_0(%arg0: i32) -> (i32, i32) {
    %c0_i32 = arith.constant 0 : i32
    %c0_i32_0 = arith.constant 0 : i32
    return %arg0, %c0_i32 : i32, i32
  }
  func.func @transform_1(%arg0: i32) -> (i32, i32) {
    %c0_i32 = arith.constant 0 : i32
    %c0_i32_0 = arith.constant 0 : i32
    return %arg0, %c0_i32 : i32, i32
  }
  func.func @transform_2(%arg0: i32) -> (i32, i32) {
    %c0_i32 = arith.constant 0 : i32
    %c0_i32_0 = arith.constant 0 : i32
    %c0_i32_1 = arith.constant 0 : i32
    return %c0_i32, %c0_i32_0 : i32, i32
  }
  func.func @transform_3(%arg0: i32) -> (i32, i32) {
    %c0_i32 = arith.constant 0 : i32
    %c0_i32_0 = arith.constant 0 : i32
    %c0_i32_1 = arith.constant 0 : i32
    return %c0_i32, %c0_i32_0 : i32, i32
  }
  func.func @transform_4(%arg0: i32) -> (i32, i32) {
    %c0_i32 = arith.constant 0 : i32
    %c0_i32_0 = arith.constant 0 : i32
    %c0_i32_1 = arith.constant 0 : i32
    return %c0_i32, %c0_i32_0 : i32, i32
  }
  func.func @transform_5(%arg0: i32) -> (i32, i32) {
    %c0_i32 = arith.constant 0 : i32
    %c0_i32_0 = arith.constant 0 : i32
    %c0_i32_1 = arith.constant 0 : i32
    return %c0_i32, %c0_i32_0 : i32, i32
  }
  func.func @transform_6(%arg0: i32) -> (i32, i32) {
    %c0_i32 = arith.constant 0 : i32
    %c0_i32_0 = arith.constant 0 : i32
    %c0_i32_1 = arith.constant 0 : i32
    return %c0_i32, %c0_i32_0 : i32, i32
  }
  func.func @transform_7(%arg0: i32) -> (i32, i32) {
    %c0_i32 = arith.constant 0 : i32
    %c0_i32_0 = arith.constant 0 : i32
    %c0_i32_1 = arith.constant 0 : i32
    return %c0_i32, %c0_i32_0 : i32, i32
  }
  func.func @transform_8(%arg0: i32) -> (i32, i32) {
    %c0_i32 = arith.constant 0 : i32
    %c0_i32_0 = arith.constant 0 : i32
    return %arg0, %c0_i32 : i32, i32
  }
}

</mosaic_0001>

<llo_original>
// kernel: restnet_down_block.5
$region0: #{restnet_down_block.5}
  #allocation0 [shape = 'u32[]', space=smem, size = 0x4, offset = 0x4, fixed_abs, tag = 'smem constant byte address 0x4 - core index']
  #allocation1 [shape = 'u32[144,128]{1,0:T(1,128)}', space=vmem, size = 0x12000, scoped, tag = 'internal scratch']
  %s0 = inlined_call_operand.vmem [shape: f32[128,128], index: 0, kind: input, shape index: {}]
  %s1 = inlined_call_operand.vmem [shape: f32[128,128], index: 1, kind: input, shape index: {}]
  %s2 = inlined_call_operand.vmem [shape: f32[8,128], index: 2, kind: input, shape index: {}]
  %s3 = inlined_call_operand.vmem [shape: f32[8,128], index: 3, kind: input, shape index: {}]
  %s4 = inlined_call_operand.vmem [shape: f32[1,128], index: 4, kind: input, shape index: {}]
  %s5 = inlined_call_operand.vmem [shape: f32[1,128], index: 5, kind: input, shape index: {}]
  %s6 = inlined_call_operand.vmem [shape: f32[1,128], index: 6, kind: input, shape index: {}]
  %s7 = inlined_call_operand.vmem [shape: f32[1,128], index: 7, kind: input, shape index: {}]
  %s8 = inlined_call_operand.vmem [shape: bf16[128,128], index: 8, kind: output, shape index: {}]
  %s9 = sld [smem:[#allocation0]]
  $region65: #{restnet_down_block.5} parent=0
    _
  %s11 = ssub.s32 1, %s9
  %s12 = scalar_select 0, %s11, %s9
  loop: start=0, step=1, limit=4
  $region2: #{restnet_down_block.5} parent=0 // loop_pre_header
    _
  $region3: #{restnet_down_block.5} parent=0 // loop_header
    %s14 = sphi 0, %s18
    %p15 = scmp.ge.s32.totalorder %s14, 4
    %s24 = sphi 0, %s26
    %s27 = sphi 0, %s24
    %s28 = sphi 0, %s27
    %s44 = sphi 0, %s28
    %s50 = sphi 0, %s52
    %s53 = sphi 0, %s50
    %s54 = sphi 0, %s53
    %s70 = sphi 0, %s54
    %s74 = sphi 0, %s74
    %s76 = sphi 0, %s74
    %s77 = sphi 0, %s76
    %s91 = sphi 0, %s77
    %s95 = sphi 0, %s95
    %s97 = sphi 0, %s95
    %s98 = sphi 0, %s97
    %s112 = sphi 0, %s98
    %s116 = sphi 0, %s116
    %s118 = sphi 0, %s116
    %s119 = sphi 0, %s118
    %s133 = sphi 0, %s119
    %s137 = sphi 0, %s137
    %s139 = sphi 0, %s137
    %s140 = sphi 0, %s139
    %s154 = sphi 0, %s140
    %s158 = sphi 0, %s158
    %s160 = sphi 0, %s158
    %s161 = sphi 0, %s160
    %s175 = sphi 0, %s161
    %s179 = sphi 0, %s179
    %s181 = sphi 0, %s179
    %s182 = sphi 0, %s181
    %s196 = sphi 0, %s182
    %s202 = sphi 0, %s204
    %s205 = sphi 0, %s202
    %s206 = sphi 0, %s205
    %s222 = sphi 0, %s206
  $region4: #{restnet_down_block.5} parent=0 // loop_header_branch
    %17 = sbr.rel (%p15) target = $region8
  $region5: #{restnet_down_block.5} parent=0 // loop_body
    %s19 = ssub.s32 %s14, 1
    %s20 = ssub.s32 %s14, 2
    %s21 = sadd.s32 %s14, 1
    %s22 = ssub.s32 %s14, %s21
    %p23 = scmp.eq.s32.totalorder %s22, 0
    %s25 = sadd.s32 %s24, 1
    %s26 = scalar_select %p23, %s24, %s25
    %p29 = pneg %p23
    %p30 = scmp.eq.s32.totalorder %s14, 1
    %p31 = por %p29, %p30
    %p32 = scmp.ne.s32.totalorder %s24, %s27
    %p33 = scmp.eq.s32.totalorder %s14, 0
    %p34 = por %p32, %p33
    %p35 = scmp.ne.s32.totalorder %s24, %s27
    %p36 = scmp.eq.s32.totalorder %s19, 1
    %p37 = por %p35, %p36
    %p38 = scmp.ne.s32.totalorder %s27, %s28
    %p39 = scmp.eq.s32.totalorder %s19, 0
    %p40 = por %p38, %p39
    %p41 = scmp.ne.s32.totalorder %s27, %s28
    %p42 = scmp.eq.s32.totalorder %s20, 1
    %p43 = por %p41, %p42
    %p45 = scmp.ne.s32.totalorder %s28, %s44
    %p46 = scmp.eq.s32.totalorder %s20, 0
    %p47 = por %p45, %p46
    %s48 = ssub.s32 %s14, %s21
    %p49 = scmp.eq.s32.totalorder %s48, 0
    %s51 = sadd.s32 %s50, 1
    %s52 = scalar_select %p49, %s50, %s51
    %p55 = pneg %p49
    %p56 = scmp.eq.s32.totalorder %s14, 1
    %p57 = por %p55, %p56
    %p58 = scmp.ne.s32.totalorder %s50, %s53
    %p59 = scmp.eq.s32.totalorder %s14, 0
    %p60 = por %p58, %p59
    %p61 = scmp.ne.s32.totalorder %s50, %s53
    %p62 = scmp.eq.s32.totalorder %s19, 1
    %p63 = por %p61, %p62
    %p64 = scmp.ne.s32.totalorder %s53, %s54
    %p65 = scmp.eq.s32.totalorder %s19, 0
    %p66 = por %p64, %p65
    %p67 = scmp.ne.s32.totalorder %s53, %s54
    %p68 = scmp.eq.s32.totalorder %s20, 1
    %p69 = por %p67, %p68
    %p71 = scmp.ne.s32.totalorder %s54, %s70
    %p72 = scmp.eq.s32.totalorder %s20, 0
    %p73 = por %p71, %p72
    %s75 = sadd.s32 %s74, 1
    %p78 = scmp.eq.s32.totalorder %s14, 1
    %p79 = scmp.ne.s32.totalorder %s74, %s76
    %p80 = scmp.eq.s32.totalorder %s14, 0
    %p81 = por %p79, %p80
    %p82 = scmp.ne.s32.totalorder %s74, %s76
    %p83 = scmp.eq.s32.totalorder %s19, 1
    %p84 = por %p82, %p83
    %p85 = scmp.ne.s32.totalorder %s76, %s77
    %p86 = scmp.eq.s32.totalorder %s19, 0
    %p87 = por %p85, %p86
    %p88 = scmp.ne.s32.totalorder %s76, %s77
    %p89 = scmp.eq.s32.totalorder %s20, 1
    %p90 = por %p88, %p89
    %p92 = scmp.ne.s32.totalorder %s77, %s91
    %p93 = scmp.eq.s32.totalorder %s20, 0
    %p94 = por %p92, %p93
    %s96 = sadd.s32 %s95, 1
    %p99 = scmp.eq.s32.totalorder %s14, 1
    %p100 = scmp.ne.s32.totalorder %s95, %s97
    %p101 = scmp.eq.s32.totalorder %s14, 0
    %p102 = por %p100, %p101
    %p103 = scmp.ne.s32.totalorder %s95, %s97
    %p104 = scmp.eq.s32.totalorder %s19, 1
    %p105 = por %p103, %p104
    %p106 = scmp.ne.s32.totalorder %s97, %s98
    %p107 = scmp.eq.s32.totalorder %s19, 0
    %p108 = por %p106, %p107
    %p109 = scmp.ne.s32.totalorder %s97, %s98
    %p110 = scmp.eq.s32.totalorder %s20, 1
    %p111 = por %p109, %p110
    %p113 = scmp.ne.s32.totalorder %s98, %s112
    %p114 = scmp.eq.s32.totalorder %s20, 0
    %p115 = por %p113, %p114
    %s117 = sadd.s32 %s116, 1
    %p120 = scmp.eq.s32.totalorder %s14, 1
    %p121 = scmp.ne.s32.totalorder %s116, %s118
    %p122 = scmp.eq.s32.totalorder %s14, 0
    %p123 = por %p121, %p122
    %p124 = scmp.ne.s32.totalorder %s116, %s118
    %p125 = scmp.eq.s32.totalorder %s19, 1
    %p126 = por %p124, %p125
    %p127 = scmp.ne.s32.totalorder %s118, %s119
    %p128 = scmp.eq.s32.totalorder %s19, 0
    %p129 = por %p127, %p128
    %p130 = scmp.ne.s32.totalorder %s118, %s119
    %p131 = scmp.eq.s32.totalorder %s20, 1
    %p132 = por %p130, %p131
    %p134 = scmp.ne.s32.totalorder %s119, %s133
    %p135 = scmp.eq.s32.totalorder %s20, 0
    %p136 = por %p134, %p135
    %s138 = sadd.s32 %s137, 1
    %p141 = scmp.eq.s32.totalorder %s14, 1
    %p142 = scmp.ne.s32.totalorder %s137, %s139
    %p143 = scmp.eq.s32.totalorder %s14, 0
    %p144 = por %p142, %p143
    %p145 = scmp.ne.s32.totalorder %s137, %s139
    %p146 = scmp.eq.s32.totalorder %s19, 1
    %p147 = por %p145, %p146
    %p148 = scmp.ne.s32.totalorder %s139, %s140
    %p149 = scmp.eq.s32.totalorder %s19, 0
    %p150 = por %p148, %p149
    %p151 = scmp.ne.s32.totalorder %s139, %s140
    %p152 = scmp.eq.s32.totalorder %s20, 1
    %p153 = por %p151, %p152
    %p155 = scmp.ne.s32.totalorder %s140, %s154
    %p156 = scmp.eq.s32.totalorder %s20, 0
    %p157 = por %p155, %p156
    %s159 = sadd.s32 %s158, 1
    %p162 = scmp.eq.s32.totalorder %s14, 1
    %p163 = scmp.ne.s32.totalorder %s158, %s160
    %p164 = scmp.eq.s32.totalorder %s14, 0
    %p165 = por %p163, %p164
    %p166 = scmp.ne.s32.totalorder %s158, %s160
    %p167 = scmp.eq.s32.totalorder %s19, 1
    %p168 = por %p166, %p167
    %p169 = scmp.ne.s32.totalorder %s160, %s161
    %p170 = scmp.eq.s32.totalorder %s19, 0
    %p171 = por %p169, %p170
    %p172 = scmp.ne.s32.totalorder %s160, %s161
    %p173 = scmp.eq.s32.totalorder %s20, 1
    %p174 = por %p172, %p173
    %p176 = scmp.ne.s32.totalorder %s161, %s175
    %p177 = scmp.eq.s32.totalorder %s20, 0
    %p178 = por %p176, %p177
    %s180 = sadd.s32 %s179, 1
    %p183 = scmp.eq.s32.totalorder %s14, 1
    %p184 = scmp.ne.s32.totalorder %s179, %s181
    %p185 = scmp.eq.s32.totalorder %s14, 0
    %p186 = por %p184, %p185
    %p187 = scmp.ne.s32.totalorder %s179, %s181
    %p188 = scmp.eq.s32.totalorder %s19, 1
    %p189 = por %p187, %p188
    %p190 = scmp.ne.s32.totalorder %s181, %s182
    %p191 = scmp.eq.s32.totalorder %s19, 0
    %p192 = por %p190, %p191
    %p193 = scmp.ne.s32.totalorder %s181, %s182
    %p194 = scmp.eq.s32.totalorder %s20, 1
    %p195 = por %p193, %p194
    %p197 = scmp.ne.s32.totalorder %s182, %s196
    %p198 = scmp.eq.s32.totalorder %s20, 0
    %p199 = por %p197, %p198
    %s200 = ssub.s32 %s14, %s21
    %p201 = scmp.eq.s32.totalorder %s200, 0
    %s203 = sadd.s32 %s202, 1
    %s204 = scalar_select %p201, %s202, %s203
    %p207 = pneg %p201
    %p208 = scmp.eq.s32.totalorder %s14, 1
    %p209 = por %p207, %p208
    %p210 = scmp.ne.s32.totalorder %s202, %s205
    %p211 = scmp.eq.s32.totalorder %s14, 0
    %p212 = por %p210, %p211
    %p213 = scmp.ne.s32.totalorder %s202, %s205
    %p214 = scmp.eq.s32.totalorder %s19, 1
    %p215 = por %p213, %p214
    %p216 = scmp.ne.s32.totalorder %s205, %s206
    %p217 = scmp.eq.s32.totalorder %s19, 0
    %p218 = por %p216, %p217
    %p219 = scmp.ne.s32.totalorder %s205, %s206
    %p220 = scmp.eq.s32.totalorder %s20, 1
    %p221 = por %p219, %p220
    %p223 = scmp.ne.s32.totalorder %s206, %s222
    %p224 = scmp.eq.s32.totalorder %s20, 0
    %p225 = por %p223, %p224
    %p226 = scmp.le.s32.totalorder 1, %s14
    %p227 = scmp.lt.s32.totalorder %s14, 3
    %p228 = pnand %p226, %p227
    %p229 = pneg %p228
    // Predicated region
    $region9: #{restnet_down_block.5} parent=5 // pred_check
      _
    $region10: #{restnet_down_block.5} parent=5 // pred_check_branch
      %231 = sbr.rel (%p228) target = $region12
    $region11: #{restnet_down_block.5} parent=5 // pred_region
      %s232 = ssub.s32 %s14, 1
      // Predicated region
      $region13: #{restnet_down_block.5} parent=11 // pred_check
        %p233 = pneg %p87
      $region14: #{restnet_down_block.5} parent=11 // pred_check_branch
        %235 = sbr.rel (%p233) target = $region16
      $region15: #{restnet_down_block.5} parent=11 // pred_region
        _
      $region16: #{restnet_down_block.5} parent=11 // pred_fallthru
        _
      // Predicated region
      $region17: #{restnet_down_block.5} parent=11 // pred_check
        %p236 = pneg %p108
      $region18: #{restnet_down_block.5} parent=11 // pred_check_branch
        %238 = sbr.rel (%p236) target = $region20
      $region19: #{restnet_down_block.5} parent=11 // pred_region
        _
      $region20: #{restnet_down_block.5} parent=11 // pred_fallthru
        _
      // Predicated region
      $region21: #{restnet_down_block.5} parent=11 // pred_check
        %p239 = pneg %p129
      $region22: #{restnet_down_block.5} parent=11 // pred_check_branch
        %241 = sbr.rel (%p239) target = $region24
      $region23: #{restnet_down_block.5} parent=11 // pred_region
        _
      $region24: #{restnet_down_block.5} parent=11 // pred_fallthru
        _
      // Predicated region
      $region25: #{restnet_down_block.5} parent=11 // pred_check
        %p242 = pneg %p150
      $region26: #{restnet_down_block.5} parent=11 // pred_check_branch
        %244 = sbr.rel (%p242) target = $region28
      $region27: #{restnet_down_block.5} parent=11 // pred_region
        _
      $region28: #{restnet_down_block.5} parent=11 // pred_fallthru
        _
      // Predicated region
      $region29: #{restnet_down_block.5} parent=11 // pred_check
        %p245 = pneg %p171
      $region30: #{restnet_down_block.5} parent=11 // pred_check_branch
        %247 = sbr.rel (%p245) target = $region32
      $region31: #{restnet_down_block.5} parent=11 // pred_region
        _
      $region32: #{restnet_down_block.5} parent=11 // pred_fallthru
        _
      // Predicated region
      $region33: #{restnet_down_block.5} parent=11 // pred_check
        %p248 = pneg %p192
      $region34: #{restnet_down_block.5} parent=11 // pred_check_branch
        %250 = sbr.rel (%p248) target = $region36
      $region35: #{restnet_down_block.5} parent=11 // pred_region
        _
      $region36: #{restnet_down_block.5} parent=11 // pred_fallthru
        _
    $region12: #{restnet_down_block.5} parent=5 // pred_fallthru
      _
    %p251 = scmp.lt.s32.totalorder %s14, 2
    // Predicated region
    $region37: #{restnet_down_block.5} parent=5 // pred_check
      %p252 = pneg %p251
    $region38: #{restnet_down_block.5} parent=5 // pred_check_branch
      %254 = sbr.rel (%p252) target = $region40
    $region39: #{restnet_down_block.5} parent=5 // pred_region
      // Predicated region
      $region41: #{restnet_down_block.5} parent=39 // pred_check
        %p255 = pneg %p34
      $region42: #{restnet_down_block.5} parent=39 // pred_check_branch
        %257 = sbr.rel (%p255) target = $region44
      $region43: #{restnet_down_block.5} parent=39 // pred_region
        %s258 = smul.u32 8, %s14
        %p259 = scmp.lt.s32.totalorder %s258, 15
        %s260 = scalar_select %p259, %s258, 15
        %s261 = smul.addr %s260, 8
        %s262 = scalar_lea.vmem %s0, %s261
        %s263 = smul.u32 8, %s14
      $region44: #{restnet_down_block.5} parent=39 // pred_fallthru
        _
      // Predicated region
      $region45: #{restnet_down_block.5} parent=39 // pred_check
        %p264 = pneg %p60
      $region46: #{restnet_down_block.5} parent=39 // pred_check_branch
        %266 = sbr.rel (%p264) target = $region48
      $region47: #{restnet_down_block.5} parent=39 // pred_region
        %s267 = smul.u32 8, %s14
        %p268 = scmp.lt.s32.totalorder %s267, 15
        %s269 = scalar_select %p268, %s267, 15
        %s270 = smul.addr %s269, 8
        %s271 = scalar_lea.vmem %s1, %s270
        %s272 = smul.u32 8, %s14
      $region48: #{restnet_down_block.5} parent=39 // pred_fallthru
        _
    $region40: #{restnet_down_block.5} parent=5 // pred_fallthru
      _
    %p273 = scmp.le.s32.totalorder 1, %s14
    %p274 = scmp.lt.s32.totalorder %s14, 3
    %p275 = pnand %p273, %p274
    %p276 = pneg %p275
    // Predicated region
    $region49: #{restnet_down_block.5} parent=5 // pred_check
      _
    $region50: #{restnet_down_block.5} parent=5 // pred_check_branch
      %278 = sbr.rel (%p275) target = $region52
    $region51: #{restnet_down_block.5} parent=5 // pred_region
      %s279 = ssub.s32 %s14, 1
      %s280 = smul.u32 8, %s19
      %p281 = scmp.lt.s32.totalorder %s280, 15
      %s282 = scalar_select %p281, %s280, 15
      %s283 = smul.addr %s282, 8
      %s284 = scalar_lea.vmem %s0, %s283
      %p285 = pneg %p40
      %p286 = pneg %p37
      %s287 = smul.u32 8, %s19
      %p288 = scmp.lt.s32.totalorder %s287, 15
      %s289 = scalar_select %p288, %s287, 15
      %s290 = smul.addr %s289, 8
      %s291 = scalar_lea.vmem %s1, %s290
      %p292 = pneg %p66
      %p293 = pneg %p63
      %p294 = pneg %p87
      %p295 = pneg %p84
      %p296 = pneg %p108
      %p297 = pneg %p105
      %p298 = pneg %p129
      %p299 = pneg %p126
      %p300 = pneg %p150
      %p301 = pneg %p147
      %p302 = pneg %p171
      %p303 = pneg %p168
      %p304 = pneg %p192
      %p305 = pneg %p189
      %p306 = pneg %p218
      %p307 = pneg %p215
      %s308 = smul.u32 8, %s19
      %p309 = scmp.lt.s32.totalorder %s308, 15
      %s310 = scalar_select %p309, %s308, 15
      %s311 = smul.addr %s310, 4
      %s312 = scalar_lea.vmem %s8, %s311
      %s313 = smul.u32 8, %s19
      %p314 = scmp.lt.s32.totalorder %s313, 15
      %s315 = scalar_select %p314, %s313, 15
      %s316 = smul.addr %s315, 8
      %s317 = scalar_lea.vmem %s0, %s316
      %s318 = smul.u32 8, %s19
      %s319 = smul.u32 8, %s19
      %p320 = scmp.lt.s32.totalorder %s319, 15
      %s321 = scalar_select %p320, %s319, 15
      %s322 = smul.addr %s321, 8
      %s323 = scalar_lea.vmem %s1, %s322
      %s324 = smul.u32 8, %s19
      %s325 = smul.u32 8, %s19
      %p326 = scmp.lt.s32.totalorder %s325, 15
      %s327 = scalar_select %p326, %s325, 15
      %s328 = smul.addr %s327, 4
      %s329 = scalar_lea.vmem %s8, %s328
      %s330 = smul.u32 8, %s19
      %v331 = vld [vmem:[%s3] sm:$0x1]
      %v332 = vld [vmem:[%s3 + $0x1] sm:$0x1]
      %v333 = vld [vmem:[%s2 + $0x2] sm:$0x1]
      %v334 = vld [vmem:[%s2 + $0x3] sm:$0x1]
      %v335 = vld [vmem:[%s317] sm:$0xff]
      %v336 = vld [vmem:[%s317 + $0x8] sm:$0xff]
      %v337 = vld [vmem:[%s317 + $0x10] sm:$0xff]
      %v338 = vld [vmem:[%s317 + $0x18] sm:$0xff]
      %v339 = vld [vmem:[%s317 + $0x20] sm:$0xff]
      %v340 = vld [vmem:[%s317 + $0x28] sm:$0xff]
      %v341 = vld [vmem:[%s317 + $0x30] sm:$0xff]
      %v342 = vld [vmem:[%s317 + $0x38] sm:$0xff]
      %v343 = vlaneseq
      %v344 = vshrl.u32 %v343, 7
      %v345 = vsub.s32 0, %v344
      %v346 = vrot.slane %v331, %v345
      %v347 = vsub.f32 %v335, %v346
      %v348 = vsub.f32 %v336, %v346
      %v349 = vsub.f32 %v337, %v346
      %v350 = vsub.f32 %v338, %v346
      %v351 = vsub.f32 %v339, %v346
      %v352 = vsub.f32 %v340, %v346
      %v353 = vsub.f32 %v341, %v346
      %v354 = vsub.f32 %v342, %v346
      %v355 = vlaneseq
      %v356 = vshrl.u32 %v355, 7
      %v357 = vsub.s32 0, %v356
      %v358 = vrot.slane %v332, %v357
      %v359 = vmul.f32 %v347, %v358
      %v360 = vmul.f32 %v348, %v358
      %v361 = vmul.f32 %v349, %v358
      %v362 = vmul.f32 %v350, %v358
      %v363 = vmul.f32 %v351, %v358
      %v364 = vmul.f32 %v352, %v358
      %v365 = vmul.f32 %v353, %v358
      %v366 = vmul.f32 %v354, %v358
      %v367 = vld [vmem:[%s4] sm:$0x1]
      %v369 = vlaneseq
      %v370 = vshrl.u32 %v369, 7
      %v371 = vsub.s32 0, %v370
      %v372 = vrot.slane %v367, %v371
      %v374 = vmul.f32 %v359, %v372
      %v375 = vmul.f32 %v360, %v372
      %v376 = vmul.f32 %v361, %v372
      %v377 = vmul.f32 %v362, %v372
      %v378 = vmul.f32 %v363, %v372
      %v379 = vmul.f32 %v364, %v372
      %v380 = vmul.f32 %v365, %v372
      %v381 = vmul.f32 %v366, %v372
      %v382 = vld [vmem:[%s5] sm:$0x1]
      %v384 = vlaneseq
      %v385 = vshrl.u32 %v384, 7
      %v386 = vsub.s32 0, %v385
      %v387 = vrot.slane %v382, %v386
      %v389 = vadd.f32 %v374, %v387
      %v390 = vadd.f32 %v375, %v387
      %v391 = vadd.f32 %v376, %v387
      %v392 = vadd.f32 %v377, %v387
      %v393 = vadd.f32 %v378, %v387
      %v394 = vadd.f32 %v379, %v387
      %v395 = vadd.f32 %v380, %v387
      %v396 = vadd.f32 %v381, %v387
      %v397 = vld [vmem:[%s323] sm:$0xff]
      %v398 = vld [vmem:[%s323 + $0x8] sm:$0xff]
      %v399 = vld [vmem:[%s323 + $0x10] sm:$0xff]
      %v400 = vld [vmem:[%s323 + $0x18] sm:$0xff]
      %v401 = vld [vmem:[%s323 + $0x20] sm:$0xff]
      %v402 = vld [vmem:[%s323 + $0x28] sm:$0xff]
      %v403 = vld [vmem:[%s323 + $0x30] sm:$0xff]
      %v404 = vld [vmem:[%s323 + $0x38] sm:$0xff]
      %v405 = vlaneseq
      %v406 = vshrl.u32 %v405, 7
      %v407 = vsub.s32 0, %v406
      %v408 = vrot.slane %v333, %v407
      %v409 = vsub.f32 %v397, %v408
      %v410 = vsub.f32 %v398, %v408
      %v411 = vsub.f32 %v399, %v408
      %v412 = vsub.f32 %v400, %v408
      %v413 = vsub.f32 %v401, %v408
      %v414 = vsub.f32 %v402, %v408
      %v415 = vsub.f32 %v403, %v408
      %v416 = vsub.f32 %v404, %v408
      %v417 = vlaneseq
      %v418 = vshrl.u32 %v417, 7
      %v419 = vsub.s32 0, %v418
      %v420 = vrot.slane %v334, %v419
      %v421 = vmul.f32 %v409, %v420
      %v422 = vmul.f32 %v410, %v420
      %v423 = vmul.f32 %v411, %v420
      %v424 = vmul.f32 %v412, %v420
      %v425 = vmul.f32 %v413, %v420
      %v426 = vmul.f32 %v414, %v420
      %v427 = vmul.f32 %v415, %v420
      %v428 = vmul.f32 %v416, %v420
      %v429 = vld [vmem:[%s6] sm:$0x1]
      %v431 = vlaneseq
      %v432 = vshrl.u32 %v431, 7
      %v433 = vsub.s32 0, %v432
      %v434 = vrot.slane %v429, %v433
      %v436 = vmul.f32 %v421, %v434
      %v437 = vmul.f32 %v422, %v434
      %v438 = vmul.f32 %v423, %v434
      %v439 = vmul.f32 %v424, %v434
      %v440 = vmul.f32 %v425, %v434
      %v441 = vmul.f32 %v426, %v434
      %v442 = vmul.f32 %v427, %v434
      %v443 = vmul.f32 %v428, %v434
      %v444 = vld [vmem:[%s7] sm:$0x1]
      %v446 = vlaneseq
      %v447 = vshrl.u32 %v446, 7
      %v448 = vsub.s32 0, %v447
      %v449 = vrot.slane %v444, %v448
      %v451 = vadd.f32 %v436, %v449
      %v452 = vadd.f32 %v437, %v449
      %v453 = vadd.f32 %v438, %v449
      %v454 = vadd.f32 %v439, %v449
      %v455 = vadd.f32 %v440, %v449
      %v456 = vadd.f32 %v441, %v449
      %v457 = vadd.f32 %v442, %v449
      %v458 = vadd.f32 %v443, %v449
      %v459 = vadd.f32 %v389, %v451
      %v460 = vadd.f32 %v390, %v452
      %v461 = vadd.f32 %v391, %v453
      %v462 = vadd.f32 %v392, %v454
      %v463 = vadd.f32 %v393, %v455
      %v464 = vadd.f32 %v394, %v456
      %v465 = vadd.f32 %v395, %v457
      %v466 = vadd.f32 %v396, %v458
      %v467 = vmax.f32 %v459, 0.0
      %v468 = vmax.f32 %v460, 0.0
      %v469 = vmax.f32 %v461, 0.0
      %v470 = vmax.f32 %v462, 0.0
      %v471 = vmax.f32 %v463, 0.0
      %v472 = vmax.f32 %v464, 0.0
      %v473 = vmax.f32 %v465, 0.0
      %v474 = vmax.f32 %v466, 0.0
      %v475 = vpack.c.bf16 %v468, %v467
      %v476 = vpack.c.bf16 %v470, %v469
      %v477 = vpack.c.bf16 %v472, %v471
      %v478 = vpack.c.bf16 %v474, %v473
      %v483 = vunpack.c.l.b16 %v475
      %v484 = vunpack.c.h.b16 %v475
      %v485 = vunpack.c.l.b16 %v476
      %v486 = vunpack.c.h.b16 %v476
      %v487 = vunpack.c.l.b16 %v477
      %v488 = vunpack.c.h.b16 %v477
      %v489 = vunpack.c.l.b16 %v478
      %v490 = vunpack.c.h.b16 %v478
      %v491 = vpack.c.b16 %v483, %v483
      %v492 = vpack.c.b16 %v484, %v484
      %v493 = vpack.c.b16 %v485, %v485
      %v494 = vpack.c.b16 %v486, %v486
      %v495 = vpack.c.b16 %v487, %v487
      %v496 = vpack.c.b16 %v488, %v488
      %v497 = vpack.c.b16 %v489, %v489
      %v498 = vpack.c.b16 %v490, %v490
      %507 = vst [vmem:[%s329] sm:$0xf] %v491
      %508 = vst [vmem:[%s329 + $0x4] sm:$0xf] %v492
      %509 = vst [vmem:[%s329 + $0x8] sm:$0xf] %v493
      %510 = vst [vmem:[%s329 + $0xc] sm:$0xf] %v494
      %511 = vst [vmem:[%s329 + $0x10] sm:$0xf] %v495
      %512 = vst [vmem:[%s329 + $0x14] sm:$0xf] %v496
      %513 = vst [vmem:[%s329 + $0x18] sm:$0xf] %v497
      %514 = vst [vmem:[%s329 + $0x1c] sm:$0xf] %v498
      %s515 = smul.u32 8, %s19
      %p516 = scmp.lt.s32.totalorder %s515, 15
      %s517 = scalar_select %p516, %s515, 15
      %s518 = smul.addr %s517, 4
      %s519 = scalar_lea.vmem %s8, %s518
      // Predicated region
      $region53: #{restnet_down_block.5} parent=51 // pred_check
        %p520 = pneg %p215
      $region54: #{restnet_down_block.5} parent=51 // pred_check_branch
        %522 = sbr.rel (%p520) target = $region56
      $region55: #{restnet_down_block.5} parent=51 // pred_region
        %s523 = smul.u32 8, %s19
      $region56: #{restnet_down_block.5} parent=51 // pred_fallthru
        _
    $region52: #{restnet_down_block.5} parent=5 // pred_fallthru
      _
    %p524 = scmp.le.s32.totalorder 2, %s14
    // Predicated region
    $region57: #{restnet_down_block.5} parent=5 // pred_check
      %p525 = pneg %p524
    $region58: #{restnet_down_block.5} parent=5 // pred_check_branch
      %527 = sbr.rel (%p525) target = $region60
    $region59: #{restnet_down_block.5} parent=5 // pred_region
      %s528 = ssub.s32 %s14, 2
      // Predicated region
      $region61: #{restnet_down_block.5} parent=59 // pred_check
        %p529 = pneg %p221
      $region62: #{restnet_down_block.5} parent=59 // pred_check_branch
        %531 = sbr.rel (%p529) target = $region64
      $region63: #{restnet_down_block.5} parent=59 // pred_region
        %s532 = smul.u32 8, %s20
        %p533 = scmp.lt.s32.totalorder %s532, 15
        %s534 = scalar_select %p533, %s532, 15
        %s535 = smul.addr %s534, 4
        %s536 = scalar_lea.vmem %s8, %s535
      $region64: #{restnet_down_block.5} parent=59 // pred_fallthru
        _
    $region60: #{restnet_down_block.5} parent=5 // pred_fallthru
      _
  $region6: #{restnet_down_block.5} parent=0 // loop_footer
    %s18 = sadd.s32 1, %s14
  $region7: #{restnet_down_block.5} parent=0 // loop_footer_branch
    %13 = sbr.rel target = $region3
  $region8: #{restnet_down_block.5} parent=0 // loop_exit
    _

// kernel: restnet_down_block.3
$region0: #{restnet_down_block.3}
  #allocation0 [shape = 'u32[]', space=smem, size = 0x4, offset = 0x4, fixed_abs, tag = 'smem constant byte address 0x4 - core index']
  #allocation1 [shape = 'u32[144,128]{1,0:T(1,128)}', space=vmem, size = 0x12000, scoped, tag = 'internal scratch']
  %s0 = inlined_call_operand.vmem [shape: bf16[2,9,9,128], index: 0, kind: input, shape index: {}]
  %s1 = inlined_call_operand.vmem [shape: bf16[2,9,9,128], index: 1, kind: input, shape index: {}]
  %s2 = inlined_call_operand.vmem [shape: bf16[2,9,9,128], index: 2, kind: input, shape index: {}]
  %s3 = inlined_call_operand.vmem [shape: bf16[2,9,9,128], index: 3, kind: input, shape index: {}]
  %s4 = inlined_call_operand.vmem [shape: bf16[1152,128], index: 4, kind: input, shape index: {}]
  %s5 = inlined_call_operand.vmem [shape: bf16[128,128], index: 5, kind: input, shape index: {}]
  %s6 = inlined_call_operand.vmem [shape: f32[128,128], index: 6, kind: output, shape index: {0}]
  %s7 = inlined_call_operand.vmem [shape: f32[128,128], index: 7, kind: output, shape index: {1}]
  %s8 = inlined_call_operand.vmem [shape: f32[8,128], index: 8, kind: output, shape index: {2}]
  %9 = xla_tuple %s6, %s7, %s8
  %s10 = sld [smem:[#allocation0]]
  $region81: #{restnet_down_block.3} parent=0
    _
  %s12 = ssub.s32 1, %s10
  %s13 = scalar_select 0, %s12, %s10
  loop: start=0, step=1, limit=4
  $region2: #{restnet_down_block.3} parent=0 // loop_pre_header
    _
  $region3: #{restnet_down_block.3} parent=0 // loop_header
    %s15 = sphi 0, %s19
    %p16 = scmp.ge.s32.totalorder %s15, 4
    %s25 = sphi 0, %s27
    %s28 = sphi 0, %s25
    %s29 = sphi 0, %s28
    %s45 = sphi 0, %s29
    %s51 = sphi 0, %s53
    %s54 = sphi 0, %s51
    %s55 = sphi 0, %s54
    %s71 = sphi 0, %s55
    %s77 = sphi 0, %s79
    %s80 = sphi 0, %s77
    %s81 = sphi 0, %s80
    %s97 = sphi 0, %s81
    %s103 = sphi 0, %s105
    %s106 = sphi 0, %s103
    %s107 = sphi 0, %s106
    %s123 = sphi 0, %s107
    %s127 = sphi 0, %s127
    %s129 = sphi 0, %s127
    %s130 = sphi 0, %s129
    %s144 = sphi 0, %s130
    %s148 = sphi 0, %s148
    %s150 = sphi 0, %s148
    %s151 = sphi 0, %s150
    %s165 = sphi 0, %s151
    %s171 = sphi 0, %s173
    %s174 = sphi 0, %s171
    %s175 = sphi 0, %s174
    %s191 = sphi 0, %s175
    %s197 = sphi 0, %s199
    %s200 = sphi 0, %s197
    %s201 = sphi 0, %s200
    %s217 = sphi 0, %s201
    %s221 = sphi 0, %s221
    %s223 = sphi 0, %s221
    %s224 = sphi 0, %s223
    %s238 = sphi 0, %s224
  $region4: #{restnet_down_block.3} parent=0 // loop_header_branch
    %18 = sbr.rel (%p16) target = $region8
  $region5: #{restnet_down_block.3} parent=0 // loop_body
    %s20 = ssub.s32 %s15, 1
    %s21 = ssub.s32 %s15, 2
    %s22 = sadd.s32 %s15, 1
    %s23 = ssub.s32 %s15, %s22
    %p24 = scmp.eq.s32.totalorder %s23, 0
    %s26 = sadd.s32 %s25, 1
    %s27 = scalar_select %p24, %s25, %s26
    %p30 = pneg %p24
    %p31 = scmp.eq.s32.totalorder %s15, 1
    %p32 = por %p30, %p31
    %p33 = scmp.ne.s32.totalorder %s25, %s28
    %p34 = scmp.eq.s32.totalorder %s15, 0
    %p35 = por %p33, %p34
    %p36 = scmp.ne.s32.totalorder %s25, %s28
    %p37 = scmp.eq.s32.totalorder %s20, 1
    %p38 = por %p36, %p37
    %p39 = scmp.ne.s32.totalorder %s28, %s29
    %p40 = scmp.eq.s32.totalorder %s20, 0
    %p41 = por %p39, %p40
    %p42 = scmp.ne.s32.totalorder %s28, %s29
    %p43 = scmp.eq.s32.totalorder %s21, 1
    %p44 = por %p42, %p43
    %p46 = scmp.ne.s32.totalorder %s29, %s45
    %p47 = scmp.eq.s32.totalorder %s21, 0
    %p48 = por %p46, %p47
    %s49 = ssub.s32 %s15, %s22
    %p50 = scmp.eq.s32.totalorder %s49, 0
    %s52 = sadd.s32 %s51, 1
    %s53 = scalar_select %p50, %s51, %s52
    %p56 = pneg %p50
    %p57 = scmp.eq.s32.totalorder %s15, 1
    %p58 = por %p56, %p57
    %p59 = scmp.ne.s32.totalorder %s51, %s54
    %p60 = scmp.eq.s32.totalorder %s15, 0
    %p61 = por %p59, %p60
    %p62 = scmp.ne.s32.totalorder %s51, %s54
    %p63 = scmp.eq.s32.totalorder %s20, 1
    %p64 = por %p62, %p63
    %p65 = scmp.ne.s32.totalorder %s54, %s55
    %p66 = scmp.eq.s32.totalorder %s20, 0
    %p67 = por %p65, %p66
    %p68 = scmp.ne.s32.totalorder %s54, %s55
    %p69 = scmp.eq.s32.totalorder %s21, 1
    %p70 = por %p68, %p69
    %p72 = scmp.ne.s32.totalorder %s55, %s71
    %p73 = scmp.eq.s32.totalorder %s21, 0
    %p74 = por %p72, %p73
    %s75 = ssub.s32 %s15, %s22
    %p76 = scmp.eq.s32.totalorder %s75, 0
    %s78 = sadd.s32 %s77, 1
    %s79 = scalar_select %p76, %s77, %s78
    %p82 = pneg %p76
    %p83 = scmp.eq.s32.totalorder %s15, 1
    %p84 = por %p82, %p83
    %p85 = scmp.ne.s32.totalorder %s77, %s80
    %p86 = scmp.eq.s32.totalorder %s15, 0
    %p87 = por %p85, %p86
    %p88 = scmp.ne.s32.totalorder %s77, %s80
    %p89 = scmp.eq.s32.totalorder %s20, 1
    %p90 = por %p88, %p89
    %p91 = scmp.ne.s32.totalorder %s80, %s81
    %p92 = scmp.eq.s32.totalorder %s20, 0
    %p93 = por %p91, %p92
    %p94 = scmp.ne.s32.totalorder %s80, %s81
    %p95 = scmp.eq.s32.totalorder %s21, 1
    %p96 = por %p94, %p95
    %p98 = scmp.ne.s32.totalorder %s81, %s97
    %p99 = scmp.eq.s32.totalorder %s21, 0
    %p100 = por %p98, %p99
    %s101 = ssub.s32 %s15, %s22
    %p102 = scmp.eq.s32.totalorder %s101, 0
    %s104 = sadd.s32 %s103, 1
    %s105 = scalar_select %p102, %s103, %s104
    %p108 = pneg %p102
    %p109 = scmp.eq.s32.totalorder %s15, 1
    %p110 = por %p108, %p109
    %p111 = scmp.ne.s32.totalorder %s103, %s106
    %p112 = scmp.eq.s32.totalorder %s15, 0
    %p113 = por %p111, %p112
    %p114 = scmp.ne.s32.totalorder %s103, %s106
    %p115 = scmp.eq.s32.totalorder %s20, 1
    %p116 = por %p114, %p115
    %p117 = scmp.ne.s32.totalorder %s106, %s107
    %p118 = scmp.eq.s32.totalorder %s20, 0
    %p119 = por %p117, %p118
    %p120 = scmp.ne.s32.totalorder %s106, %s107
    %p121 = scmp.eq.s32.totalorder %s21, 1
    %p122 = por %p120, %p121
    %p124 = scmp.ne.s32.totalorder %s107, %s123
    %p125 = scmp.eq.s32.totalorder %s21, 0
    %p126 = por %p124, %p125
    %s128 = sadd.s32 %s127, 1
    %p131 = scmp.eq.s32.totalorder %s15, 1
    %p132 = scmp.ne.s32.totalorder %s127, %s129
    %p133 = scmp.eq.s32.totalorder %s15, 0
    %p134 = por %p132, %p133
    %p135 = scmp.ne.s32.totalorder %s127, %s129
    %p136 = scmp.eq.s32.totalorder %s20, 1
    %p137 = por %p135, %p136
    %p138 = scmp.ne.s32.totalorder %s129, %s130
    %p139 = scmp.eq.s32.totalorder %s20, 0
    %p140 = por %p138, %p139
    %p141 = scmp.ne.s32.totalorder %s129, %s130
    %p142 = scmp.eq.s32.totalorder %s21, 1
    %p143 = por %p141, %p142
    %p145 = scmp.ne.s32.totalorder %s130, %s144
    %p146 = scmp.eq.s32.totalorder %s21, 0
    %p147 = por %p145, %p146
    %s149 = sadd.s32 %s148, 1
    %p152 = scmp.eq.s32.totalorder %s15, 1
    %p153 = scmp.ne.s32.totalorder %s148, %s150
    %p154 = scmp.eq.s32.totalorder %s15, 0
    %p155 = por %p153, %p154
    %p156 = scmp.ne.s32.totalorder %s148, %s150
    %p157 = scmp.eq.s32.totalorder %s20, 1
    %p158 = por %p156, %p157
    %p159 = scmp.ne.s32.totalorder %s150, %s151
    %p160 = scmp.eq.s32.totalorder %s20, 0
    %p161 = por %p159, %p160
    %p162 = scmp.ne.s32.totalorder %s150, %s151
    %p163 = scmp.eq.s32.totalorder %s21, 1
    %p164 = por %p162, %p163
    %p166 = scmp.ne.s32.totalorder %s151, %s165
    %p167 = scmp.eq.s32.totalorder %s21, 0
    %p168 = por %p166, %p167
    %s169 = ssub.s32 %s15, %s22
    %p170 = scmp.eq.s32.totalorder %s169, 0
    %s172 = sadd.s32 %s171, 1
    %s173 = scalar_select %p170, %s171, %s172
    %p176 = pneg %p170
    %p177 = scmp.eq.s32.totalorder %s15, 1
    %p178 = por %p176, %p177
    %p179 = scmp.ne.s32.totalorder %s171, %s174
    %p180 = scmp.eq.s32.totalorder %s15, 0
    %p181 = por %p179, %p180
    %p182 = scmp.ne.s32.totalorder %s171, %s174
    %p183 = scmp.eq.s32.totalorder %s20, 1
    %p184 = por %p182, %p183
    %p185 = scmp.ne.s32.totalorder %s174, %s175
    %p186 = scmp.eq.s32.totalorder %s20, 0
    %p187 = por %p185, %p186
    %p188 = scmp.ne.s32.totalorder %s174, %s175
    %p189 = scmp.eq.s32.totalorder %s21, 1
    %p190 = por %p188, %p189
    %p192 = scmp.ne.s32.totalorder %s175, %s191
    %p193 = scmp.eq.s32.totalorder %s21, 0
    %p194 = por %p192, %p193
    %s195 = ssub.s32 %s15, %s22
    %p196 = scmp.eq.s32.totalorder %s195, 0
    %s198 = sadd.s32 %s197, 1
    %s199 = scalar_select %p196, %s197, %s198
    %p202 = pneg %p196
    %p203 = scmp.eq.s32.totalorder %s15, 1
    %p204 = por %p202, %p203
    %p205 = scmp.ne.s32.totalorder %s197, %s200
    %p206 = scmp.eq.s32.totalorder %s15, 0
    %p207 = por %p205, %p206
    %p208 = scmp.ne.s32.totalorder %s197, %s200
    %p209 = scmp.eq.s32.totalorder %s20, 1
    %p210 = por %p208, %p209
    %p211 = scmp.ne.s32.totalorder %s200, %s201
    %p212 = scmp.eq.s32.totalorder %s20, 0
    %p213 = por %p211, %p212
    %p214 = scmp.ne.s32.totalorder %s200, %s201
    %p215 = scmp.eq.s32.totalorder %s21, 1
    %p216 = por %p214, %p215
    %p218 = scmp.ne.s32.totalorder %s201, %s217
    %p219 = scmp.eq.s32.totalorder %s21, 0
    %p220 = por %p218, %p219
    %s222 = sadd.s32 %s221, 1
    %p225 = scmp.eq.s32.totalorder %s15, 1
    %p226 = scmp.ne.s32.totalorder %s221, %s223
    %p227 = scmp.eq.s32.totalorder %s15, 0
    %p228 = por %p226, %p227
    %p229 = scmp.ne.s32.totalorder %s221, %s223
    %p230 = scmp.eq.s32.totalorder %s20, 1
    %p231 = por %p229, %p230
    %p232 = scmp.ne.s32.totalorder %s223, %s224
    %p233 = scmp.eq.s32.totalorder %s20, 0
    %p234 = por %p232, %p233
    %p235 = scmp.ne.s32.totalorder %s223, %s224
    %p236 = scmp.eq.s32.totalorder %s21, 1
    %p237 = por %p235, %p236
    %p239 = scmp.ne.s32.totalorder %s224, %s238
    %p240 = scmp.eq.s32.totalorder %s21, 0
    %p241 = por %p239, %p240
    %p242 = scmp.le.s32.totalorder 1, %s15
    %p243 = scmp.lt.s32.totalorder %s15, 3
    %p244 = pnand %p242, %p243
    %p245 = pneg %p244
    // Predicated region
    $region9: #{restnet_down_block.3} parent=5 // pred_check
      _
    $region10: #{restnet_down_block.3} parent=5 // pred_check_branch
      %247 = sbr.rel (%p244) target = $region12
    $region11: #{restnet_down_block.3} parent=5 // pred_region
      %s248 = ssub.s32 %s15, 1
      // Predicated region
      $region13: #{restnet_down_block.3} parent=11 // pred_check
        %p249 = pneg %p140
      $region14: #{restnet_down_block.3} parent=11 // pred_check_branch
        %251 = sbr.rel (%p249) target = $region16
      $region15: #{restnet_down_block.3} parent=11 // pred_region
        _
      $region16: #{restnet_down_block.3} parent=11 // pred_fallthru
        _
      // Predicated region
      $region17: #{restnet_down_block.3} parent=11 // pred_check
        %p252 = pneg %p161
      $region18: #{restnet_down_block.3} parent=11 // pred_check_branch
        %254 = sbr.rel (%p252) target = $region20
      $region19: #{restnet_down_block.3} parent=11 // pred_region
        _
      $region20: #{restnet_down_block.3} parent=11 // pred_fallthru
        _
    $region12: #{restnet_down_block.3} parent=5 // pred_fallthru
      _
    %p255 = scmp.lt.s32.totalorder %s15, 2
    // Predicated region
    $region21: #{restnet_down_block.3} parent=5 // pred_check
      %p256 = pneg %p255
    $region22: #{restnet_down_block.3} parent=5 // pred_check_branch
      %258 = sbr.rel (%p256) target = $region24
    $region23: #{restnet_down_block.3} parent=5 // pred_region
      // Predicated region
      $region25: #{restnet_down_block.3} parent=23 // pred_check
        %p259 = pneg %p35
      $region26: #{restnet_down_block.3} parent=23 // pred_check_branch
        %261 = sbr.rel (%p259) target = $region28
      $region27: #{restnet_down_block.3} parent=23 // pred_region
        %p262 = scmp.lt.s32.totalorder %s15, 1
        %s263 = scalar_select %p262, %s15, 1
        %s264 = smul.addr %s263, 18
        %s265 = smul.addr %s264, 4
        %s266 = scalar_lea.vmem %s0, %s265
      $region28: #{restnet_down_block.3} parent=23 // pred_fallthru
        _
      // Predicated region
      $region29: #{restnet_down_block.3} parent=23 // pred_check
        %p267 = pneg %p61
      $region30: #{restnet_down_block.3} parent=23 // pred_check_branch
        %269 = sbr.rel (%p267) target = $region32
      $region31: #{restnet_down_block.3} parent=23 // pred_region
        %p270 = scmp.lt.s32.totalorder %s15, 1
        %s271 = scalar_select %p270, %s15, 1
        %s272 = smul.addr %s271, 18
        %s273 = smul.addr %s272, 4
        %s274 = scalar_lea.vmem %s1, %s273
      $region32: #{restnet_down_block.3} parent=23 // pred_fallthru
        _
      // Predicated region
      $region33: #{restnet_down_block.3} parent=23 // pred_check
        %p275 = pneg %p87
      $region34: #{restnet_down_block.3} parent=23 // pred_check_branch
        %277 = sbr.rel (%p275) target = $region36
      $region35: #{restnet_down_block.3} parent=23 // pred_region
        %p278 = scmp.lt.s32.totalorder %s15, 1
        %s279 = scalar_select %p278, %s15, 1
        %s280 = smul.addr %s279, 18
        %s281 = smul.addr %s280, 4
        %s282 = scalar_lea.vmem %s2, %s281
      $region36: #{restnet_down_block.3} parent=23 // pred_fallthru
        _
      // Predicated region
      $region37: #{restnet_down_block.3} parent=23 // pred_check
        %p283 = pneg %p113
      $region38: #{restnet_down_block.3} parent=23 // pred_check_branch
        %285 = sbr.rel (%p283) target = $region40
      $region39: #{restnet_down_block.3} parent=23 // pred_region
        %p286 = scmp.lt.s32.totalorder %s15, 1
        %s287 = scalar_select %p286, %s15, 1
        %s288 = smul.addr %s287, 18
        %s289 = smul.addr %s288, 4
        %s290 = scalar_lea.vmem %s3, %s289
      $region40: #{restnet_down_block.3} parent=23 // pred_fallthru
        _
    $region24: #{restnet_down_block.3} parent=5 // pred_fallthru
      _
    %p291 = scmp.le.s32.totalorder 1, %s15
    %p292 = scmp.lt.s32.totalorder %s15, 3
    %p293 = pnand %p291, %p292
    %p294 = pneg %p293
    // Predicated region
    $region41: #{restnet_down_block.3} parent=5 // pred_check
      _
    $region42: #{restnet_down_block.3} parent=5 // pred_check_branch
      %296 = sbr.rel (%p293) target = $region44
    $region43: #{restnet_down_block.3} parent=5 // pred_region
      %s297 = ssub.s32 %s15, 1
      %p298 = scmp.lt.s32.totalorder %s20, 1
      %s299 = scalar_select %p298, %s20, 1
      %s300 = smul.addr %s299, 18
      %s301 = smul.addr %s300, 4
      %s302 = scalar_lea.vmem %s0, %s301
      %p303 = pneg %p41
      %p304 = pneg %p38
      %p305 = scmp.lt.s32.totalorder %s20, 1
      %s306 = scalar_select %p305, %s20, 1
      %s307 = smul.addr %s306, 18
      %s308 = smul.addr %s307, 4
      %s309 = scalar_lea.vmem %s1, %s308
      %p310 = pneg %p67
      %p311 = pneg %p64
      %p312 = scmp.lt.s32.totalorder %s20, 1
      %s313 = scalar_select %p312, %s20, 1
      %s314 = smul.addr %s313, 18
      %s315 = smul.addr %s314, 4
      %s316 = scalar_lea.vmem %s2, %s315
      %p317 = pneg %p93
      %p318 = pneg %p90
      %p319 = scmp.lt.s32.totalorder %s20, 1
      %s320 = scalar_select %p319, %s20, 1
      %s321 = smul.addr %s320, 18
      %s322 = smul.addr %s321, 4
      %s323 = scalar_lea.vmem %s3, %s322
      %p324 = pneg %p119
      %p325 = pneg %p116
      %p326 = pneg %p140
      %p327 = pneg %p137
      %p328 = pneg %p161
      %p329 = pneg %p158
      %p330 = pneg %p187
      %p331 = pneg %p184
      %s332 = smul.u32 8, %s20
      %p333 = scmp.lt.s32.totalorder %s332, 15
      %s334 = scalar_select %p333, %s332, 15
      %s335 = smul.addr %s334, 8
      %s336 = scalar_lea.vmem %s6, %s335
      %p337 = pneg %p213
      %p338 = pneg %p210
      %s339 = smul.u32 8, %s20
      %p340 = scmp.lt.s32.totalorder %s339, 15
      %s341 = scalar_select %p340, %s339, 15
      %s342 = smul.addr %s341, 8
      %s343 = scalar_lea.vmem %s7, %s342
      %p344 = pneg %p234
      %p345 = pneg %p231
      %p346 = scmp.lt.s32.totalorder %s20, 1
      %s347 = scalar_select %p346, %s20, 1
      %s348 = smul.addr %s347, 18
      %s349 = smul.addr %s348, 4
      %s350 = scalar_lea.vmem %s0, %s349
      %p351 = scmp.lt.s32.totalorder %s20, 1
      %s352 = scalar_select %p351, %s20, 1
      %s353 = smul.addr %s352, 18
      %s354 = smul.addr %s353, 4
      %s355 = scalar_lea.vmem %s1, %s354
      %p356 = scmp.lt.s32.totalorder %s20, 1
      %s357 = scalar_select %p356, %s20, 1
      %s358 = smul.addr %s357, 18
      %s359 = smul.addr %s358, 4
      %s360 = scalar_lea.vmem %s2, %s359
      %p361 = scmp.lt.s32.totalorder %s20, 1
      %s362 = scalar_select %p361, %s20, 1
      %s363 = smul.addr %s362, 18
      %s364 = smul.addr %s363, 4
      %s365 = scalar_lea.vmem %s3, %s364
      %s366 = smul.u32 8, %s20
      %p367 = scmp.lt.s32.totalorder %s366, 15
      %s368 = scalar_select %p367, %s366, 15
      %s369 = smul.addr %s368, 8
      %s370 = scalar_lea.vmem %s6, %s369
      %s371 = smul.u32 8, %s20
      %s372 = smul.u32 8, %s20
      %p373 = scmp.lt.s32.totalorder %s372, 15
      %s374 = scalar_select %p373, %s372, 15
      %s375 = smul.addr %s374, 8
      %s376 = scalar_lea.vmem %s7, %s375
      %s377 = smul.u32 8, %s20
      %p379 = scmp.eq.s32.totalorder %s20, 0
      // Predicated region
      $region45: #{restnet_down_block.3} parent=43 // pred_check
        %p380 = pneg %p379
      $region46: #{restnet_down_block.3} parent=43 // pred_check_branch
        %382 = sbr.rel (%p380) target = $region48
      $region47: #{restnet_down_block.3} parent=43 // pred_region
        %383 = vst [vmem:[%s8] sm:$0xff] 0.0
      $region48: #{restnet_down_block.3} parent=43 // pred_fallthru
        _
      %v384 = vld [vmem:[%s350] sm:$0xf]
      %v385 = vld [vmem:[%s350 + $0x8] sm:$0xf]
      %v386 = vld [vmem:[%s350 + $0x10] sm:$0xf]
      %v387 = vld [vmem:[%s350 + $0x18] sm:$0xf]
      %v388 = vld [vmem:[%s350 + $0x20] sm:$0xf]
      %v389 = vld [vmem:[%s350 + $0x28] sm:$0xf]
      %v390 = vld [vmem:[%s350 + $0x30] sm:$0xf]
      %v391 = vld [vmem:[%s350 + $0x38] sm:$0xf]
      %v392 = vld [vmem:[%s355] sm:$0xf]
      %v393 = vld [vmem:[%s355 + $0x8] sm:$0xf]
      %v394 = vld [vmem:[%s355 + $0x10] sm:$0xf]
      %v395 = vld [vmem:[%s355 + $0x18] sm:$0xf]
      %v396 = vld [vmem:[%s355 + $0x20] sm:$0xf]
      %v397 = vld [vmem:[%s355 + $0x28] sm:$0xf]
      %v398 = vld [vmem:[%s355 + $0x30] sm:$0xf]
      %v399 = vld [vmem:[%s355 + $0x38] sm:$0xf]
      %v408 = vunpack.c.l.b16 %v384
      %v409 = vunpack.c.l.b16 %v385
      %v410 = vunpack.c.l.b16 %v386
      %v411 = vunpack.c.l.b16 %v387
      %v412 = vunpack.c.l.b16 %v388
      %v413 = vunpack.c.l.b16 %v389
      %v414 = vunpack.c.l.b16 %v390
      %v415 = vunpack.c.l.b16 %v391
      %v416 = vpack.c.b16 %v409, %v408
      %v417 = vpack.c.b16 %v411, %v410
      %v418 = vpack.c.b16 %v413, %v412
      %v419 = vpack.c.b16 %v415, %v414
      %v432 = vunpack.c.l.b16 %v392
      %v433 = vunpack.c.l.b16 %v393
      %v434 = vunpack.c.l.b16 %v394
      %v435 = vunpack.c.l.b16 %v395
      %v436 = vunpack.c.l.b16 %v396
      %v437 = vunpack.c.l.b16 %v397
      %v438 = vunpack.c.l.b16 %v398
      %v439 = vunpack.c.l.b16 %v399
      %v440 = vpack.c.b16 %v433, %v432
      %v441 = vpack.c.b16 %v435, %v434
      %v442 = vpack.c.b16 %v437, %v436
      %v443 = vpack.c.b16 %v439, %v438
      %v448 = vld [vmem:[%s4] sm:$0xf]
      %v449 = vld [vmem:[%s4 + $0x4] sm:$0xf]
      %v450 = vld [vmem:[%s4 + $0x8] sm:$0xf]
      %v451 = vld [vmem:[%s4 + $0xc] sm:$0xf]
      %v452 = vld [vmem:[%s4 + $0x10] sm:$0xf]
      %v453 = vld [vmem:[%s4 + $0x14] sm:$0xf]
      %v454 = vld [vmem:[%s4 + $0x18] sm:$0xf]
      %v455 = vld [vmem:[%s4 + $0x1c] sm:$0xf]
      %v456 = vld [vmem:[%s4 + $0x20] sm:$0xf]
      %v457 = vld [vmem:[%s4 + $0x24] sm:$0xf]
      %v458 = vld [vmem:[%s4 + $0x28] sm:$0xf]
      %v459 = vld [vmem:[%s4 + $0x2c] sm:$0xf]
      %v460 = vld [vmem:[%s4 + $0x30] sm:$0xf]
      %v461 = vld [vmem:[%s4 + $0x34] sm:$0xf]
      %v462 = vld [vmem:[%s4 + $0x38] sm:$0xf]
      %v463 = vld [vmem:[%s4 + $0x3c] sm:$0xf]
      %v464 = vld [vmem:[%s4 + $0x40] sm:$0xf]
      %v465 = vld [vmem:[%s4 + $0x44] sm:$0xf]
      %v466 = vld [vmem:[%s4 + $0x48] sm:$0xf]
      %v467 = vld [vmem:[%s4 + $0x4c] sm:$0xf]
      %v468 = vld [vmem:[%s4 + $0x50] sm:$0xf]
      %v469 = vld [vmem:[%s4 + $0x54] sm:$0xf]
      %v470 = vld [vmem:[%s4 + $0x58] sm:$0xf]
      %v471 = vld [vmem:[%s4 + $0x5c] sm:$0xf]
      %v472 = vld [vmem:[%s4 + $0x60] sm:$0xf]
      %v473 = vld [vmem:[%s4 + $0x64] sm:$0xf]
      %v474 = vld [vmem:[%s4 + $0x68] sm:$0xf]
      %v475 = vld [vmem:[%s4 + $0x6c] sm:$0xf]
      %v476 = vld [vmem:[%s4 + $0x70] sm:$0xf]
      %v477 = vld [vmem:[%s4 + $0x74] sm:$0xf]
      %v478 = vld [vmem:[%s4 + $0x78] sm:$0xf]
      %v479 = vld [vmem:[%s4 + $0x7c] sm:$0xf]
      %v480 = vld [vmem:[%s350 + $0x4] sm:$0x1]
      %v481 = vld [vmem:[%s350 + $0xc] sm:$0x1]
      %v482 = vld [vmem:[%s350 + $0x14] sm:$0x1]
      %v483 = vld [vmem:[%s350 + $0x1c] sm:$0x1]
      %v484 = vld [vmem:[%s350 + $0x24] sm:$0x1]
      %v485 = vld [vmem:[%s350 + $0x2c] sm:$0x1]
      %v486 = vld [vmem:[%s350 + $0x34] sm:$0x1]
      %v487 = vld [vmem:[%s350 + $0x3c] sm:$0x1]
      %vm488 = vsmask.f32 3328
      %vm489 = vsmask.f32 7440
      %vm490 = vmor %vm488, %vm489
      %v492 = vshrl.u32 %v384, 16
      %v494 = vrot.slane %v492, 4
      %v495 = vshll.u32 %v384, 16
      %v497 = vrot.slane %v495, 5
      %v498 = vor.u32 %v494, %v497
      %v499 = vrot.slane %v498, 4
      %v501 = vshll.u32 %v480, 16
      %v503 = vrot.slane %v501, 5
      %v504 = vsel %vm490, %v499, %v503
      %v506 = vshrl.u32 %v385, 16
      %v508 = vrot.slane %v506, 4
      %v509 = vshll.u32 %v385, 16
      %v511 = vrot.slane %v509, 5
      %v512 = vor.u32 %v508, %v511
      %v513 = vrot.slane %v512, 4
      %v515 = vshll.u32 %v481, 16
      %v517 = vrot.slane %v515, 5
      %v518 = vsel %vm490, %v513, %v517
      %v520 = vshrl.u32 %v386, 16
      %v522 = vrot.slane %v520, 4
      %v523 = vshll.u32 %v386, 16
      %v525 = vrot.slane %v523, 5
      %v526 = vor.u32 %v522, %v525
      %v527 = vrot.slane %v526, 4
      %v529 = vshll.u32 %v482, 16
      %v531 = vrot.slane %v529, 5
      %v532 = vsel %vm490, %v527, %v531
      %v534 = vshrl.u32 %v387, 16
      %v536 = vrot.slane %v534, 4
      %v537 = vshll.u32 %v387, 16
      %v539 = vrot.slane %v537, 5
      %v540 = vor.u32 %v536, %v539
      %v541 = vrot.slane %v540, 4
      %v543 = vshll.u32 %v483, 16
      %v545 = vrot.slane %v543, 5
      %v546 = vsel %vm490, %v541, %v545
      %v548 = vshrl.u32 %v388, 16
      %v550 = vrot.slane %v548, 4
      %v551 = vshll.u32 %v388, 16
      %v553 = vrot.slane %v551, 5
      %v554 = vor.u32 %v550, %v553
      %v555 = vrot.slane %v554, 4
      %v557 = vshll.u32 %v484, 16
      %v559 = vrot.slane %v557, 5
      %v560 = vsel %vm490, %v555, %v559
      %v562 = vshrl.u32 %v389, 16
      %v564 = vrot.slane %v562, 4
      %v565 = vshll.u32 %v389, 16
      %v567 = vrot.slane %v565, 5
      %v568 = vor.u32 %v564, %v567
      %v569 = vrot.slane %v568, 4
      %v571 = vshll.u32 %v485, 16
      %v573 = vrot.slane %v571, 5
      %v574 = vsel %vm490, %v569, %v573
      %v576 = vshrl.u32 %v390, 16
      %v578 = vrot.slane %v576, 4
      %v579 = vshll.u32 %v390, 16
      %v581 = vrot.slane %v579, 5
      %v582 = vor.u32 %v578, %v581
      %v583 = vrot.slane %v582, 4
      %v585 = vshll.u32 %v486, 16
      %v587 = vrot.slane %v585, 5
      %v588 = vsel %vm490, %v583, %v587
      %v590 = vshrl.u32 %v391, 16
      %v592 = vrot.slane %v590, 4
      %v593 = vshll.u32 %v391, 16
      %v595 = vrot.slane %v593, 5
      %v596 = vor.u32 %v592, %v595
      %v597 = vrot.slane %v596, 4
      %v599 = vshll.u32 %v487, 16
      %v601 = vrot.slane %v599, 5
      %v602 = vsel %vm490, %v597, %v601
      %v603 = vld [vmem:[%s360] sm:$0xf]
      %v604 = vld [vmem:[%s360 + $0x8] sm:$0xf]
      %v605 = vld [vmem:[%s360 + $0x10] sm:$0xf]
      %v606 = vld [vmem:[%s360 + $0x18] sm:$0xf]
      %v607 = vld [vmem:[%s360 + $0x20] sm:$0xf]
      %v608 = vld [vmem:[%s360 + $0x28] sm:$0xf]
      %v609 = vld [vmem:[%s360 + $0x30] sm:$0xf]
      %v610 = vld [vmem:[%s360 + $0x38] sm:$0xf]
      %v611 = vunpack.c.l.b16 %v504
      %v612 = vunpack.c.l.b16 %v518
      %v613 = vunpack.c.l.b16 %v532
      %v614 = vunpack.c.l.b16 %v546
      %v615 = vunpack.c.l.b16 %v560
      %v616 = vunpack.c.l.b16 %v574
      %v617 = vunpack.c.l.b16 %v588
      %v618 = vunpack.c.l.b16 %v602
      %v619 = vpack.c.b16 %v612, %v611
      %v620 = vpack.c.b16 %v614, %v613
      %v621 = vpack.c.b16 %v616, %v615
      %v622 = vpack.c.b16 %v618, %v617
      %v635 = vunpack.c.l.b16 %v603
      %v636 = vunpack.c.l.b16 %v604
      %v637 = vunpack.c.l.b16 %v605
      %v638 = vunpack.c.l.b16 %v606
      %v639 = vunpack.c.l.b16 %v607
      %v640 = vunpack.c.l.b16 %v608
      %v641 = vunpack.c.l.b16 %v609
      %v642 = vunpack.c.l.b16 %v610
      %v643 = vpack.c.b16 %v636, %v635
      %v644 = vpack.c.b16 %v638, %v637
      %v645 = vpack.c.b16 %v640, %v639
      %v646 = vpack.c.b16 %v642, %v641
      %v651 = vld [vmem:[%s4 + $0x80] sm:$0xf]
      %v652 = vld [vmem:[%s4 + $0x84] sm:$0xf]
      %v653 = vld [vmem:[%s4 + $0x88] sm:$0xf]
      %v654 = vld [vmem:[%s4 + $0x8c] sm:$0xf]
      %v655 = vld [vmem:[%s4 + $0x90] sm:$0xf]
      %v656 = vld [vmem:[%s4 + $0x94] sm:$0xf]
      %v657 = vld [vmem:[%s4 + $0x98] sm:$0xf]
      %v658 = vld [vmem:[%s4 + $0x9c] sm:$0xf]
      %v659 = vld [vmem:[%s4 + $0xa0] sm:$0xf]
      %v660 = vld [vmem:[%s4 + $0xa4] sm:$0xf]
      %v661 = vld [vmem:[%s4 + $0xa8] sm:$0xf]
      %v662 = vld [vmem:[%s4 + $0xac] sm:$0xf]
      %v663 = vld [vmem:[%s4 + $0xb0] sm:$0xf]
      %v664 = vld [vmem:[%s4 + $0xb4] sm:$0xf]
      %v665 = vld [vmem:[%s4 + $0xb8] sm:$0xf]
      %v666 = vld [vmem:[%s4 + $0xbc] sm:$0xf]
      %v667 = vld [vmem:[%s4 + $0xc0] sm:$0xf]
      %v668 = vld [vmem:[%s4 + $0xc4] sm:$0xf]
      %v669 = vld [vmem:[%s4 + $0xc8] sm:$0xf]
      %v670 = vld [vmem:[%s4 + $0xcc] sm:$0xf]
      %v671 = vld [vmem:[%s4 + $0xd0] sm:$0xf]
      %v672 = vld [vmem:[%s4 + $0xd4] sm:$0xf]
      %v673 = vld [vmem:[%s4 + $0xd8] sm:$0xf]
      %v674 = vld [vmem:[%s4 + $0xdc] sm:$0xf]
      %v675 = vld [vmem:[%s4 + $0xe0] sm:$0xf]
      %v676 = vld [vmem:[%s4 + $0xe4] sm:$0xf]
      %v677 = vld [vmem:[%s4 + $0xe8] sm:$0xf]
      %v678 = vld [vmem:[%s4 + $0xec] sm:$0xf]
      %v679 = vld [vmem:[%s4 + $0xf0] sm:$0xf]
      %v680 = vld [vmem:[%s4 + $0xf4] sm:$0xf]
      %v681 = vld [vmem:[%s4 + $0xf8] sm:$0xf]
      %v682 = vld [vmem:[%s4 + $0xfc] sm:$0xf]
      %v715 = vunpack.c.l.b16 %v651
      %v716 = vunpack.c.l.b16 %v652
      %v717 = vunpack.c.l.b16 %v653
      %v718 = vunpack.c.l.b16 %v654
      %v719 = vunpack.c.l.b16 %v655
      %v720 = vunpack.c.l.b16 %v656
      %v721 = vunpack.c.l.b16 %v657
      %v722 = vunpack.c.l.b16 %v658
      %v723 = vunpack.c.l.b16 %v659
      %v724 = vunpack.c.l.b16 %v660
      %v725 = vunpack.c.l.b16 %v661
      %v726 = vunpack.c.l.b16 %v662
      %v727 = vunpack.c.l.b16 %v663
      %v728 = vunpack.c.l.b16 %v664
      %v729 = vunpack.c.l.b16 %v665
      %v730 = vunpack.c.l.b16 %v666
      %v731 = vunpack.c.l.b16 %v667
      %v732 = vunpack.c.l.b16 %v668
      %v733 = vunpack.c.l.b16 %v669
      %v734 = vunpack.c.l.b16 %v670
      %v735 = vunpack.c.l.b16 %v671
      %v736 = vunpack.c.l.b16 %v672
      %v737 = vunpack.c.l.b16 %v673
      %v738 = vunpack.c.l.b16 %v674
      %v739 = vunpack.c.l.b16 %v675
      %v740 = vunpack.c.l.b16 %v676
      %v741 = vunpack.c.l.b16 %v677
      %v742 = vunpack.c.l.b16 %v678
      %v743 = vunpack.c.l.b16 %v679
      %v744 = vunpack.c.l.b16 %v680
      %v745 = vunpack.c.l.b16 %v681
      %v746 = vunpack.c.l.b16 %v682
      %v747 = vpack.c.b16 %v716, %v715
      %v748 = vpack.c.b16 %v718, %v717
      %v749 = vpack.c.b16 %v720, %v719
      %v750 = vpack.c.b16 %v722, %v721
      %v751 = vpack.c.b16 %v724, %v723
      %v752 = vpack.c.b16 %v726, %v725
      %v753 = vpack.c.b16 %v728, %v727
      %v754 = vpack.c.b16 %v730, %v729
      %v755 = vpack.c.b16 %v732, %v731
      %v756 = vpack.c.b16 %v734, %v733
      %v757 = vpack.c.b16 %v736, %v735
      %v758 = vpack.c.b16 %v738, %v737
      %v759 = vpack.c.b16 %v740, %v739
      %v760 = vpack.c.b16 %v742, %v741
      %v761 = vpack.c.b16 %v744, %v743
      %v762 = vpack.c.b16 %v746, %v745
      %779 = vmatprep.subr.bf16.mxu0 0
      %780 = vmatpush1.bf16.msra.mxu0 %v747
      %781 = vmatprep.subr.bf16.mxu0 0
      %782 = vmatpush1.bf16.msra.mxu0 %v748
      %783 = vmatprep.subr.bf16.mxu0 0
      %784 = vmatpush1.bf16.msra.mxu0 %v749
      %785 = vmatprep.subr.bf16.mxu0 0
      %786 = vmatpush1.bf16.msra.mxu0 %v750
      %787 = vmatprep.subr.bf16.mxu0 0
      %788 = vmatpush1.bf16.msra.mxu0 %v751
      %789 = vmatprep.subr.bf16.mxu0 0
      %790 = vmatpush1.bf16.msra.mxu0 %v752
      %791 = vmatprep.subr.bf16.mxu0 0
      %792 = vmatpush1.bf16.msra.mxu0 %v753
      %793 = vmatprep.subr.bf16.mxu0 0
      %794 = vmatpush1.bf16.msra.mxu0 %v754
      %795 = vmatprep.subr.bf16.mxu0 0
      %796 = vmatpush1.bf16.msra.mxu0 %v755
      %797 = vmatprep.subr.bf16.mxu0 0
      %798 = vmatpush1.bf16.msra.mxu0 %v756
      %799 = vmatprep.subr.bf16.mxu0 0
      %800 = vmatpush1.bf16.msra.mxu0 %v757
      %801 = vmatprep.subr.bf16.mxu0 0
      %802 = vmatpush1.bf16.msra.mxu0 %v758
      %803 = vmatprep.subr.bf16.mxu0 0
      %804 = vmatpush1.bf16.msra.mxu0 %v759
      %805 = vmatprep.subr.bf16.mxu0 0
      %806 = vmatpush1.bf16.msra.mxu0 %v760
      %807 = vmatprep.subr.bf16.mxu0 0
      %808 = vmatpush1.bf16.msra.mxu0 %v761
      %809 = vmatprep.subr.bf16.mxu0 0
      %810 = vmatpush1.bf16.msra.mxu0 %v762
      %811 = vmatprep.mubr.bf16.mxu0 %v643
      %812 = vmatmul.mubr.bf16.gmra.mrb[0].mxu0 %v619
      %v813 = vpop.f32.mrb[0].mxu0
      %v814 = vadd.f32 0.0, %v813
      %v815 = vpop.f32.mrb[0].mxu0
      %v816 = vpop.f32.mrb[0].mxu0
      %v817 = vadd.f32 0.0, %v816
      %v818 = vpop.f32.mrb[0].mxu0
      %819 = vmatprep.mubr.bf16.mxu0 %v644
      %820 = vmatmul.mubr.bf16.gmra.mrb[0].mxu0 %v620
      %v821 = vpop.f32.mrb[0].mxu0
      %v822 = vadd.f32 0.0, %v821
      %v823 = vpop.f32.mrb[0].mxu0
      %v824 = vpop.f32.mrb[0].mxu0
      %v825 = vadd.f32 0.0, %v824
      %v826 = vpop.f32.mrb[0].mxu0
      %827 = vmatprep.mubr.bf16.mxu0 %v645
      %828 = vmatmul.mubr.bf16.gmra.mrb[0].mxu0 %v621
      %v829 = vpop.f32.mrb[0].mxu0
      %v830 = vadd.f32 0.0, %v829
      %v831 = vpop.f32.mrb[0].mxu0
      %v832 = vpop.f32.mrb[0].mxu0
      %v833 = vadd.f32 0.0, %v832
      %v834 = vpop.f32.mrb[0].mxu0
      %835 = vmatprep.mubr.bf16.mxu0 %v646
      %836 = vmatmul.mubr.bf16.gmra.mrb[0].mxu0 %v622
      %v837 = vpop.f32.mrb[0].mxu0
      %v838 = vadd.f32 0.0, %v837
      %v839 = vpop.f32.mrb[0].mxu0
      %v840 = vpop.f32.mrb[0].mxu0
      %v841 = vadd.f32 0.0, %v840
      %v842 = vpop.f32.mrb[0].mxu0
      %843 = vdwg.mxu0
      %v876 = vunpack.c.l.b16 %v448
      %v877 = vunpack.c.l.b16 %v449
      %v878 = vunpack.c.l.b16 %v450
      %v879 = vunpack.c.l.b16 %v451
      %v880 = vunpack.c.l.b16 %v452
      %v881 = vunpack.c.l.b16 %v453
      %v882 = vunpack.c.l.b16 %v454
      %v883 = vunpack.c.l.b16 %v455
      %v884 = vunpack.c.l.b16 %v456
      %v885 = vunpack.c.l.b16 %v457
      %v886 = vunpack.c.l.b16 %v458
      %v887 = vunpack.c.l.b16 %v459
      %v888 = vunpack.c.l.b16 %v460
      %v889 = vunpack.c.l.b16 %v461
      %v890 = vunpack.c.l.b16 %v462
      %v891 = vunpack.c.l.b16 %v463
      %v892 = vunpack.c.l.b16 %v464
      %v893 = vunpack.c.l.b16 %v465
      %v894 = vunpack.c.l.b16 %v466
      %v895 = vunpack.c.l.b16 %v467
      %v896 = vunpack.c.l.b16 %v468
      %v897 = vunpack.c.l.b16 %v469
      %v898 = vunpack.c.l.b16 %v470
      %v899 = vunpack.c.l.b16 %v471
      %v900 = vunpack.c.l.b16 %v472
      %v901 = vunpack.c.l.b16 %v473
      %v902 = vunpack.c.l.b16 %v474
      %v903 = vunpack.c.l.b16 %v475
      %v904 = vunpack.c.l.b16 %v476
      %v905 = vunpack.c.l.b16 %v477
      %v906 = vunpack.c.l.b16 %v478
      %v907 = vunpack.c.l.b16 %v479
      %v908 = vpack.c.b16 %v877, %v876
      %v909 = vpack.c.b16 %v879, %v878
      %v910 = vpack.c.b16 %v881, %v880
      %v911 = vpack.c.b16 %v883, %v882
      %v912 = vpack.c.b16 %v885, %v884
      %v913 = vpack.c.b16 %v887, %v886
      %v914 = vpack.c.b16 %v889, %v888
      %v915 = vpack.c.b16 %v891, %v890
      %v916 = vpack.c.b16 %v893, %v892
      %v917 = vpack.c.b16 %v895, %v894
      %v918 = vpack.c.b16 %v897, %v896
      %v919 = vpack.c.b16 %v899, %v898
      %v920 = vpack.c.b16 %v901, %v900
      %v921 = vpack.c.b16 %v903, %v902
      %v922 = vpack.c.b16 %v905, %v904
      %v923 = vpack.c.b16 %v907, %v906
      %940 = vmatprep.subr.bf16.mxu0 0
      %941 = vmatpush1.bf16.msra.mxu0 %v908
      %942 = vmatprep.subr.bf16.mxu0 0
      %943 = vmatpush1.bf16.msra.mxu0 %v909
      %944 = vmatprep.subr.bf16.mxu0 0
      %945 = vmatpush1.bf16.msra.mxu0 %v910
      %946 = vmatprep.subr.bf16.mxu0 0
      %947 = vmatpush1.bf16.msra.mxu0 %v911
      %948 = vmatprep.subr.bf16.mxu0 0
      %949 = vmatpush1.bf16.msra.mxu0 %v912
      %950 = vmatprep.subr.bf16.mxu0 0
      %951 = vmatpush1.bf16.msra.mxu0 %v913
      %952 = vmatprep.subr.bf16.mxu0 0
      %953 = vmatpush1.bf16.msra.mxu0 %v914
      %954 = vmatprep.subr.bf16.mxu0 0
      %955 = vmatpush1.bf16.msra.mxu0 %v915
      %956 = vmatprep.subr.bf16.mxu0 0
      %957 = vmatpush1.bf16.msra.mxu0 %v916
      %958 = vmatprep.subr.bf16.mxu0 0
      %959 = vmatpush1.bf16.msra.mxu0 %v917
      %960 = vmatprep.subr.bf16.mxu0 0
      %961 = vmatpush1.bf16.msra.mxu0 %v918
      %962 = vmatprep.subr.bf16.mxu0 0
      %963 = vmatpush1.bf16.msra.mxu0 %v919
      %964 = vmatprep.subr.bf16.mxu0 0
      %965 = vmatpush1.bf16.msra.mxu0 %v920
      %966 = vmatprep.subr.bf16.mxu0 0
      %967 = vmatpush1.bf16.msra.mxu0 %v921
      %968 = vmatprep.subr.bf16.mxu0 0
      %969 = vmatpush1.bf16.msra.mxu0 %v922
      %970 = vmatprep.subr.bf16.mxu0 0
      %971 = vmatpush1.bf16.msra.mxu0 %v923
      %972 = vmatprep.mubr.bf16.mxu0 %v440
      %973 = vmatmul.mubr.bf16.gmra.mrb[0].mxu0 %v416
      %v974 = vpop.f32.mrb[0].mxu0
      %v975 = vadd.f32 %v814, %v974
      %v976 = vpop.f32.mrb[0].mxu0
      %v977 = vpop.f32.mrb[0].mxu0
      %v978 = vadd.f32 %v817, %v977
      %v979 = vpop.f32.mrb[0].mxu0
      %980 = vmatprep.mubr.bf16.mxu0 %v441
      %981 = vmatmul.mubr.bf16.gmra.mrb[0].mxu0 %v417
      %v982 = vpop.f32.mrb[0].mxu0
      %v983 = vadd.f32 %v822, %v982
      %v984 = vpop.f32.mrb[0].mxu0
      %v985 = vpop.f32.mrb[0].mxu0
      %v986 = vadd.f32 %v825, %v985
      %v987 = vpop.f32.mrb[0].mxu0
      %988 = vmatprep.mubr.bf16.mxu0 %v442
      %989 = vmatmul.mubr.bf16.gmra.mrb[0].mxu0 %v418
      %v990 = vpop.f32.mrb[0].mxu0
      %v991 = vadd.f32 %v830, %v990
      %v992 = vpop.f32.mrb[0].mxu0
      %v993 = vpop.f32.mrb[0].mxu0
      %v994 = vadd.f32 %v833, %v993
      %v995 = vpop.f32.mrb[0].mxu0
      %996 = vmatprep.mubr.bf16.mxu0 %v443
      %997 = vmatmul.mubr.bf16.gmra.mrb[0].mxu0 %v419
      %v998 = vpop.f32.mrb[0].mxu0
      %v999 = vadd.f32 %v838, %v998
      %v1000 = vpop.f32.mrb[0].mxu0
      %v1001 = vpop.f32.mrb[0].mxu0
      %v1002 = vadd.f32 %v841, %v1001
      %v1003 = vpop.f32.mrb[0].mxu0
      %1004 = vdwg.mxu0
      %v1005 = vld [vmem:[%s365] sm:$0xf]
      %v1006 = vld [vmem:[%s365 + $0x8] sm:$0xf]
      %v1007 = vld [vmem:[%s365 + $0x10] sm:$0xf]
      %v1008 = vld [vmem:[%s365 + $0x18] sm:$0xf]
      %v1009 = vld [vmem:[%s365 + $0x20] sm:$0xf]
      %v1010 = vld [vmem:[%s365 + $0x28] sm:$0xf]
      %v1011 = vld [vmem:[%s365 + $0x30] sm:$0xf]
      %v1012 = vld [vmem:[%s365 + $0x38] sm:$0xf]
      %v1013 = vld [vmem:[%s360] sm:$0xf]
      %v1014 = vld [vmem:[%s360 + $0x4] sm:$0x1]
      %v1015 = vld [vmem:[%s360 + $0x8] sm:$0xf]
      %v1016 = vld [vmem:[%s360 + $0xc] sm:$0x1]
      %v1017 = vld [vmem:[%s360 + $0x10] sm:$0xf]
      %v1018 = vld [vmem:[%s360 + $0x14] sm:$0x1]
      %v1019 = vld [vmem:[%s360 + $0x18] sm:$0xf]
      %v1020 = vld [vmem:[%s360 + $0x1c] sm:$0x1]
      %v1021 = vld [vmem:[%s360 + $0x20] sm:$0xf]
      %v1022 = vld [vmem:[%s360 + $0x24] sm:$0x1]
      %v1023 = vld [vmem:[%s360 + $0x28] sm:$0xf]
      %v1024 = vld [vmem:[%s360 + $0x2c] sm:$0x1]
      %v1025 = vld [vmem:[%s360 + $0x30] sm:$0xf]
      %v1026 = vld [vmem:[%s360 + $0x34] sm:$0x1]
      %v1027 = vld [vmem:[%s360 + $0x38] sm:$0xf]
      %v1028 = vld [vmem:[%s360 + $0x3c] sm:$0x1]
      %v1030 = vshrl.u32 %v1013, 16
      %v1032 = vrot.slane %v1030, 4
      %v1033 = vshll.u32 %v1013, 16
      %v1035 = vrot.slane %v1033, 5
      %v1036 = vor.u32 %v1032, %v1035
      %v1037 = vrot.slane %v1036, 4
      %v1039 = vshll.u32 %v1014, 16
      %v1041 = vrot.slane %v1039, 5
      %v1042 = vsel %vm490, %v1037, %v1041
      %v1044 = vshrl.u32 %v1015, 16
      %v1046 = vrot.slane %v1044, 4
      %v1047 = vshll.u32 %v1015, 16
      %v1049 = vrot.slane %v1047, 5
      %v1050 = vor.u32 %v1046, %v1049
      %v1051 = vrot.slane %v1050, 4
      %v1053 = vshll.u32 %v1016, 16
      %v1055 = vrot.slane %v1053, 5
      %v1056 = vsel %vm490, %v1051, %v1055
      %v1058 = vshrl.u32 %v1017, 16
      %v1060 = vrot.slane %v1058, 4
      %v1061 = vshll.u32 %v1017, 16
      %v1063 = vrot.slane %v1061, 5
      %v1064 = vor.u32 %v1060, %v1063
      %v1065 = vrot.slane %v1064, 4
      %v1067 = vshll.u32 %v1018, 16
      %v1069 = vrot.slane %v1067, 5
      %v1070 = vsel %vm490, %v1065, %v1069
      %v1072 = vshrl.u32 %v1019, 16
      %v1074 = vrot.slane %v1072, 4
      %v1075 = vshll.u32 %v1019, 16
      %v1077 = vrot.slane %v1075, 5
      %v1078 = vor.u32 %v1074, %v1077
      %v1079 = vrot.slane %v1078, 4
      %v1081 = vshll.u32 %v1020, 16
      %v1083 = vrot.slane %v1081, 5
      %v1084 = vsel %vm490, %v1079, %v1083
      %v1086 = vshrl.u32 %v1021, 16
      %v1088 = vrot.slane %v1086, 4
      %v1089 = vshll.u32 %v1021, 16
      %v1091 = vrot.slane %v1089, 5
      %v1092 = vor.u32 %v1088, %v1091
      %v1093 = vrot.slane %v1092, 4
      %v1095 = vshll.u32 %v1022, 16
      %v1097 = vrot.slane %v1095, 5
      %v1098 = vsel %vm490, %v1093, %v1097
      %v1100 = vshrl.u32 %v1023, 16
      %v1102 = vrot.slane %v1100, 4
      %v1103 = vshll.u32 %v1023, 16
      %v1105 = vrot.slane %v1103, 5
      %v1106 = vor.u32 %v1102, %v1105
      %v1107 = vrot.slane %v1106, 4
      %v1109 = vshll.u32 %v1024, 16
      %v1111 = vrot.slane %v1109, 5
      %v1112 = vsel %vm490, %v1107, %v1111
      %v1114 = vshrl.u32 %v1025, 16
      %v1116 = vrot.slane %v1114, 4
      %v1117 = vshll.u32 %v1025, 16
      %v1119 = vrot.slane %v1117, 5
      %v1120 = vor.u32 %v1116, %v1119
      %v1121 = vrot.slane %v1120, 4
      %v1123 = vshll.u32 %v1026, 16
      %v1125 = vrot.slane %v1123, 5
      %v1126 = vsel %vm490, %v1121, %v1125
      %v1128 = vshrl.u32 %v1027, 16
      %v1130 = vrot.slane %v1128, 4
      %v1131 = vshll.u32 %v1027, 16
      %v1133 = vrot.slane %v1131, 5
      %v1134 = vor.u32 %v1130, %v1133
      %v1135 = vrot.slane %v1134, 4
      %v1137 = vshll.u32 %v1028, 16
      %v1139 = vrot.slane %v1137, 5
      %v1140 = vsel %vm490, %v1135, %v1139
      %v1149 = vunpack.c.l.b16 %v1005
      %v1150 = vunpack.c.l.b16 %v1006
      %v1151 = vunpack.c.l.b16 %v1007
      %v1152 = vunpack.c.l.b16 %v1008
      %v1153 = vunpack.c.l.b16 %v1009
      %v1154 = vunpack.c.l.b16 %v1010
      %v1155 = vunpack.c.l.b16 %v1011
      %v1156 = vunpack.c.l.b16 %v1012
      %v1157 = vpack.c.b16 %v1150, %v1149
      %v1158 = vpack.c.b16 %v1152, %v1151
      %v1159 = vpack.c.b16 %v1154, %v1153
      %v1160 = vpack.c.b16 %v1156, %v1155
      %v1165 = vunpack.c.l.b16 %v1042
      %v1166 = vunpack.c.l.b16 %v1056
      %v1167 = vunpack.c.l.b16 %v1070
      %v1168 = vunpack.c.l.b16 %v1084
      %v1169 = vunpack.c.l.b16 %v1098
      %v1170 = vunpack.c.l.b16 %v1112
      %v1171 = vunpack.c.l.b16 %v1126
      %v1172 = vunpack.c.l.b16 %v1140
      %v1173 = vpack.c.b16 %v1166, %v1165
      %v1174 = vpack.c.b16 %v1168, %v1167
      %v1175 = vpack.c.b16 %v1170, %v1169
      %v1176 = vpack.c.b16 %v1172, %v1171
      %v1181 = vld [vmem:[%s4 + $0x100] sm:$0xf]
      %v1182 = vld [vmem:[%s4 + $0x104] sm:$0xf]
      %v1183 = vld [vmem:[%s4 + $0x108] sm:$0xf]
      %v1184 = vld [vmem:[%s4 + $0x10c] sm:$0xf]
      %v1185 = vld [vmem:[%s4 + $0x110] sm:$0xf]
      %v1186 = vld [vmem:[%s4 + $0x114] sm:$0xf]
      %v1187 = vld [vmem:[%s4 + $0x118] sm:$0xf]
      %v1188 = vld [vmem:[%s4 + $0x11c] sm:$0xf]
      %v1189 = vld [vmem:[%s4 + $0x120] sm:$0xf]
      %v1190 = vld [vmem:[%s4 + $0x124] sm:$0xf]
      %v1191 = vld [vmem:[%s4 + $0x128] sm:$0xf]
      %v1192 = vld [vmem:[%s4 + $0x12c] sm:$0xf]
      %v1193 = vld [vmem:[%s4 + $0x130] sm:$0xf]
      %v1194 = vld [vmem:[%s4 + $0x134] sm:$0xf]
      %v1195 = vld [vmem:[%s4 + $0x138] sm:$0xf]
      %v1196 = vld [vmem:[%s4 + $0x13c] sm:$0xf]
      %v1197 = vld [vmem:[%s4 + $0x140] sm:$0xf]
      %v1198 = vld [vmem:[%s4 + $0x144] sm:$0xf]
      %v1199 = vld [vmem:[%s4 + $0x148] sm:$0xf]
      %v1200 = vld [vmem:[%s4 + $0x14c] sm:$0xf]
      %v1201 = vld [vmem:[%s4 + $0x150] sm:$0xf]
      %v1202 = vld [vmem:[%s4 + $0x154] sm:$0xf]
      %v1203 = vld [vmem:[%s4 + $0x158] sm:$0xf]
      %v1204 = vld [vmem:[%s4 + $0x15c] sm:$0xf]
      %v1205 = vld [vmem:[%s4 + $0x160] sm:$0xf]
      %v1206 = vld [vmem:[%s4 + $0x164] sm:$0xf]
      %v1207 = vld [vmem:[%s4 + $0x168] sm:$0xf]
      %v1208 = vld [vmem:[%s4 + $0x16c] sm:$0xf]
      %v1209 = vld [vmem:[%s4 + $0x170] sm:$0xf]
      %v1210 = vld [vmem:[%s4 + $0x174] sm:$0xf]
      %v1211 = vld [vmem:[%s4 + $0x178] sm:$0xf]
      %v1212 = vld [vmem:[%s4 + $0x17c] sm:$0xf]
      %v1245 = vunpack.c.l.b16 %v1181
      %v1246 = vunpack.c.l.b16 %v1182
      %v1247 = vunpack.c.l.b16 %v1183
      %v1248 = vunpack.c.l.b16 %v1184
      %v1249 = vunpack.c.l.b16 %v1185
      %v1250 = vunpack.c.l.b16 %v1186
      %v1251 = vunpack.c.l.b16 %v1187
      %v1252 = vunpack.c.l.b16 %v1188
      %v1253 = vunpack.c.l.b16 %v1189
      %v1254 = vunpack.c.l.b16 %v1190
      %v1255 = vunpack.c.l.b16 %v1191
      %v1256 = vunpack.c.l.b16 %v1192
      %v1257 = vunpack.c.l.b16 %v1193
      %v1258 = vunpack.c.l.b16 %v1194
      %v1259 = vunpack.c.l.b16 %v1195
      %v1260 = vunpack.c.l.b16 %v1196
      %v1261 = vunpack.c.l.b16 %v1197
      %v1262 = vunpack.c.l.b16 %v1198
      %v1263 = vunpack.c.l.b16 %v1199
      %v1264 = vunpack.c.l.b16 %v1200
      %v1265 = vunpack.c.l.b16 %v1201
      %v1266 = vunpack.c.l.b16 %v1202
      %v1267 = vunpack.c.l.b16 %v1203
      %v1268 = vunpack.c.l.b16 %v1204
      %v1269 = vunpack.c.l.b16 %v1205
      %v1270 = vunpack.c.l.b16 %v1206
      %v1271 = vunpack.c.l.b16 %v1207
      %v1272 = vunpack.c.l.b16 %v1208
      %v1273 = vunpack.c.l.b16 %v1209
      %v1274 = vunpack.c.l.b16 %v1210
      %v1275 = vunpack.c.l.b16 %v1211
      %v1276 = vunpack.c.l.b16 %v1212
      %v1277 = vpack.c.b16 %v1246, %v1245
      %v1278 = vpack.c.b16 %v1248, %v1247
      %v1279 = vpack.c.b16 %v1250, %v1249
      %v1280 = vpack.c.b16 %v1252, %v1251
      %v1281 = vpack.c.b16 %v1254, %v1253
      %v1282 = vpack.c.b16 %v1256, %v1255
      %v1283 = vpack.c.b16 %v1258, %v1257
      %v1284 = vpack.c.b16 %v1260, %v1259
      %v1285 = vpack.c.b16 %v1262, %v1261
      %v1286 = vpack.c.b16 %v1264, %v1263
      %v1287 = vpack.c.b16 %v1266, %v1265
      %v1288 = vpack.c.b16 %v1268, %v1267
      %v1289 = vpack.c.b16 %v1270, %v1269
      %v1290 = vpack.c.b16 %v1272, %v1271
      %v1291 = vpack.c.b16 %v1274, %v1273
      %v1292 = vpack.c.b16 %v1276, %v1275
      %1309 = vmatprep.subr.bf16.mxu0 0
      %1310 = vmatpush1.bf16.msra.mxu0 %v1277
      %1311 = vmatprep.subr.bf16.mxu0 0
      %1312 = vmatpush1.bf16.msra.mxu0 %v1278
      %1313 = vmatprep.subr.bf16.mxu0 0
      %1314 = vmatpush1.bf16.msra.mxu0 %v1279
      %1315 = vmatprep.subr.bf16.mxu0 0
      %1316 = vmatpush1.bf16.msra.mxu0 %v1280
      %1317 = vmatprep.subr.bf16.mxu0 0
      %1318 = vmatpush1.bf16.msra.mxu0 %v1281
      %1319 = vmatprep.subr.bf16.mxu0 0
      %1320 = vmatpush1.bf16.msra.mxu0 %v1282
      %1321 = vmatprep.subr.bf16.mxu0 0
      %1322 = vmatpush1.bf16.msra.mxu0 %v1283
      %1323 = vmatprep.subr.bf16.mxu0 0
      %1324 = vmatpush1.bf16.msra.mxu0 %v1284
      %1325 = vmatprep.subr.bf16.mxu0 0
      %1326 = vmatpush1.bf16.msra.mxu0 %v1285
      %1327 = vmatprep.subr.bf16.mxu0 0
      %1328 = vmatpush1.bf16.msra.mxu0 %v1286
      %1329 = vmatprep.subr.bf16.mxu0 0
      %1330 = vmatpush1.bf16.msra.mxu0 %v1287
      %1331 = vmatprep.subr.bf16.mxu0 0
      %1332 = vmatpush1.bf16.msra.mxu0 %v1288
      %1333 = vmatprep.subr.bf16.mxu0 0
      %1334 = vmatpush1.bf16.msra.mxu0 %v1289
      %1335 = vmatprep.subr.bf16.mxu0 0
      %1336 = vmatpush1.bf16.msra.mxu0 %v1290
      %1337 = vmatprep.subr.bf16.mxu0 0
      %1338 = vmatpush1.bf16.msra.mxu0 %v1291
      %1339 = vmatprep.subr.bf16.mxu0 0
      %1340 = vmatpush1.bf16.msra.mxu0 %v1292
      %1341 = vmatprep.mubr.bf16.mxu0 %v1173
      %1342 = vmatmul.mubr.bf16.gmra.mrb[0].mxu0 %v1157
      %v1343 = vpop.f32.mrb[0].mxu0
      %v1344 = vadd.f32 0.0, %v1343
      %v1345 = vpop.f32.mrb[0].mxu0
      %v1346 = vpop.f32.mrb[0].mxu0
      %v1347 = vadd.f32 0.0, %v1346
      %v1348 = vpop.f32.mrb[0].mxu0
      %1349 = vmatprep.mubr.bf16.mxu0 %v1174
      %1350 = vmatmul.mubr.bf16.gmra.mrb[0].mxu0 %v1158
      %v1351 = vpop.f32.mrb[0].mxu0
      %v1352 = vadd.f32 0.0, %v1351
      %v1353 = vpop.f32.mrb[0].mxu0
      %v1354 = vpop.f32.mrb[0].mxu0
      %v1355 = vadd.f32 0.0, %v1354
      %v1356 = vpop.f32.mrb[0].mxu0
      %1357 = vmatprep.mubr.bf16.mxu0 %v1175
      %1358 = vmatmul.mubr.bf16.gmra.mrb[0].mxu0 %v1159
      %v1359 = vpop.f32.mrb[0].mxu0
      %v1360 = vadd.f32 0.0, %v1359
      %v1361 = vpop.f32.mrb[0].mxu0
      %v1362 = vpop.f32.mrb[0].mxu0
      %v1363 = vadd.f32 0.0, %v1362
      %v1364 = vpop.f32.mrb[0].mxu0
      %1365 = vmatprep.mubr.bf16.mxu0 %v1176
      %1366 = vmatmul.mubr.bf16.gmra.mrb[0].mxu0 %v1160
      %v1367 = vpop.f32.mrb[0].mxu0
      %v1368 = vadd.f32 0.0, %v1367
      %v1369 = vpop.f32.mrb[0].mxu0
      %v1370 = vpop.f32.mrb[0].mxu0
      %v1371 = vadd.f32 0.0, %v1370
      %v1372 = vpop.f32.mrb[0].mxu0
      %1373 = vdwg.mxu0
      %v1374 = vadd.f32 %v975, %v1344
      %v1375 = vadd.f32 %v978, %v1347
      %v1376 = vadd.f32 %v983, %v1352
      %v1377 = vadd.f32 %v986, %v1355
      %v1378 = vadd.f32 %v991, %v1360
      %v1379 = vadd.f32 %v994, %v1363
      %v1380 = vadd.f32 %v999, %v1368
      %v1381 = vadd.f32 %v1002, %v1371
      %s1382 = scalar_lea.vmem %s350, 8
      %v1383 = vld [vmem:[%s1382] sm:$0xf]
      %v1384 = vld [vmem:[%s1382 + $0x8] sm:$0xf]
      %v1385 = vld [vmem:[%s1382 + $0x10] sm:$0xf]
      %v1386 = vld [vmem:[%s1382 + $0x18] sm:$0xf]
      %v1387 = vld [vmem:[%s1382 + $0x20] sm:$0xf]
      %v1388 = vld [vmem:[%s1382 + $0x28] sm:$0xf]
      %v1389 = vld [vmem:[%s1382 + $0x30] sm:$0xf]
      %v1390 = vld [vmem:[%s1382 + $0x38] sm:$0xf]
      %s1391 = scalar_lea.vmem %s355, 8
      %v1392 = vld [vmem:[%s1391] sm:$0xf]
      %v1393 = vld [vmem:[%s1391 + $0x8] sm:$0xf]
      %v1394 = vld [vmem:[%s1391 + $0x10] sm:$0xf]
      %v1395 = vld [vmem:[%s1391 + $0x18] sm:$0xf]
      %v1396 = vld [vmem:[%s1391 + $0x20] sm:$0xf]
      %v1397 = vld [vmem:[%s1391 + $0x28] sm:$0xf]
      %v1398 = vld [vmem:[%s1391 + $0x30] sm:$0xf]
      %v1399 = vld [vmem:[%s1391 + $0x38] sm:$0xf]
      %v1408 = vunpack.c.l.b16 %v1383
      %v1409 = vunpack.c.l.b16 %v1384
      %v1410 = vunpack.c.l.b16 %v1385
      %v1411 = vunpack.c.l.b16 %v1386
      %v1412 = vunpack.c.l.b16 %v1387
      %v1413 = vunpack.c.l.b16 %v1388
      %v1414 = vunpack.c.l.b16 %v1389
      %v1415 = vunpack.c.l.b16 %v1390
      %v1416 = vpack.c.b16 %v1409, %v1408
      %v1417 = vpack.c.b16 %v1411, %v1410
      %v1418 = vpack.c.b16 %v1413, %v1412
      %v1419 = vpack.c.b16 %v1415, %v1414
      %v1432 = vunpack.c.l.b16 %v1392
      %v1433 = vunpack.c.l.b16 %v1393
      %v1434 = vunpack.c.l.b16 %v1394
      %v1435 = vunpack.c.l.b16 %v1395
      %v1436 = vunpack.c.l.b16 %v1396
      %v1437 = vunpack.c.l.b16 %v1397
      %v1438 = vunpack.c.l.b16 %v1398
      %v1439 = vunpack.c.l.b16 %v1399
      %v1440 = vpack.c.b16 %v1433, %v1432
      %v1441 = vpack.c.b16 %v1435, %v1434
      %v1442 = vpack.c.b16 %v1437, %v1436
      %v1443 = vpack.c.b16 %v1439, %v1438
      %v1448 = vld [vmem:[%s4 + $0x180] sm:$0xf]
      %v1449 = vld [vmem:[%s4 + $0x184] sm:$0xf]
      %v1450 = vld [vmem:[%s4 + $0x188] sm:$0xf]
      %v1451 = vld [vmem:[%s4 + $0x18c] sm:$0xf]
      %v1452 = vld [vmem:[%s4 + $0x190] sm:$0xf]
      %v1453 = vld [vmem:[%s4 + $0x194] sm:$0xf]
      %v1454 = vld [vmem:[%s4 + $0x198] sm:$0xf]
      %v1455 = vld [vmem:[%s4 + $0x19c] sm:$0xf]
      %v1456 = vld [vmem:[%s4 + $0x1a0] sm:$0xf]
      %v1457 = vld [vmem:[%s4 + $0x1a4] sm:$0xf]
      %v1458 = vld [vmem:[%s4 + $0x1a8] sm:$0xf]
      %v1459 = vld [vmem:[%s4 + $0x1ac] sm:$0xf]
      %v1460 = vld [vmem:[%s4 + $0x1b0] sm:$0xf]
      %v1461 = vld [vmem:[%s4 + $0x1b4] sm:$0xf]
      %v1462 = vld [vmem:[%s4 + $0x1b8] sm:$0xf]
      %v1463 = vld [vmem:[%s4 + $0x1bc] sm:$0xf]
      %v1464 = vld [vmem:[%s4 + $0x1c0] sm:$0xf]
      %v1465 = vld [vmem:[%s4 + $0x1c4] sm:$0xf]
      %v1466 = vld [vmem:[%s4 + $0x1c8] sm:$0xf]
      %v1467 = vld [vmem:[%s4 + $0x1cc] sm:$0xf]
      %v1468 = vld [vmem:[%s4 + $0x1d0] sm:$0xf]
      %v1469 = vld [vmem:[%s4 + $0x1d4] sm:$0xf]
      %v1470 = vld [vmem:[%s4 + $0x1d8] sm:$0xf]
      %v1471 = vld [vmem:[%s4 + $0x1dc] sm:$0xf]
      %v1472 = vld [vmem:[%s4 + $0x1e0] sm:$0xf]
      %v1473 = vld [vmem:[%s4 + $0x1e4] sm:$0xf]
      %v1474 = vld [vmem:[%s4 + $0x1e8] sm:$0xf]
      %v1475 = vld [vmem:[%s4 + $0x1ec] sm:$0xf]
      %v1476 = vld [vmem:[%s4 + $0x1f0] sm:$0xf]
      %v1477 = vld [vmem:[%s4 + $0x1f4] sm:$0xf]
      %v1478 = vld [vmem:[%s4 + $0x1f8] sm:$0xf]
      %v1479 = vld [vmem:[%s4 + $0x1fc] sm:$0xf]
      %v1512 = vunpack.c.l.b16 %v1448
      %v1513 = vunpack.c.l.b16 %v1449
      %v1514 = vunpack.c.l.b16 %v1450
      %v1515 = vunpack.c.l.b16 %v1451
      %v1516 = vunpack.c.l.b16 %v1452
      %v1517 = vunpack.c.l.b16 %v1453
      %v1518 = vunpack.c.l.b16 %v1454
      %v1519 = vunpack.c.l.b16 %v1455
      %v1520 = vunpack.c.l.b16 %v1456
      %v1521 = vunpack.c.l.b16 %v1457
      %v1522 = vunpack.c.l.b16 %v1458
      %v1523 = vunpack.c.l.b16 %v1459
      %v1524 = vunpack.c.l.b16 %v1460
      %v1525 = vunpack.c.l.b16 %v1461
      %v1526 = vunpack.c.l.b16 %v1462
      %v1527 = vunpack.c.l.b16 %v1463
      %v1528 = vunpack.c.l.b16 %v1464
      %v1529 = vunpack.c.l.b16 %v1465
      %v1530 = vunpack.c.l.b16 %v1466
      %v1531 = vunpack.c.l.b16 %v1467
      %v1532 = vunpack.c.l.b16 %v1468
      %v1533 = vunpack.c.l.b16 %v1469
      %v1534 = vunpack.c.l.b16 %v1470
      %v1535 = vunpack.c.l.b16 %v1471
      %v1536 = vunpack.c.l.b16 %v1472
      %v1537 = vunpack.c.l.b16 %v1473
      %v1538 = vunpack.c.l.b16 %v1474
      %v1539 = vunpack.c.l.b16 %v1475
      %v1540 = vunpack.c.l.b16 %v1476
      %v1541 = vunpack.c.l.b16 %v1477
      %v1542 = vunpack.c.l.b16 %v1478
      %v1543 = vunpack.c.l.b16 %v1479
      %v1544 = vpack.c.b16 %v1513, %v1512
      %v1545 = vpack.c.b16 %v1515, %v1514
      %v1546 = vpack.c.b16 %v1517, %v1516
      %v1547 = vpack.c.b16 %v1519, %v1518
      %v1548 = vpack.c.b16 %v1521, %v1520
      %v1549 = vpack.c.b16 %v1523, %v1522
      %v1550 = vpack.c.b16 %v1525, %v1524
      %v1551 = vpack.c.b16 %v1527, %v1526
      %v1552 = vpack.c.b16 %v1529, %v1528
      %v1553 = vpack.c.b16 %v1531, %v1530
      %v1554 = vpack.c.b16 %v1533, %v1532
      %v1555 = vpack.c.b16 %v1535, %v1534
      %v1556 = vpack.c.b16 %v1537, %v1536
      %v1557 = vpack.c.b16 %v1539, %v1538
      %v1558 = vpack.c.b16 %v1541, %v1540
      %v1559 = vpack.c.b16 %v1543, %v1542
      %1576 = vmatprep.subr.bf16.mxu0 0
      %1577 = vmatpush1.bf16.msra.mxu0 %v1544
      %1578 = vmatprep.subr.bf16.mxu0 0
      %1579 = vmatpush1.bf16.msra.mxu0 %v1545
      %1580 = vmatprep.subr.bf16.mxu0 0
      %1581 = vmatpush1.bf16.msra.mxu0 %v1546
      %1582 = vmatprep.subr.bf16.mxu0 0
      %1583 = vmatpush1.bf16.msra.mxu0 %v1547
      %1584 = vmatprep.subr.bf16.mxu0 0
      %1585 = vmatpush1.bf16.msra.mxu0 %v1548
      %1586 = vmatprep.subr.bf16.mxu0 0
      %1587 = vmatpush1.bf16.msra.mxu0 %v1549
      %1588 = vmatprep.subr.bf16.mxu0 0
      %1589 = vmatpush1.bf16.msra.mxu0 %v1550
      %1590 = vmatprep.subr.bf16.mxu0 0
      %1591 = vmatpush1.bf16.msra.mxu0 %v1551
      %1592 = vmatprep.subr.bf16.mxu0 0
      %1593 = vmatpush1.bf16.msra.mxu0 %v1552
      %1594 = vmatprep.subr.bf16.mxu0 0
      %1595 = vmatpush1.bf16.msra.mxu0 %v1553
      %1596 = vmatprep.subr.bf16.mxu0 0
      %1597 = vmatpush1.bf16.msra.mxu0 %v1554
      %1598 = vmatprep.subr.bf16.mxu0 0
      %1599 = vmatpush1.bf16.msra.mxu0 %v1555
      %1600 = vmatprep.subr.bf16.mxu0 0
      %1601 = vmatpush1.bf16.msra.mxu0 %v1556
      %1602 = vmatprep.subr.bf16.mxu0 0
      %1603 = vmatpush1.bf16.msra.mxu0 %v1557
      %1604 = vmatprep.subr.bf16.mxu0 0
      %1605 = vmatpush1.bf16.msra.mxu0 %v1558
      %1606 = vmatprep.subr.bf16.mxu0 0
      %1607 = vmatpush1.bf16.msra.mxu0 %v1559
      %1608 = vmatprep.mubr.bf16.mxu0 %v1440
      %1609 = vmatmul.mubr.bf16.gmra.mrb[0].mxu0 %v1416
      %v1610 = vpop.f32.mrb[0].mxu0
      %v1611 = vadd.f32 0.0, %v1610
      %v1612 = vpop.f32.mrb[0].mxu0
      %v1613 = vpop.f32.mrb[0].mxu0
      %v1614 = vadd.f32 0.0, %v1613
      %v1615 = vpop.f32.mrb[0].mxu0
      %1616 = vmatprep.mubr.bf16.mxu0 %v1441
      %1617 = vmatmul.mubr.bf16.gmra.mrb[0].mxu0 %v1417
      %v1618 = vpop.f32.mrb[0].mxu0
      %v1619 = vadd.f32 0.0, %v1618
      %v1620 = vpop.f32.mrb[0].mxu0
      %v1621 = vpop.f32.mrb[0].mxu0
      %v1622 = vadd.f32 0.0, %v1621
      %v1623 = vpop.f32.mrb[0].mxu0
      %1624 = vmatprep.mubr.bf16.mxu0 %v1442
      %1625 = vmatmul.mubr.bf16.gmra.mrb[0].mxu0 %v1418
      %v1626 = vpop.f32.mrb[0].mxu0
      %v1627 = vadd.f32 0.0, %v1626
      %v1628 = vpop.f32.mrb[0].mxu0
      %v1629 = vpop.f32.mrb[0].mxu0
      %v1630 = vadd.f32 0.0, %v1629
      %v1631 = vpop.f32.mrb[0].mxu0
      %1632 = vmatprep.mubr.bf16.mxu0 %v1443
      %1633 = vmatmul.mubr.bf16.gmra.mrb[0].mxu0 %v1419
      %v1634 = vpop.f32.mrb[0].mxu0
      %v1635 = vadd.f32 0.0, %v1634
      %v1636 = vpop.f32.mrb[0].mxu0
      %v1637 = vpop.f32.mrb[0].mxu0
      %v1638 = vadd.f32 0.0, %v1637
      %v1639 = vpop.f32.mrb[0].mxu0
      %1640 = vdwg.mxu0
      %v1641 = vadd.f32 %v1374, %v1611
      %v1642 = vadd.f32 %v1375, %v1614
      %v1643 = vadd.f32 %v1376, %v1619
      %v1644 = vadd.f32 %v1377, %v1622
      %v1645 = vadd.f32 %v1378, %v1627
      %v1646 = vadd.f32 %v1379, %v1630
      %v1647 = vadd.f32 %v1380, %v1635
      %v1648 = vadd.f32 %v1381, %v1638
      %v1649 = vld [vmem:[%s1382] sm:$0xf]
      %v1650 = vld [vmem:[%s1382 + $0x4] sm:$0x1]
      %v1651 = vld [vmem:[%s1382 + $0x8] sm:$0xf]
      %v1652 = vld [vmem:[%s1382 + $0xc] sm:$0x1]
      %v1653 = vld [vmem:[%s1382 + $0x10] sm:$0xf]
      %v1654 = vld [vmem:[%s1382 + $0x14] sm:$0x1]
      %v1655 = vld [vmem:[%s1382 + $0x18] sm:$0xf]
      %v1656 = vld [vmem:[%s1382 + $0x1c] sm:$0x1]
      %v1657 = vld [vmem:[%s1382 + $0x20] sm:$0xf]
      %v1658 = vld [vmem:[%s1382 + $0x24] sm:$0x1]
      %v1659 = vld [vmem:[%s1382 + $0x28] sm:$0xf]
      %v1660 = vld [vmem:[%s1382 + $0x2c] sm:$0x1]
      %v1661 = vld [vmem:[%s1382 + $0x30] sm:$0xf]
      %v1662 = vld [vmem:[%s1382 + $0x34] sm:$0x1]
      %v1663 = vld [vmem:[%s1382 + $0x38] sm:$0xf]
      %v1664 = vld [vmem:[%s1382 + $0x3c] sm:$0x1]
      %v1666 = vshrl.u32 %v1649, 16
      %v1668 = vrot.slane %v1666, 4
      %v1669 = vshll.u32 %v1649, 16
      %v1671 = vrot.slane %v1669, 5
      %v1672 = vor.u32 %v1668, %v1671
      %v1673 = vrot.slane %v1672, 4
      %v1675 = vshll.u32 %v1650, 16
      %v1677 = vrot.slane %v1675, 5
      %v1678 = vsel %vm490, %v1673, %v1677
      %v1680 = vshrl.u32 %v1651, 16
      %v1682 = vrot.slane %v1680, 4
      %v1683 = vshll.u32 %v1651, 16
      %v1685 = vrot.slane %v1683, 5
      %v1686 = vor.u32 %v1682, %v1685
      %v1687 = vrot.slane %v1686, 4
      %v1689 = vshll.u32 %v1652, 16
      %v1691 = vrot.slane %v1689, 5
      %v1692 = vsel %vm490, %v1687, %v1691
      %v1694 = vshrl.u32 %v1653, 16
      %v1696 = vrot.slane %v1694, 4
      %v1697 = vshll.u32 %v1653, 16
      %v1699 = vrot.slane %v1697, 5
      %v1700 = vor.u32 %v1696, %v1699
      %v1701 = vrot.slane %v1700, 4
      %v1703 = vshll.u32 %v1654, 16
      %v1705 = vrot.slane %v1703, 5
      %v1706 = vsel %vm490, %v1701, %v1705
      %v1708 = vshrl.u32 %v1655, 16
      %v1710 = vrot.slane %v1708, 4
      %v1711 = vshll.u32 %v1655, 16
      %v1713 = vrot.slane %v1711, 5
      %v1714 = vor.u32 %v1710, %v1713
      %v1715 = vrot.slane %v1714, 4
      %v1717 = vshll.u32 %v1656, 16
      %v1719 = vrot.slane %v1717, 5
      %v1720 = vsel %vm490, %v1715, %v1719
      %v1722 = vshrl.u32 %v1657, 16
      %v1724 = vrot.slane %v1722, 4
      %v1725 = vshll.u32 %v1657, 16
      %v1727 = vrot.slane %v1725, 5
      %v1728 = vor.u32 %v1724, %v1727
      %v1729 = vrot.slane %v1728, 4
      %v1731 = vshll.u32 %v1658, 16
      %v1733 = vrot.slane %v1731, 5
      %v1734 = vsel %vm490, %v1729, %v1733
      %v1736 = vshrl.u32 %v1659, 16
      %v1738 = vrot.slane %v1736, 4
      %v1739 = vshll.u32 %v1659, 16
      %v1741 = vrot.slane %v1739, 5
      %v1742 = vor.u32 %v1738, %v1741
      %v1743 = vrot.slane %v1742, 4
      %v1745 = vshll.u32 %v1660, 16
      %v1747 = vrot.slane %v1745, 5
      %v1748 = vsel %vm490, %v1743, %v1747
      %v1750 = vshrl.u32 %v1661, 16
      %v1752 = vrot.slane %v1750, 4
      %v1753 = vshll.u32 %v1661, 16
      %v1755 = vrot.slane %v1753, 5
      %v1756 = vor.u32 %v1752, %v1755
      %v1757 = vrot.slane %v1756, 4
      %v1759 = vshll.u32 %v1662, 16
      %v1761 = vrot.slane %v1759, 5
      %v1762 = vsel %vm490, %v1757, %v1761
      %v1764 = vshrl.u32 %v1663, 16
      %v1766 = vrot.slane %v1764, 4
      %v1767 = vshll.u32 %v1663, 16
      %v1769 = vrot.slane %v1767, 5
      %v1770 = vor.u32 %v1766, %v1769
      %v1771 = vrot.slane %v1770, 4
      %v1773 = vshll.u32 %v1664, 16
      %v1775 = vrot.slane %v1773, 5
      %v1776 = vsel %vm490, %v1771, %v1775
      %v1777 = vld [vmem:[%s4 + $0x200] sm:$0xf]
      %v1778 = vld [vmem:[%s4 + $0x204] sm:$0xf]
      %v1779 = vld [vmem:[%s4 + $0x208] sm:$0xf]
      %v1780 = vld [vmem:[%s4 + $0x20c] sm:$0xf]
      %v1781 = vld [vmem:[%s4 + $0x210] sm:$0xf]
      %v1782 = vld [vmem:[%s4 + $0x214] sm:$0xf]
      %v1783 = vld [vmem:[%s4 + $0x218] sm:$0xf]
      %v1784 = vld [vmem:[%s4 + $0x21c] sm:$0xf]
      %v1785 = vld [vmem:[%s4 + $0x220] sm:$0xf]
      %v1786 = vld [vmem:[%s4 + $0x224] sm:$0xf]
      %v1787 = vld [vmem:[%s4 + $0x228] sm:$0xf]
      %v1788 = vld [vmem:[%s4 + $0x22c] sm:$0xf]
      %v1789 = vld [vmem:[%s4 + $0x230] sm:$0xf]
      %v1790 = vld [vmem:[%s4 + $0x234] sm:$0xf]
      %v1791 = vld [vmem:[%s4 + $0x238] sm:$0xf]
      %v1792 = vld [vmem:[%s4 + $0x23c] sm:$0xf]
      %v1793 = vunpack.c.l.b16 %v1678
      %v1794 = vunpack.c.l.b16 %v1692
      %v1795 = vunpack.c.l.b16 %v1706
      %v1796 = vunpack.c.l.b16 %v1720
      %v1797 = vunpack.c.l.b16 %v1734
      %v1798 = vunpack.c.l.b16 %v1748
      %v1799 = vunpack.c.l.b16 %v1762
      %v1800 = vunpack.c.l.b16 %v1776
      %v1801 = vpack.c.b16 %v1794, %v1793
      %v1802 = vpack.c.b16 %v1796, %v1795
      %v1803 = vpack.c.b16 %v1798, %v1797
      %v1804 = vpack.c.b16 %v1800, %v1799
      %v1825 = vunpack.c.l.b16 %v1777
      %v1826 = vunpack.c.l.b16 %v1778
      %v1827 = vunpack.c.l.b16 %v1779
      %v1828 = vunpack.c.l.b16 %v1780
      %v1829 = vunpack.c.l.b16 %v1781
      %v1830 = vunpack.c.l.b16 %v1782
      %v1831 = vunpack.c.l.b16 %v1783
      %v1832 = vunpack.c.l.b16 %v1784
      %v1833 = vunpack.c.l.b16 %v1785
      %v1834 = vunpack.c.l.b16 %v1786
      %v1835 = vunpack.c.l.b16 %v1787
      %v1836 = vunpack.c.l.b16 %v1788
      %v1837 = vunpack.c.l.b16 %v1789
      %v1838 = vunpack.c.l.b16 %v1790
      %v1839 = vunpack.c.l.b16 %v1791
      %v1840 = vunpack.c.l.b16 %v1792
      %v1841 = vpack.c.b16 %v1826, %v1825
      %v1842 = vpack.c.b16 %v1828, %v1827
      %v1843 = vpack.c.b16 %v1830, %v1829
      %v1844 = vpack.c.b16 %v1832, %v1831
      %v1845 = vpack.c.b16 %v1834, %v1833
      %v1846 = vpack.c.b16 %v1836, %v1835
      %v1847 = vpack.c.b16 %v1838, %v1837
      %v1848 = vpack.c.b16 %v1840, %v1839
      %1857 = vmatprep.subr.bf16.mxu0 0
      %1858 = vmatpush1.bf16.msra.mxu0 %v1841
      %1859 = vmatprep.subr.bf16.mxu0 0
      %1860 = vmatpush1.bf16.msra.mxu0 %v1842
      %1861 = vmatprep.subr.bf16.mxu0 0
      %1862 = vmatpush1.bf16.msra.mxu0 %v1843
      %1863 = vmatprep.subr.bf16.mxu0 0
      %1864 = vmatpush1.bf16.msra.mxu0 %v1844
      %1865 = vmatprep.subr.bf16.mxu0 0
      %1866 = vmatpush1.bf16.msra.mxu0 %v1845
      %1867 = vmatprep.subr.bf16.mxu0 0
      %1868 = vmatpush1.bf16.msra.mxu0 %v1846
      %1869 = vmatprep.subr.bf16.mxu0 0
      %1870 = vmatpush1.bf16.msra.mxu0 %v1847
      %1871 = vmatprep.subr.bf16.mxu0 0
      %1872 = vmatpush1.bf16.msra.mxu0 %v1848
      %1873 = vmatprep.subr.bf16.mxu0 0
      %1874 = vmatpush1.bf16.msra.mxu0 0
      %1875 = vmatprep.subr.bf16.mxu0 0
      %1876 = vmatpush1.bf16.msra.mxu0 0
      %1877 = vmatprep.subr.bf16.mxu0 0
      %1878 = vmatpush1.bf16.msra.mxu0 0
      %1879 = vmatprep.subr.bf16.mxu0 0
      %1880 = vmatpush1.bf16.msra.mxu0 0
      %1881 = vmatprep.subr.bf16.mxu0 0
      %1882 = vmatpush1.bf16.msra.mxu0 0
      %1883 = vmatprep.subr.bf16.mxu0 0
      %1884 = vmatpush1.bf16.msra.mxu0 0
      %1885 = vmatprep.subr.bf16.mxu0 0
      %1886 = vmatpush1.bf16.msra.mxu0 0
      %1887 = vmatprep.subr.bf16.mxu0 0
      %1888 = vmatpush1.bf16.msra.mxu0 0
      %1889 = vmatprep.mubr.bf16.mxu0 0
      %1890 = vmatmul.mubr.bf16.gmra.mrb[0].mxu0 %v1801
      %v1891 = vpop.f32.mrb[0].mxu0
      %v1892 = vadd.f32 0.0, %v1891
      %v1893 = vpop.f32.mrb[0].mxu0
      %v1894 = vpop.f32.mrb[0].mxu0
      %v1895 = vadd.f32 0.0, %v1894
      %v1896 = vpop.f32.mrb[0].mxu0
      %1897 = vmatprep.mubr.bf16.mxu0 0
      %1898 = vmatmul.mubr.bf16.gmra.mrb[0].mxu0 %v1802
      %v1899 = vpop.f32.mrb[0].mxu0
      %v1900 = vadd.f32 0.0, %v1899
      %v1901 = vpop.f32.mrb[0].mxu0
      %v1902 = vpop.f32.mrb[0].mxu0
      %v1903 = vadd.f32 0.0, %v1902
      %v1904 = vpop.f32.mrb[0].mxu0
      %1905 = vmatprep.mubr.bf16.mxu0 0
      %1906 = vmatmul.mubr.bf16.gmra.mrb[0].mxu0 %v1803
      %v1907 = vpop.f32.mrb[0].mxu0
      %v1908 = vadd.f32 0.0, %v1907
      %v1909 = vpop.f32.mrb[0].mxu0
      %v1910 = vpop.f32.mrb[0].mxu0
      %v1911 = vadd.f32 0.0, %v1910
      %v1912 = vpop.f32.mrb[0].mxu0
      %1913 = vmatprep.mubr.bf16.mxu0 0
      %1914 = vmatmul.mubr.bf16.gmra.mrb[0].mxu0 %v1804
      %v1915 = vpop.f32.mrb[0].mxu0
      %v1916 = vadd.f32 0.0, %v1915
      %v1917 = vpop.f32.mrb[0].mxu0
      %v1918 = vpop.f32.mrb[0].mxu0
      %v1919 = vadd.f32 0.0, %v1918
      %v1920 = vpop.f32.mrb[0].mxu0
      %1921 = vdwg.mxu0
      %v1922 = vadd.f32 %v1641, %v1892
      %v1923 = vadd.f32 %v1642, %v1895
      %v1924 = vadd.f32 %v1643, %v1900
      %v1925 = vadd.f32 %v1644, %v1903
      %v1926 = vadd.f32 %v1645, %v1908
      %v1927 = vadd.f32 %v1646, %v1911
      %v1928 = vadd.f32 %v1647, %v1916
      %v1929 = vadd.f32 %v1648, %v1919
      %v1930 = vld [vmem:[%s5] sm:$0xf]
      %v1931 = vld [vmem:[%s5 + $0x4] sm:$0xf]
      %v1932 = vld [vmem:[%s5 + $0x8] sm:$0xf]
      %v1933 = vld [vmem:[%s5 + $0xc] sm:$0xf]
      %v1934 = vld [vmem:[%s5 + $0x10] sm:$0xf]
      %v1935 = vld [vmem:[%s5 + $0x14] sm:$0xf]
      %v1936 = vld [vmem:[%s5 + $0x18] sm:$0xf]
      %v1937 = vld [vmem:[%s5 + $0x1c] sm:$0xf]
      %v1938 = vld [vmem:[%s5 + $0x20] sm:$0xf]
      %v1939 = vld [vmem:[%s5 + $0x24] sm:$0xf]
      %v1940 = vld [vmem:[%s5 + $0x28] sm:$0xf]
      %v1941 = vld [vmem:[%s5 + $0x2c] sm:$0xf]
      %v1942 = vld [vmem:[%s5 + $0x30] sm:$0xf]
      %v1943 = vld [vmem:[%s5 + $0x34] sm:$0xf]
      %v1944 = vld [vmem:[%s5 + $0x38] sm:$0xf]
      %v1945 = vld [vmem:[%s5 + $0x3c] sm:$0xf]
      %v1962 = vunpack.c.l.b16 %v1930
      %v1963 = vunpack.c.l.b16 %v1931
      %v1964 = vunpack.c.l.b16 %v1932
      %v1965 = vunpack.c.l.b16 %v1933
      %v1966 = vunpack.c.l.b16 %v1934
      %v1967 = vunpack.c.l.b16 %v1935
      %v1968 = vunpack.c.l.b16 %v1936
      %v1969 = vunpack.c.l.b16 %v1937
      %v1970 = vunpack.c.l.b16 %v1938
      %v1971 = vunpack.c.l.b16 %v1939
      %v1972 = vunpack.c.l.b16 %v1940
      %v1973 = vunpack.c.l.b16 %v1941
      %v1974 = vunpack.c.l.b16 %v1942
      %v1975 = vunpack.c.l.b16 %v1943
      %v1976 = vunpack.c.l.b16 %v1944
      %v1977 = vunpack.c.l.b16 %v1945
      %v1978 = vpack.c.b16 %v1963, %v1962
      %v1979 = vpack.c.b16 %v1965, %v1964
      %v1980 = vpack.c.b16 %v1967, %v1966
      %v1981 = vpack.c.b16 %v1969, %v1968
      %v1982 = vpack.c.b16 %v1971, %v1970
      %v1983 = vpack.c.b16 %v1973, %v1972
      %v1984 = vpack.c.b16 %v1975, %v1974
      %v1985 = vpack.c.b16 %v1977, %v1976
      %1994 = vmatprep.subr.bf16.mxu0 0
      %1995 = vmatpush1.bf16.msra.mxu0 %v1978
      %1996 = vmatprep.subr.bf16.mxu0 0
      %1997 = vmatpush1.bf16.msra.mxu0 %v1979
      %1998 = vmatprep.subr.bf16.mxu0 0
      %1999 = vmatpush1.bf16.msra.mxu0 %v1980
      %2000 = vmatprep.subr.bf16.mxu0 0
      %2001 = vmatpush1.bf16.msra.mxu0 %v1981
      %2002 = vmatprep.subr.bf16.mxu0 0
      %2003 = vmatpush1.bf16.msra.mxu0 %v1982
      %2004 = vmatprep.subr.bf16.mxu0 0
      %2005 = vmatpush1.bf16.msra.mxu0 %v1983
      %2006 = vmatprep.subr.bf16.mxu0 0
      %2007 = vmatpush1.bf16.msra.mxu0 %v1984
      %2008 = vmatprep.subr.bf16.mxu0 0
      %2009 = vmatpush1.bf16.msra.mxu0 %v1985
      %2010 = vmatprep.subr.bf16.mxu0 0
      %2011 = vmatpush1.bf16.msra.mxu0 0
      %2012 = vmatprep.subr.bf16.mxu0 0
      %2013 = vmatpush1.bf16.msra.mxu0 0
      %2014 = vmatprep.subr.bf16.mxu0 0
      %2015 = vmatpush1.bf16.msra.mxu0 0
      %2016 = vmatprep.subr.bf16.mxu0 0
      %2017 = vmatpush1.bf16.msra.mxu0 0
      %2018 = vmatprep.subr.bf16.mxu0 0
      %2019 = vmatpush1.bf16.msra.mxu0 0
      %2020 = vmatprep.subr.bf16.mxu0 0
      %2021 = vmatpush1.bf16.msra.mxu0 0
      %2022 = vmatprep.subr.bf16.mxu0 0
      %2023 = vmatpush1.bf16.msra.mxu0 0
      %2024 = vmatprep.subr.bf16.mxu0 0
      %2025 = vmatpush1.bf16.msra.mxu0 0
      %2026 = vmatprep.mubr.bf16.mxu0 0
      %2027 = vmatmul.mubr.bf16.gmra.mrb[0].mxu0 %v1157
      %v2028 = vpop.f32.mrb[0].mxu0
      %v2029 = vadd.f32 0.0, %v2028
      %v2030 = vpop.f32.mrb[0].mxu0
      %v2031 = vpop.f32.mrb[0].mxu0
      %v2032 = vadd.f32 0.0, %v2031
      %v2033 = vpop.f32.mrb[0].mxu0
      %2034 = vmatprep.mubr.bf16.mxu0 0
      %2035 = vmatmul.mubr.bf16.gmra.mrb[0].mxu0 %v1158
      %v2036 = vpop.f32.mrb[0].mxu0
      %v2037 = vadd.f32 0.0, %v2036
      %v2038 = vpop.f32.mrb[0].mxu0
      %v2039 = vpop.f32.mrb[0].mxu0
      %v2040 = vadd.f32 0.0, %v2039
      %v2041 = vpop.f32.mrb[0].mxu0
      %2042 = vmatprep.mubr.bf16.mxu0 0
      %2043 = vmatmul.mubr.bf16.gmra.mrb[0].mxu0 %v1159
      %v2044 = vpop.f32.mrb[0].mxu0
      %v2045 = vadd.f32 0.0, %v2044
      %v2046 = vpop.f32.mrb[0].mxu0
      %v2047 = vpop.f32.mrb[0].mxu0
      %v2048 = vadd.f32 0.0, %v2047
      %v2049 = vpop.f32.mrb[0].mxu0
      %2050 = vmatprep.mubr.bf16.mxu0 0
      %2051 = vmatmul.mubr.bf16.gmra.mrb[0].mxu0 %v1160
      %v2052 = vpop.f32.mrb[0].mxu0
      %v2053 = vadd.f32 0.0, %v2052
      %v2054 = vpop.f32.mrb[0].mxu0
      %v2055 = vpop.f32.mrb[0].mxu0
      %v2056 = vadd.f32 0.0, %v2055
      %v2057 = vpop.f32.mrb[0].mxu0
      %2058 = vdwg.mxu0
      %2059 = vst [vmem:[%s370] sm:$0xff] %v1922
      %2060 = vst [vmem:[%s370 + $0x8] sm:$0xff] %v1923
      %2061 = vst [vmem:[%s370 + $0x10] sm:$0xff] %v1924
      %2062 = vst [vmem:[%s370 + $0x18] sm:$0xff] %v1925
      %2063 = vst [vmem:[%s370 + $0x20] sm:$0xff] %v1926
      %2064 = vst [vmem:[%s370 + $0x28] sm:$0xff] %v1927
      %2065 = vst [vmem:[%s370 + $0x30] sm:$0xff] %v1928
      %2066 = vst [vmem:[%s370 + $0x38] sm:$0xff] %v1929
      %2067 = vst [vmem:[%s376] sm:$0xff] %v2029
      %2068 = vst [vmem:[%s376 + $0x8] sm:$0xff] %v2032
      %2069 = vst [vmem:[%s376 + $0x10] sm:$0xff] %v2037
      %2070 = vst [vmem:[%s376 + $0x18] sm:$0xff] %v2040
      %2071 = vst [vmem:[%s376 + $0x20] sm:$0xff] %v2045
      %2072 = vst [vmem:[%s376 + $0x28] sm:$0xff] %v2048
      %2073 = vst [vmem:[%s376 + $0x30] sm:$0xff] %v2053
      %2074 = vst [vmem:[%s376 + $0x38] sm:$0xff] %v2056
      %v2075 = vld [vmem:[%s8] sm:$0x1]
      %v2076 = vadd.f32 %v1922, %v1923
      %v2077 = vadd.f32 %v2076, %v1924
      %v2078 = vadd.f32 %v2077, %v1925
      %v2079 = vadd.f32 %v2078, %v1926
      %v2080 = vadd.f32 %v2079, %v1927
      %v2081 = vadd.f32 %v2080, %v1928
      %v2082 = vadd.f32 %v2081, %v1929
      %v2083 = vrot.slane %v2082, 4
      %v2084 = vadd.f32 %v2082, %v2083
      %v2085 = vrot.slane %v2084, 2
      %v2086 = vadd.f32 %v2084, %v2085
      %v2087 = vrot.slane %v2086, 1
      %v2088 = vadd.f32 %v2086, %v2087
      %v2089 = vadd.f32 %v2075, %v2088
      %2090 = vst [vmem:[%s8] sm:$0x1] %v2089
      %v2091 = vld [vmem:[%s8 + $0x1] sm:$0x1]
      %v2092 = vmul.f32 %v1922, %v1922
      %v2093 = vmul.f32 %v1923, %v1923
      %v2094 = vmul.f32 %v1924, %v1924
      %v2095 = vmul.f32 %v1925, %v1925
      %v2096 = vmul.f32 %v1926, %v1926
      %v2097 = vmul.f32 %v1927, %v1927
      %v2098 = vmul.f32 %v1928, %v1928
      %v2099 = vmul.f32 %v1929, %v1929
      %v2100 = vadd.f32 %v2092, %v2093
      %v2101 = vadd.f32 %v2100, %v2094
      %v2102 = vadd.f32 %v2101, %v2095
      %v2103 = vadd.f32 %v2102, %v2096
      %v2104 = vadd.f32 %v2103, %v2097
      %v2105 = vadd.f32 %v2104, %v2098
      %v2106 = vadd.f32 %v2105, %v2099
      %v2107 = vrot.slane %v2106, 4
      %v2108 = vadd.f32 %v2106, %v2107
      %v2109 = vrot.slane %v2108, 2
      %v2110 = vadd.f32 %v2108, %v2109
      %v2111 = vrot.slane %v2110, 1
      %v2112 = vadd.f32 %v2110, %v2111
      %v2113 = vadd.f32 %v2091, %v2112
      %2114 = vst [vmem:[%s8 + $0x1] sm:$0x1] %v2113
      %v2115 = vld [vmem:[%s8 + $0x2] sm:$0x1]
      %v2116 = vadd.f32 %v2029, %v2032
      %v2117 = vadd.f32 %v2116, %v2037
      %v2118 = vadd.f32 %v2117, %v2040
      %v2119 = vadd.f32 %v2118, %v2045
      %v2120 = vadd.f32 %v2119, %v2048
      %v2121 = vadd.f32 %v2120, %v2053
      %v2122 = vadd.f32 %v2121, %v2056
      %v2123 = vrot.slane %v2122, 4
      %v2124 = vadd.f32 %v2122, %v2123
      %v2125 = vrot.slane %v2124, 2
      %v2126 = vadd.f32 %v2124, %v2125
      %v2127 = vrot.slane %v2126, 1
      %v2128 = vadd.f32 %v2126, %v2127
      %v2129 = vadd.f32 %v2115, %v2128
      %2130 = vst [vmem:[%s8 + $0x2] sm:$0x1] %v2129
      %v2131 = vld [vmem:[%s8 + $0x3] sm:$0x1]
      %v2132 = vmul.f32 %v2029, %v2029
      %v2133 = vmul.f32 %v2032, %v2032
      %v2134 = vmul.f32 %v2037, %v2037
      %v2135 = vmul.f32 %v2040, %v2040
      %v2136 = vmul.f32 %v2045, %v2045
      %v2137 = vmul.f32 %v2048, %v2048
      %v2138 = vmul.f32 %v2053, %v2053
      %v2139 = vmul.f32 %v2056, %v2056
      %v2140 = vadd.f32 %v2132, %v2133
      %v2141 = vadd.f32 %v2140, %v2134
      %v2142 = vadd.f32 %v2141, %v2135
      %v2143 = vadd.f32 %v2142, %v2136
      %v2144 = vadd.f32 %v2143, %v2137
      %v2145 = vadd.f32 %v2144, %v2138
      %v2146 = vadd.f32 %v2145, %v2139
      %v2147 = vrot.slane %v2146, 4
      %v2148 = vadd.f32 %v2146, %v2147
      %v2149 = vrot.slane %v2148, 2
      %v2150 = vadd.f32 %v2148, %v2149
      %v2151 = vrot.slane %v2150, 1
      %v2152 = vadd.f32 %v2150, %v2151
      %v2153 = vadd.f32 %v2131, %v2152
      %2154 = vst [vmem:[%s8 + $0x3] sm:$0x1] %v2153
      %p2155 = scmp.eq.s32.totalorder %s20, 1
      // Predicated region
      $region49: #{restnet_down_block.3} parent=43 // pred_check
        %p2156 = pneg %p2155
      $region50: #{restnet_down_block.3} parent=43 // pred_check_branch
        %2158 = sbr.rel (%p2156) target = $region52
      $region51: #{restnet_down_block.3} parent=43 // pred_region
        %v2159 = vld [vmem:[%s8] sm:$0x1]
        %v2160 = vld [vmem:[%s8 + $0x1] sm:$0x1]
        %v2161 = vld [vmem:[%s8 + $0x2] sm:$0x1]
        %v2162 = vld [vmem:[%s8 + $0x3] sm:$0x1]
        %v2163 = vmul.f32 %v2159, 0.0078125
        %v2164 = vmul.f32 %v2160, 0.0078125
        %v2165 = vmul.f32 %v2163, %v2163
        %v2166 = vsub.f32 %v2164, %v2165
        %v2167 = vmax.f32 %v2166, 0.0
        %v2168 = vmul.f32 %v2161, 0.0078125
        %v2169 = vmul.f32 %v2162, 0.0078125
        %v2170 = vmul.f32 %v2168, %v2168
        %v2171 = vsub.f32 %v2169, %v2170
        %v2172 = vmax.f32 %v2171, 0.0
        %2173 = vst [vmem:[%s8] sm:$0x1] %v2163
        %v2174 = vadd.f32 %v2167, 1e-05
        %v2175 = vrsqrt.pop %v2174
        %2176 = vst [vmem:[%s8 + $0x1] sm:$0x1] %v2175
        %2177 = vst [vmem:[%s8 + $0x2] sm:$0x1] %v2168
        %v2178 = vadd.f32 %v2172, 1e-05
        %v2179 = vrsqrt.pop %v2178
        %2180 = vst [vmem:[%s8 + $0x3] sm:$0x1] %v2179
      $region52: #{restnet_down_block.3} parent=43 // pred_fallthru
        _
      %s2181 = smul.u32 8, %s20
      %p2182 = scmp.lt.s32.totalorder %s2181, 15
      %s2183 = scalar_select %p2182, %s2181, 15
      %s2184 = smul.addr %s2183, 8
      %s2185 = scalar_lea.vmem %s6, %s2184
      %s2186 = smul.u32 8, %s20
      %p2187 = scmp.lt.s32.totalorder %s2186, 15
      %s2188 = scalar_select %p2187, %s2186, 15
      %s2189 = smul.addr %s2188, 8
      %s2190 = scalar_lea.vmem %s7, %s2189
      // Predicated region
      $region53: #{restnet_down_block.3} parent=43 // pred_check
        %p2191 = pneg %p184
      $region54: #{restnet_down_block.3} parent=43 // pred_check_branch
        %2193 = sbr.rel (%p2191) target = $region56
      $region55: #{restnet_down_block.3} parent=43 // pred_region
        %s2194 = smul.u32 8, %s20
      $region56: #{restnet_down_block.3} parent=43 // pred_fallthru
        _
      // Predicated region
      $region57: #{restnet_down_block.3} parent=43 // pred_check
        %p2195 = pneg %p210
      $region58: #{restnet_down_block.3} parent=43 // pred_check_branch
        %2197 = sbr.rel (%p2195) target = $region60
      $region59: #{restnet_down_block.3} parent=43 // pred_region
        %s2198 = smul.u32 8, %s20
      $region60: #{restnet_down_block.3} parent=43 // pred_fallthru
        _
      // Predicated region
      $region61: #{restnet_down_block.3} parent=43 // pred_check
        %p2199 = pneg %p231
      $region62: #{restnet_down_block.3} parent=43 // pred_check_branch
        %2201 = sbr.rel (%p2199) target = $region64
      $region63: #{restnet_down_block.3} parent=43 // pred_region
        _
      $region64: #{restnet_down_block.3} parent=43 // pred_fallthru
        _
      // Predicated region
      $region65: #{restnet_down_block.3} parent=43 // pred_check
        %p2202 = pneg %p231
      $region66: #{restnet_down_block.3} parent=43 // pred_check_branch
        %2204 = sbr.rel (%p2202) target = $region68
      $region67: #{restnet_down_block.3} parent=43 // pred_region
        _
      $region68: #{restnet_down_block.3} parent=43 // pred_fallthru
        _
    $region44: #{restnet_down_block.3} parent=5 // pred_fallthru
      _
    %p2205 = scmp.le.s32.totalorder 2, %s15
    // Predicated region
    $region69: #{restnet_down_block.3} parent=5 // pred_check
      %p2206 = pneg %p2205
    $region70: #{restnet_down_block.3} parent=5 // pred_check_branch
      %2208 = sbr.rel (%p2206) target = $region72
    $region71: #{restnet_down_block.3} parent=5 // pred_region
      %s2209 = ssub.s32 %s15, 2
      // Predicated region
      $region73: #{restnet_down_block.3} parent=71 // pred_check
        %p2210 = pneg %p190
      $region74: #{restnet_down_block.3} parent=71 // pred_check_branch
        %2212 = sbr.rel (%p2210) target = $region76
      $region75: #{restnet_down_block.3} parent=71 // pred_region
        %s2213 = smul.u32 8, %s21
        %p2214 = scmp.lt.s32.totalorder %s2213, 15
        %s2215 = scalar_select %p2214, %s2213, 15
        %s2216 = smul.addr %s2215, 8
        %s2217 = scalar_lea.vmem %s6, %s2216
      $region76: #{restnet_down_block.3} parent=71 // pred_fallthru
        _
      // Predicated region
      $region77: #{restnet_down_block.3} parent=71 // pred_check
        %p2218 = pneg %p216
      $region78: #{restnet_down_block.3} parent=71 // pred_check_branch
        %2220 = sbr.rel (%p2218) target = $region80
      $region79: #{restnet_down_block.3} parent=71 // pred_region
        %s2221 = smul.u32 8, %s21
        %p2222 = scmp.lt.s32.totalorder %s2221, 15
        %s2223 = scalar_select %p2222, %s2221, 15
        %s2224 = smul.addr %s2223, 8
        %s2225 = scalar_lea.vmem %s7, %s2224
      $region80: #{restnet_down_block.3} parent=71 // pred_fallthru
        _
    $region72: #{restnet_down_block.3} parent=5 // pred_fallthru
      _
  $region6: #{restnet_down_block.3} parent=0 // loop_footer
    %s19 = sadd.s32 1, %s15
  $region7: #{restnet_down_block.3} parent=0 // loop_footer_branch
    %14 = sbr.rel target = $region3
  $region8: #{restnet_down_block.3} parent=0 // loop_exit
    _

// kernel: restnet_down_block.4
$region0: #{restnet_down_block.4}
  #allocation0 [shape = 'u32[]', space=smem, size = 0x4, offset = 0x4, fixed_abs, tag = 'smem constant byte address 0x4 - core index']
  #allocation1 [shape = 'u32[144,128]{1,0:T(1,128)}', space=vmem, size = 0x12000, scoped, tag = 'internal scratch']
  #allocation2 [shape = 'bf16[1,10,10,128]{3,2,1,0:T(8,128)(2,1)}', space=vmem, size = 0xa000, scoped, tag = 'scratch operand']
  %s0 = inlined_call_operand.vmem [shape: f32[128,128], index: 0, kind: input, shape index: {}]
  %s1 = inlined_call_operand.vmem [shape: f32[8,128], index: 1, kind: input, shape index: {}]
  %s2 = inlined_call_operand.vmem [shape: f32[1,128], index: 2, kind: input, shape index: {}]
  %s3 = inlined_call_operand.vmem [shape: f32[1,128], index: 3, kind: input, shape index: {}]
  %s4 = inlined_call_operand.vmem [shape: bf16[1152,128], index: 4, kind: input, shape index: {}]
  %s5 = inlined_call_operand.vmem [shape: f32[128,128], index: 5, kind: output, shape index: {0}]
  %s6 = inlined_call_operand.vmem [shape: f32[8,128], index: 6, kind: output, shape index: {1}]
  %7 = xla_tuple %s5, %s6
  %s8 = sld [smem:[#allocation0]]
  $region69: #{restnet_down_block.4} parent=0
    _
  %s10 = ssub.s32 1, %s8
  %s11 = scalar_select 0, %s10, %s8
  loop: start=0, step=1, limit=4
  $region2: #{restnet_down_block.4} parent=0 // loop_pre_header
    _
  $region3: #{restnet_down_block.4} parent=0 // loop_header
    %s13 = sphi 0, %s17
    %p14 = scmp.ge.s32.totalorder %s13, 4
    %s23 = sphi 0, %s25
    %s26 = sphi 0, %s23
    %s27 = sphi 0, %s26
    %s43 = sphi 0, %s27
    %s47 = sphi 0, %s47
    %s49 = sphi 0, %s47
    %s50 = sphi 0, %s49
    %s64 = sphi 0, %s50
    %s68 = sphi 0, %s68
    %s70 = sphi 0, %s68
    %s71 = sphi 0, %s70
    %s85 = sphi 0, %s71
    %s89 = sphi 0, %s89
    %s91 = sphi 0, %s89
    %s92 = sphi 0, %s91
    %s106 = sphi 0, %s92
    %s110 = sphi 0, %s110
    %s112 = sphi 0, %s110
    %s113 = sphi 0, %s112
    %s127 = sphi 0, %s113
    %s133 = sphi 0, %s135
    %s136 = sphi 0, %s133
    %s137 = sphi 0, %s136
    %s153 = sphi 0, %s137
    %s157 = sphi 0, %s157
    %s159 = sphi 0, %s157
    %s160 = sphi 0, %s159
    %s174 = sphi 0, %s160
  $region4: #{restnet_down_block.4} parent=0 // loop_header_branch
    %16 = sbr.rel (%p14) target = $region8
  $region5: #{restnet_down_block.4} parent=0 // loop_body
    %s18 = ssub.s32 %s13, 1
    %s19 = ssub.s32 %s13, 2
    %s20 = sadd.s32 %s13, 1
    %s21 = ssub.s32 %s13, %s20
    %p22 = scmp.eq.s32.totalorder %s21, 0
    %s24 = sadd.s32 %s23, 1
    %s25 = scalar_select %p22, %s23, %s24
    %p28 = pneg %p22
    %p29 = scmp.eq.s32.totalorder %s13, 1
    %p30 = por %p28, %p29
    %p31 = scmp.ne.s32.totalorder %s23, %s26
    %p32 = scmp.eq.s32.totalorder %s13, 0
    %p33 = por %p31, %p32
    %p34 = scmp.ne.s32.totalorder %s23, %s26
    %p35 = scmp.eq.s32.totalorder %s18, 1
    %p36 = por %p34, %p35
    %p37 = scmp.ne.s32.totalorder %s26, %s27
    %p38 = scmp.eq.s32.totalorder %s18, 0
    %p39 = por %p37, %p38
    %p40 = scmp.ne.s32.totalorder %s26, %s27
    %p41 = scmp.eq.s32.totalorder %s19, 1
    %p42 = por %p40, %p41
    %p44 = scmp.ne.s32.totalorder %s27, %s43
    %p45 = scmp.eq.s32.totalorder %s19, 0
    %p46 = por %p44, %p45
    %s48 = sadd.s32 %s47, 1
    %p51 = scmp.eq.s32.totalorder %s13, 1
    %p52 = scmp.ne.s32.totalorder %s47, %s49
    %p53 = scmp.eq.s32.totalorder %s13, 0
    %p54 = por %p52, %p53
    %p55 = scmp.ne.s32.totalorder %s47, %s49
    %p56 = scmp.eq.s32.totalorder %s18, 1
    %p57 = por %p55, %p56
    %p58 = scmp.ne.s32.totalorder %s49, %s50
    %p59 = scmp.eq.s32.totalorder %s18, 0
    %p60 = por %p58, %p59
    %p61 = scmp.ne.s32.totalorder %s49, %s50
    %p62 = scmp.eq.s32.totalorder %s19, 1
    %p63 = por %p61, %p62
    %p65 = scmp.ne.s32.totalorder %s50, %s64
    %p66 = scmp.eq.s32.totalorder %s19, 0
    %p67 = por %p65, %p66
    %s69 = sadd.s32 %s68, 1
    %p72 = scmp.eq.s32.totalorder %s13, 1
    %p73 = scmp.ne.s32.totalorder %s68, %s70
    %p74 = scmp.eq.s32.totalorder %s13, 0
    %p75 = por %p73, %p74
    %p76 = scmp.ne.s32.totalorder %s68, %s70
    %p77 = scmp.eq.s32.totalorder %s18, 1
    %p78 = por %p76, %p77
    %p79 = scmp.ne.s32.totalorder %s70, %s71
    %p80 = scmp.eq.s32.totalorder %s18, 0
    %p81 = por %p79, %p80
    %p82 = scmp.ne.s32.totalorder %s70, %s71
    %p83 = scmp.eq.s32.totalorder %s19, 1
    %p84 = por %p82, %p83
    %p86 = scmp.ne.s32.totalorder %s71, %s85
    %p87 = scmp.eq.s32.totalorder %s19, 0
    %p88 = por %p86, %p87
    %s90 = sadd.s32 %s89, 1
    %p93 = scmp.eq.s32.totalorder %s13, 1
    %p94 = scmp.ne.s32.totalorder %s89, %s91
    %p95 = scmp.eq.s32.totalorder %s13, 0
    %p96 = por %p94, %p95
    %p97 = scmp.ne.s32.totalorder %s89, %s91
    %p98 = scmp.eq.s32.totalorder %s18, 1
    %p99 = por %p97, %p98
    %p100 = scmp.ne.s32.totalorder %s91, %s92
    %p101 = scmp.eq.s32.totalorder %s18, 0
    %p102 = por %p100, %p101
    %p103 = scmp.ne.s32.totalorder %s91, %s92
    %p104 = scmp.eq.s32.totalorder %s19, 1
    %p105 = por %p103, %p104
    %p107 = scmp.ne.s32.totalorder %s92, %s106
    %p108 = scmp.eq.s32.totalorder %s19, 0
    %p109 = por %p107, %p108
    %s111 = sadd.s32 %s110, 1
    %p114 = scmp.eq.s32.totalorder %s13, 1
    %p115 = scmp.ne.s32.totalorder %s110, %s112
    %p116 = scmp.eq.s32.totalorder %s13, 0
    %p117 = por %p115, %p116
    %p118 = scmp.ne.s32.totalorder %s110, %s112
    %p119 = scmp.eq.s32.totalorder %s18, 1
    %p120 = por %p118, %p119
    %p121 = scmp.ne.s32.totalorder %s112, %s113
    %p122 = scmp.eq.s32.totalorder %s18, 0
    %p123 = por %p121, %p122
    %p124 = scmp.ne.s32.totalorder %s112, %s113
    %p125 = scmp.eq.s32.totalorder %s19, 1
    %p126 = por %p124, %p125
    %p128 = scmp.ne.s32.totalorder %s113, %s127
    %p129 = scmp.eq.s32.totalorder %s19, 0
    %p130 = por %p128, %p129
    %s131 = ssub.s32 %s13, %s20
    %p132 = scmp.eq.s32.totalorder %s131, 0
    %s134 = sadd.s32 %s133, 1
    %s135 = scalar_select %p132, %s133, %s134
    %p138 = pneg %p132
    %p139 = scmp.eq.s32.totalorder %s13, 1
    %p140 = por %p138, %p139
    %p141 = scmp.ne.s32.totalorder %s133, %s136
    %p142 = scmp.eq.s32.totalorder %s13, 0
    %p143 = por %p141, %p142
    %p144 = scmp.ne.s32.totalorder %s133, %s136
    %p145 = scmp.eq.s32.totalorder %s18, 1
    %p146 = por %p144, %p145
    %p147 = scmp.ne.s32.totalorder %s136, %s137
    %p148 = scmp.eq.s32.totalorder %s18, 0
    %p149 = por %p147, %p148
    %p150 = scmp.ne.s32.totalorder %s136, %s137
    %p151 = scmp.eq.s32.totalorder %s19, 1
    %p152 = por %p150, %p151
    %p154 = scmp.ne.s32.totalorder %s137, %s153
    %p155 = scmp.eq.s32.totalorder %s19, 0
    %p156 = por %p154, %p155
    %s158 = sadd.s32 %s157, 1
    %p161 = scmp.eq.s32.totalorder %s13, 1
    %p162 = scmp.ne.s32.totalorder %s157, %s159
    %p163 = scmp.eq.s32.totalorder %s13, 0
    %p164 = por %p162, %p163
    %p165 = scmp.ne.s32.totalorder %s157, %s159
    %p166 = scmp.eq.s32.totalorder %s18, 1
    %p167 = por %p165, %p166
    %p168 = scmp.ne.s32.totalorder %s159, %s160
    %p169 = scmp.eq.s32.totalorder %s18, 0
    %p170 = por %p168, %p169
    %p171 = scmp.ne.s32.totalorder %s159, %s160
    %p172 = scmp.eq.s32.totalorder %s19, 1
    %p173 = por %p171, %p172
    %p175 = scmp.ne.s32.totalorder %s160, %s174
    %p176 = scmp.eq.s32.totalorder %s19, 0
    %p177 = por %p175, %p176
    %p178 = scmp.le.s32.totalorder 1, %s13
    %p179 = scmp.lt.s32.totalorder %s13, 3
    %p180 = pnand %p178, %p179
    %p181 = pneg %p180
    // Predicated region
    $region9: #{restnet_down_block.4} parent=5 // pred_check
      _
    $region10: #{restnet_down_block.4} parent=5 // pred_check_branch
      %183 = sbr.rel (%p180) target = $region12
    $region11: #{restnet_down_block.4} parent=5 // pred_region
      %s184 = ssub.s32 %s13, 1
      // Predicated region
      $region13: #{restnet_down_block.4} parent=11 // pred_check
        %p185 = pneg %p60
      $region14: #{restnet_down_block.4} parent=11 // pred_check_branch
        %187 = sbr.rel (%p185) target = $region16
      $region15: #{restnet_down_block.4} parent=11 // pred_region
        _
      $region16: #{restnet_down_block.4} parent=11 // pred_fallthru
        _
      // Predicated region
      $region17: #{restnet_down_block.4} parent=11 // pred_check
        %p188 = pneg %p81
      $region18: #{restnet_down_block.4} parent=11 // pred_check_branch
        %190 = sbr.rel (%p188) target = $region20
      $region19: #{restnet_down_block.4} parent=11 // pred_region
        _
      $region20: #{restnet_down_block.4} parent=11 // pred_fallthru
        _
      // Predicated region
      $region21: #{restnet_down_block.4} parent=11 // pred_check
        %p191 = pneg %p102
      $region22: #{restnet_down_block.4} parent=11 // pred_check_branch
        %193 = sbr.rel (%p191) target = $region24
      $region23: #{restnet_down_block.4} parent=11 // pred_region
        _
      $region24: #{restnet_down_block.4} parent=11 // pred_fallthru
        _
      // Predicated region
      $region25: #{restnet_down_block.4} parent=11 // pred_check
        %p194 = pneg %p123
      $region26: #{restnet_down_block.4} parent=11 // pred_check_branch
        %196 = sbr.rel (%p194) target = $region28
      $region27: #{restnet_down_block.4} parent=11 // pred_region
        _
      $region28: #{restnet_down_block.4} parent=11 // pred_fallthru
        _
    $region12: #{restnet_down_block.4} parent=5 // pred_fallthru
      _
    %p197 = scmp.lt.s32.totalorder %s13, 2
    // Predicated region
    $region29: #{restnet_down_block.4} parent=5 // pred_check
      %p198 = pneg %p197
    $region30: #{restnet_down_block.4} parent=5 // pred_check_branch
      %200 = sbr.rel (%p198) target = $region32
    $region31: #{restnet_down_block.4} parent=5 // pred_region
      // Predicated region
      $region33: #{restnet_down_block.4} parent=31 // pred_check
        %p201 = pneg %p33
      $region34: #{restnet_down_block.4} parent=31 // pred_check_branch
        %203 = sbr.rel (%p201) target = $region36
      $region35: #{restnet_down_block.4} parent=31 // pred_region
        %s204 = smul.u32 8, %s13
        %p205 = scmp.lt.s32.totalorder %s204, 15
        %s206 = scalar_select %p205, %s204, 15
        %s207 = smul.addr %s206, 8
        %s208 = scalar_lea.vmem %s0, %s207
        %s209 = smul.u32 8, %s13
      $region36: #{restnet_down_block.4} parent=31 // pred_fallthru
        _
    $region32: #{restnet_down_block.4} parent=5 // pred_fallthru
      _
    %p210 = scmp.le.s32.totalorder 1, %s13
    %p211 = scmp.lt.s32.totalorder %s13, 3
    %p212 = pnand %p210, %p211
    %p213 = pneg %p212
    // Predicated region
    $region37: #{restnet_down_block.4} parent=5 // pred_check
      _
    $region38: #{restnet_down_block.4} parent=5 // pred_check_branch
      %215 = sbr.rel (%p212) target = $region40
    $region39: #{restnet_down_block.4} parent=5 // pred_region
      %s216 = ssub.s32 %s13, 1
      %s217 = smul.u32 8, %s18
      %p218 = scmp.lt.s32.totalorder %s217, 15
      %s219 = scalar_select %p218, %s217, 15
      %s220 = smul.addr %s219, 8
      %s221 = scalar_lea.vmem %s0, %s220
      %p222 = pneg %p39
      %p223 = pneg %p36
      %p224 = pneg %p60
      %p225 = pneg %p57
      %p226 = pneg %p81
      %p227 = pneg %p78
      %p228 = pneg %p102
      %p229 = pneg %p99
      %p230 = pneg %p123
      %p231 = pneg %p120
      %p232 = pneg %p149
      %p233 = pneg %p146
      %s234 = smul.u32 8, %s18
      %p235 = scmp.lt.s32.totalorder %s234, 15
      %s236 = scalar_select %p235, %s234, 15
      %s237 = smul.addr %s236, 8
      %s238 = scalar_lea.vmem %s5, %s237
      %p239 = pneg %p170
      %p240 = pneg %p167
      %s241 = smul.u32 8, %s18
      %p242 = scmp.lt.s32.totalorder %s241, 15
      %s243 = scalar_select %p242, %s241, 15
      %s244 = smul.addr %s243, 8
      %s245 = scalar_lea.vmem %s0, %s244
      %s246 = smul.u32 8, %s18
      %s247 = smul.u32 8, %s18
      %p248 = scmp.lt.s32.totalorder %s247, 15
      %s249 = scalar_select %p248, %s247, 15
      %s250 = smul.addr %s249, 8
      %s251 = scalar_lea.vmem %s5, %s250
      %s252 = smul.u32 8, %s18
      %p254 = scmp.eq.s32.totalorder %s18, 0
      // Predicated region
      $region41: #{restnet_down_block.4} parent=39 // pred_check
        %p255 = pneg %p254
      $region42: #{restnet_down_block.4} parent=39 // pred_check_branch
        %257 = sbr.rel (%p255) target = $region44
      $region43: #{restnet_down_block.4} parent=39 // pred_region
        %258 = vst [vmem:[%s6] sm:$0xff] 0.0
        %259 = vst [vmem:[#allocation2] sm:$0xf] 0
        %260 = vst [vmem:[#allocation2 + $0x4] sm:$0x1] 0
        %s261 = scalar_lea.vmem [#allocation2], 72
        %262 = vst [vmem:[%s261] sm:$0xf] 0
        %263 = vst [vmem:[%s261 + $0x4] sm:$0x1] 0
        %vm264 = vcmask 1040384
        %vm265 = vsmask.f32 256
        %vm266 = vmand %vm264, %vm265
        %v267 = vld [vmem:[#allocation2] sm:$0x1]
        %v268 = vsel %vm266, 0, %v267
        %269 = vst [vmem:[#allocation2] sm:$0x1] %v268
        %v270 = vld [vmem:[#allocation2 + $0x8] sm:$0x1]
        %v271 = vsel %vm266, 0, %v270
        %272 = vst [vmem:[#allocation2 + $0x8] sm:$0x1] %v271
        %v273 = vld [vmem:[#allocation2 + $0x10] sm:$0x1]
        %v274 = vsel %vm266, 0, %v273
        %275 = vst [vmem:[#allocation2 + $0x10] sm:$0x1] %v274
        %v276 = vld [vmem:[#allocation2 + $0x18] sm:$0x1]
        %v277 = vsel %vm266, 0, %v276
        %278 = vst [vmem:[#allocation2 + $0x18] sm:$0x1] %v277
        %v279 = vld [vmem:[#allocation2 + $0x20] sm:$0x1]
        %v280 = vsel %vm266, 0, %v279
        %281 = vst [vmem:[#allocation2 + $0x20] sm:$0x1] %v280
        %v282 = vld [vmem:[#allocation2 + $0x28] sm:$0x1]
        %v283 = vsel %vm266, 0, %v282
        %284 = vst [vmem:[#allocation2 + $0x28] sm:$0x1] %v283
        %v285 = vld [vmem:[#allocation2 + $0x30] sm:$0x1]
        %v286 = vsel %vm266, 0, %v285
        %287 = vst [vmem:[#allocation2 + $0x30] sm:$0x1] %v286
        %v288 = vld [vmem:[#allocation2 + $0x38] sm:$0x1]
        %v289 = vsel %vm266, 0, %v288
        %290 = vst [vmem:[#allocation2 + $0x38] sm:$0x1] %v289
        %v291 = vld [vmem:[#allocation2 + $0x40] sm:$0x1]
        %v292 = vsel %vm266, 0, %v291
        %293 = vst [vmem:[#allocation2 + $0x40] sm:$0x1] %v292
        %v294 = vld [vmem:[#allocation2 + $0x48] sm:$0x1]
        %v295 = vsel %vm266, 0, %v294
        %296 = vst [vmem:[#allocation2 + $0x48] sm:$0x1] %v295
        %vm297 = vsmask.f32 7938
        %vm298 = vmand %vm264, %vm297
        %v299 = vld [vmem:[#allocation2 + $0x4] sm:$0x1]
        %v300 = vsel %vm298, 0, %v299
        %301 = vst [vmem:[#allocation2 + $0x4] sm:$0x1] %v300
        %v302 = vld [vmem:[#allocation2 + $0xc] sm:$0x1]
        %v303 = vsel %vm298, 0, %v302
        %304 = vst [vmem:[#allocation2 + $0xc] sm:$0x1] %v303
        %v305 = vld [vmem:[#allocation2 + $0x14] sm:$0x1]
        %v306 = vsel %vm298, 0, %v305
        %307 = vst [vmem:[#allocation2 + $0x14] sm:$0x1] %v306
        %v308 = vld [vmem:[#allocation2 + $0x1c] sm:$0x1]
        %v309 = vsel %vm298, 0, %v308
        %310 = vst [vmem:[#allocation2 + $0x1c] sm:$0x1] %v309
        %v311 = vld [vmem:[#allocation2 + $0x24] sm:$0x1]
        %v312 = vsel %vm298, 0, %v311
        %313 = vst [vmem:[#allocation2 + $0x24] sm:$0x1] %v312
        %v314 = vld [vmem:[#allocation2 + $0x2c] sm:$0x1]
        %v315 = vsel %vm298, 0, %v314
        %316 = vst [vmem:[#allocation2 + $0x2c] sm:$0x1] %v315
        %v317 = vld [vmem:[#allocation2 + $0x34] sm:$0x1]
        %v318 = vsel %vm298, 0, %v317
        %319 = vst [vmem:[#allocation2 + $0x34] sm:$0x1] %v318
        %v320 = vld [vmem:[#allocation2 + $0x3c] sm:$0x1]
        %v321 = vsel %vm298, 0, %v320
        %322 = vst [vmem:[#allocation2 + $0x3c] sm:$0x1] %v321
        %v323 = vld [vmem:[#allocation2 + $0x44] sm:$0x1]
        %v324 = vsel %vm298, 0, %v323
        %325 = vst [vmem:[#allocation2 + $0x44] sm:$0x1] %v324
        %v326 = vld [vmem:[#allocation2 + $0x4c] sm:$0x1]
        %v327 = vsel %vm298, 0, %v326
        %328 = vst [vmem:[#allocation2 + $0x4c] sm:$0x1] %v327
      $region44: #{restnet_down_block.4} parent=39 // pred_fallthru
        _
      %v329 = vld [vmem:[%s1] sm:$0x1]
      %v330 = vld [vmem:[%s1 + $0x1] sm:$0x1]
      %v331 = vld [vmem:[%s245] sm:$0xff]
      %v332 = vld [vmem:[%s245 + $0x8] sm:$0xff]
      %v333 = vld [vmem:[%s245 + $0x10] sm:$0xff]
      %v334 = vld [vmem:[%s245 + $0x18] sm:$0xff]
      %v335 = vld [vmem:[%s245 + $0x20] sm:$0xff]
      %v336 = vld [vmem:[%s245 + $0x28] sm:$0xff]
      %v337 = vld [vmem:[%s245 + $0x30] sm:$0xff]
      %v338 = vld [vmem:[%s245 + $0x38] sm:$0xff]
      %v339 = vlaneseq
      %v340 = vshrl.u32 %v339, 7
      %v341 = vsub.s32 0, %v340
      %v342 = vrot.slane %v329, %v341
      %v343 = vsub.f32 %v331, %v342
      %v344 = vsub.f32 %v332, %v342
      %v345 = vsub.f32 %v333, %v342
      %v346 = vsub.f32 %v334, %v342
      %v347 = vsub.f32 %v335, %v342
      %v348 = vsub.f32 %v336, %v342
      %v349 = vsub.f32 %v337, %v342
      %v350 = vsub.f32 %v338, %v342
      %v351 = vlaneseq
      %v352 = vshrl.u32 %v351, 7
      %v353 = vsub.s32 0, %v352
      %v354 = vrot.slane %v330, %v353
      %v355 = vmul.f32 %v343, %v354
      %v356 = vmul.f32 %v344, %v354
      %v357 = vmul.f32 %v345, %v354
      %v358 = vmul.f32 %v346, %v354
      %v359 = vmul.f32 %v347, %v354
      %v360 = vmul.f32 %v348, %v354
      %v361 = vmul.f32 %v349, %v354
      %v362 = vmul.f32 %v350, %v354
      %v363 = vld [vmem:[%s2] sm:$0x1]
      %v365 = vlaneseq
      %v366 = vshrl.u32 %v365, 7
      %v367 = vsub.s32 0, %v366
      %v368 = vrot.slane %v363, %v367
      %v370 = vmul.f32 %v355, %v368
      %v371 = vmul.f32 %v356, %v368
      %v372 = vmul.f32 %v357, %v368
      %v373 = vmul.f32 %v358, %v368
      %v374 = vmul.f32 %v359, %v368
      %v375 = vmul.f32 %v360, %v368
      %v376 = vmul.f32 %v361, %v368
      %v377 = vmul.f32 %v362, %v368
      %v378 = vld [vmem:[%s3] sm:$0x1]
      %v380 = vlaneseq
      %v381 = vshrl.u32 %v380, 7
      %v382 = vsub.s32 0, %v381
      %v383 = vrot.slane %v378, %v382
      %v385 = vadd.f32 %v370, %v383
      %v386 = vadd.f32 %v371, %v383
      %v387 = vadd.f32 %v372, %v383
      %v388 = vadd.f32 %v373, %v383
      %v389 = vadd.f32 %v374, %v383
      %v390 = vadd.f32 %v375, %v383
      %v391 = vadd.f32 %v376, %v383
      %v392 = vadd.f32 %v377, %v383
      %v393 = vmax.f32 %v385, 0.0
      %v394 = vmax.f32 %v386, 0.0
      %v395 = vmax.f32 %v387, 0.0
      %v396 = vmax.f32 %v388, 0.0
      %v397 = vmax.f32 %v389, 0.0
      %v398 = vmax.f32 %v390, 0.0
      %v399 = vmax.f32 %v391, 0.0
      %v400 = vmax.f32 %v392, 0.0
      %v401 = vpack.c.bf16 %v393, %v393
      %v402 = vpack.c.bf16 %v394, %v394
      %v403 = vpack.c.bf16 %v395, %v395
      %v404 = vpack.c.bf16 %v396, %v396
      %v405 = vpack.c.bf16 %v397, %v397
      %v406 = vpack.c.bf16 %v398, %v398
      %v407 = vpack.c.bf16 %v399, %v399
      %v408 = vpack.c.bf16 %v400, %v400
      %v417 = vunpack.c.l.b16 %v401
      %v418 = vunpack.c.l.b16 %v402
      %v419 = vunpack.c.l.b16 %v403
      %v420 = vunpack.c.l.b16 %v404
      %v421 = vunpack.c.l.b16 %v405
      %v422 = vunpack.c.l.b16 %v406
      %v423 = vunpack.c.l.b16 %v407
      %v424 = vunpack.c.l.b16 %v408
      %v425 = vpack.c.b16 %v417, %v417
      %v426 = vpack.c.b16 %v418, %v418
      %v427 = vpack.c.b16 %v419, %v419
      %v428 = vpack.c.b16 %v420, %v420
      %v429 = vpack.c.b16 %v421, %v421
      %v430 = vpack.c.b16 %v422, %v422
      %v431 = vpack.c.b16 %v423, %v423
      %v432 = vpack.c.b16 %v424, %v424
      %v434 = vshrl.u32 %v425, 16
      %v436 = vrot.slane %v434, 7
      %v437 = vshll.u32 %v425, 16
      %v439 = vor.u32 %v436, %v437
      %v440 = vrot.slane %v436, 4
      %v442 = vshrl.u32 %v426, 16
      %v444 = vrot.slane %v442, 7
      %v445 = vshll.u32 %v426, 16
      %v447 = vor.u32 %v444, %v445
      %v448 = vrot.slane %v444, 4
      %v450 = vshrl.u32 %v427, 16
      %v452 = vrot.slane %v450, 7
      %v453 = vshll.u32 %v427, 16
      %v455 = vor.u32 %v452, %v453
      %v456 = vrot.slane %v452, 4
      %v458 = vshrl.u32 %v428, 16
      %v460 = vrot.slane %v458, 7
      %v461 = vshll.u32 %v428, 16
      %v463 = vor.u32 %v460, %v461
      %v464 = vrot.slane %v460, 4
      %v466 = vshrl.u32 %v429, 16
      %v468 = vrot.slane %v466, 7
      %v469 = vshll.u32 %v429, 16
      %v471 = vor.u32 %v468, %v469
      %v472 = vrot.slane %v468, 4
      %v474 = vshrl.u32 %v430, 16
      %v476 = vrot.slane %v474, 7
      %v477 = vshll.u32 %v430, 16
      %v479 = vor.u32 %v476, %v477
      %v480 = vrot.slane %v476, 4
      %v482 = vshrl.u32 %v431, 16
      %v484 = vrot.slane %v482, 7
      %v485 = vshll.u32 %v431, 16
      %v487 = vor.u32 %v484, %v485
      %v488 = vrot.slane %v484, 4
      %v490 = vshrl.u32 %v432, 16
      %v492 = vrot.slane %v490, 7
      %v493 = vshll.u32 %v432, 16
      %v495 = vor.u32 %v492, %v493
      %v496 = vrot.slane %v492, 4
      %s513 = scalar_lea.vmem [#allocation2], 8
      %vm514 = vcmask 1043456
      %vm515 = vsmask.f32 7938
      %vm516 = vmand %vm514, %vm515
      %v517 = vld [vmem:[%s513] sm:$0xf]
      %v518 = vsel %vm516, %v439, %v517
      %519 = vst [vmem:[%s513] sm:$0xf] %v518
      %vm520 = vcmask 1040384
      %vm521 = vsmask.f32 256
      %vm522 = vmand %vm520, %vm521
      %v523 = vld [vmem:[%s513 + $0x4] sm:$0x1]
      %v524 = vsel %vm522, %v440, %v523
      %525 = vst [vmem:[%s513 + $0x4] sm:$0x1] %v524
      %v526 = vld [vmem:[%s513 + $0x8] sm:$0xf]
      %v527 = vsel %vm516, %v447, %v526
      %528 = vst [vmem:[%s513 + $0x8] sm:$0xf] %v527
      %v529 = vld [vmem:[%s513 + $0xc] sm:$0x1]
      %v530 = vsel %vm522, %v448, %v529
      %531 = vst [vmem:[%s513 + $0xc] sm:$0x1] %v530
      %v532 = vld [vmem:[%s513 + $0x10] sm:$0xf]
      %v533 = vsel %vm516, %v455, %v532
      %534 = vst [vmem:[%s513 + $0x10] sm:$0xf] %v533
      %v535 = vld [vmem:[%s513 + $0x14] sm:$0x1]
      %v536 = vsel %vm522, %v456, %v535
      %537 = vst [vmem:[%s513 + $0x14] sm:$0x1] %v536
      %v538 = vld [vmem:[%s513 + $0x18] sm:$0xf]
      %v539 = vsel %vm516, %v463, %v538
      %540 = vst [vmem:[%s513 + $0x18] sm:$0xf] %v539
      %v541 = vld [vmem:[%s513 + $0x1c] sm:$0x1]
      %v542 = vsel %vm522, %v464, %v541
      %543 = vst [vmem:[%s513 + $0x1c] sm:$0x1] %v542
      %v544 = vld [vmem:[%s513 + $0x20] sm:$0xf]
      %v545 = vsel %vm516, %v471, %v544
      %546 = vst [vmem:[%s513 + $0x20] sm:$0xf] %v545
      %v547 = vld [vmem:[%s513 + $0x24] sm:$0x1]
      %v548 = vsel %vm522, %v472, %v547
      %549 = vst [vmem:[%s513 + $0x24] sm:$0x1] %v548
      %v550 = vld [vmem:[%s513 + $0x28] sm:$0xf]
      %v551 = vsel %vm516, %v479, %v550
      %552 = vst [vmem:[%s513 + $0x28] sm:$0xf] %v551
      %v553 = vld [vmem:[%s513 + $0x2c] sm:$0x1]
      %v554 = vsel %vm522, %v480, %v553
      %555 = vst [vmem:[%s513 + $0x2c] sm:$0x1] %v554
      %v556 = vld [vmem:[%s513 + $0x30] sm:$0xf]
      %v557 = vsel %vm516, %v487, %v556
      %558 = vst [vmem:[%s513 + $0x30] sm:$0xf] %v557
      %v559 = vld [vmem:[%s513 + $0x34] sm:$0x1]
      %v560 = vsel %vm522, %v488, %v559
      %561 = vst [vmem:[%s513 + $0x34] sm:$0x1] %v560
      %v562 = vld [vmem:[%s513 + $0x38] sm:$0xf]
      %v563 = vsel %vm516, %v495, %v562
      %564 = vst [vmem:[%s513 + $0x38] sm:$0xf] %v563
      %v565 = vld [vmem:[%s513 + $0x3c] sm:$0x1]
      %v566 = vsel %vm522, %v496, %v565
      %567 = vst [vmem:[%s513 + $0x3c] sm:$0x1] %v566
      %v568 = vld [vmem:[#allocation2] sm:$0xf]
      %v569 = vld [vmem:[#allocation2 + $0x8] sm:$0xf]
      %v570 = vld [vmem:[#allocation2 + $0x10] sm:$0xf]
      %v571 = vld [vmem:[#allocation2 + $0x18] sm:$0xf]
      %v572 = vld [vmem:[#allocation2 + $0x20] sm:$0xf]
      %v573 = vld [vmem:[#allocation2 + $0x28] sm:$0xf]
      %v574 = vld [vmem:[#allocation2 + $0x30] sm:$0xf]
      %v575 = vld [vmem:[#allocation2 + $0x38] sm:$0xf]
      %v576 = vld [vmem:[#allocation2 + $0x4] sm:$0x1]
      %v577 = vld [vmem:[#allocation2 + $0xc] sm:$0x1]
      %v578 = vld [vmem:[#allocation2 + $0x14] sm:$0x1]
      %v579 = vld [vmem:[#allocation2 + $0x1c] sm:$0x1]
      %v580 = vld [vmem:[#allocation2 + $0x24] sm:$0x1]
      %v581 = vld [vmem:[#allocation2 + $0x2c] sm:$0x1]
      %v582 = vld [vmem:[#allocation2 + $0x34] sm:$0x1]
      %v583 = vld [vmem:[#allocation2 + $0x3c] sm:$0x1]
      %vm584 = vsmask.f32 3328
      %vm585 = vsmask.f32 7440
      %vm586 = vmor %vm584, %vm585
      %v588 = vshrl.u32 %v568, 16
      %v590 = vrot.slane %v588, 4
      %v591 = vshll.u32 %v568, 16
      %v593 = vrot.slane %v591, 5
      %v594 = vor.u32 %v590, %v593
      %v595 = vrot.slane %v594, 4
      %v597 = vshll.u32 %v576, 16
      %v599 = vrot.slane %v597, 5
      %v600 = vsel %vm586, %v595, %v599
      %v602 = vshrl.u32 %v569, 16
      %v604 = vrot.slane %v602, 4
      %v605 = vshll.u32 %v569, 16
      %v607 = vrot.slane %v605, 5
      %v608 = vor.u32 %v604, %v607
      %v609 = vrot.slane %v608, 4
      %v611 = vshll.u32 %v577, 16
      %v613 = vrot.slane %v611, 5
      %v614 = vsel %vm586, %v609, %v613
      %v616 = vshrl.u32 %v570, 16
      %v618 = vrot.slane %v616, 4
      %v619 = vshll.u32 %v570, 16
      %v621 = vrot.slane %v619, 5
      %v622 = vor.u32 %v618, %v621
      %v623 = vrot.slane %v622, 4
      %v625 = vshll.u32 %v578, 16
      %v627 = vrot.slane %v625, 5
      %v628 = vsel %vm586, %v623, %v627
      %v630 = vshrl.u32 %v571, 16
      %v632 = vrot.slane %v630, 4
      %v633 = vshll.u32 %v571, 16
      %v635 = vrot.slane %v633, 5
      %v636 = vor.u32 %v632, %v635
      %v637 = vrot.slane %v636, 4
      %v639 = vshll.u32 %v579, 16
      %v641 = vrot.slane %v639, 5
      %v642 = vsel %vm586, %v637, %v641
      %v644 = vshrl.u32 %v572, 16
      %v646 = vrot.slane %v644, 4
      %v647 = vshll.u32 %v572, 16
      %v649 = vrot.slane %v647, 5
      %v650 = vor.u32 %v646, %v649
      %v651 = vrot.slane %v650, 4
      %v653 = vshll.u32 %v580, 16
      %v655 = vrot.slane %v653, 5
      %v656 = vsel %vm586, %v651, %v655
      %v658 = vshrl.u32 %v573, 16
      %v660 = vrot.slane %v658, 4
      %v661 = vshll.u32 %v573, 16
      %v663 = vrot.slane %v661, 5
      %v664 = vor.u32 %v660, %v663
      %v665 = vrot.slane %v664, 4
      %v667 = vshll.u32 %v581, 16
      %v669 = vrot.slane %v667, 5
      %v670 = vsel %vm586, %v665, %v669
      %v672 = vshrl.u32 %v574, 16
      %v674 = vrot.slane %v672, 4
      %v675 = vshll.u32 %v574, 16
      %v677 = vrot.slane %v675, 5
      %v678 = vor.u32 %v674, %v677
      %v679 = vrot.slane %v678, 4
      %v681 = vshll.u32 %v582, 16
      %v683 = vrot.slane %v681, 5
      %v684 = vsel %vm586, %v679, %v683
      %v686 = vshrl.u32 %v575, 16
      %v688 = vrot.slane %v686, 4
      %v689 = vshll.u32 %v575, 16
      %v691 = vrot.slane %v689, 5
      %v692 = vor.u32 %v688, %v691
      %v693 = vrot.slane %v692, 4
      %v695 = vshll.u32 %v583, 16
      %v697 = vrot.slane %v695, 5
      %v698 = vsel %vm586, %v693, %v697
      %v707 = vunpack.c.l.b16 %v568
      %v708 = vunpack.c.l.b16 %v569
      %v709 = vunpack.c.l.b16 %v570
      %v710 = vunpack.c.l.b16 %v571
      %v711 = vunpack.c.l.b16 %v572
      %v712 = vunpack.c.l.b16 %v573
      %v713 = vunpack.c.l.b16 %v574
      %v714 = vunpack.c.l.b16 %v575
      %v715 = vpack.c.b16 %v708, %v707
      %v716 = vpack.c.b16 %v710, %v709
      %v717 = vpack.c.b16 %v712, %v711
      %v718 = vpack.c.b16 %v714, %v713
      %v723 = vunpack.c.l.b16 %v600
      %v724 = vunpack.c.l.b16 %v614
      %v725 = vunpack.c.l.b16 %v628
      %v726 = vunpack.c.l.b16 %v642
      %v727 = vunpack.c.l.b16 %v656
      %v728 = vunpack.c.l.b16 %v670
      %v729 = vunpack.c.l.b16 %v684
      %v730 = vunpack.c.l.b16 %v698
      %v731 = vpack.c.b16 %v724, %v723
      %v732 = vpack.c.b16 %v726, %v725
      %v733 = vpack.c.b16 %v728, %v727
      %v734 = vpack.c.b16 %v730, %v729
      %v739 = vld [vmem:[%s4] sm:$0xf]
      %v740 = vld [vmem:[%s4 + $0x4] sm:$0xf]
      %v741 = vld [vmem:[%s4 + $0x8] sm:$0xf]
      %v742 = vld [vmem:[%s4 + $0xc] sm:$0xf]
      %v743 = vld [vmem:[%s4 + $0x10] sm:$0xf]
      %v744 = vld [vmem:[%s4 + $0x14] sm:$0xf]
      %v745 = vld [vmem:[%s4 + $0x18] sm:$0xf]
      %v746 = vld [vmem:[%s4 + $0x1c] sm:$0xf]
      %v747 = vld [vmem:[%s4 + $0x20] sm:$0xf]
      %v748 = vld [vmem:[%s4 + $0x24] sm:$0xf]
      %v749 = vld [vmem:[%s4 + $0x28] sm:$0xf]
      %v750 = vld [vmem:[%s4 + $0x2c] sm:$0xf]
      %v751 = vld [vmem:[%s4 + $0x30] sm:$0xf]
      %v752 = vld [vmem:[%s4 + $0x34] sm:$0xf]
      %v753 = vld [vmem:[%s4 + $0x38] sm:$0xf]
      %v754 = vld [vmem:[%s4 + $0x3c] sm:$0xf]
      %v755 = vld [vmem:[%s4 + $0x40] sm:$0xf]
      %v756 = vld [vmem:[%s4 + $0x44] sm:$0xf]
      %v757 = vld [vmem:[%s4 + $0x48] sm:$0xf]
      %v758 = vld [vmem:[%s4 + $0x4c] sm:$0xf]
      %v759 = vld [vmem:[%s4 + $0x50] sm:$0xf]
      %v760 = vld [vmem:[%s4 + $0x54] sm:$0xf]
      %v761 = vld [vmem:[%s4 + $0x58] sm:$0xf]
      %v762 = vld [vmem:[%s4 + $0x5c] sm:$0xf]
      %v763 = vld [vmem:[%s4 + $0x60] sm:$0xf]
      %v764 = vld [vmem:[%s4 + $0x64] sm:$0xf]
      %v765 = vld [vmem:[%s4 + $0x68] sm:$0xf]
      %v766 = vld [vmem:[%s4 + $0x6c] sm:$0xf]
      %v767 = vld [vmem:[%s4 + $0x70] sm:$0xf]
      %v768 = vld [vmem:[%s4 + $0x74] sm:$0xf]
      %v769 = vld [vmem:[%s4 + $0x78] sm:$0xf]
      %v770 = vld [vmem:[%s4 + $0x7c] sm:$0xf]
      %v771 = vld [vmem:[#allocation2] sm:$0xe]
      %v772 = vld [vmem:[#allocation2 + $0x8] sm:$0xe]
      %v773 = vld [vmem:[#allocation2 + $0x10] sm:$0xe]
      %v774 = vld [vmem:[#allocation2 + $0x18] sm:$0xe]
      %v775 = vld [vmem:[#allocation2 + $0x20] sm:$0xe]
      %v776 = vld [vmem:[#allocation2 + $0x28] sm:$0xe]
      %v777 = vld [vmem:[#allocation2 + $0x30] sm:$0xe]
      %v778 = vld [vmem:[#allocation2 + $0x38] sm:$0xe]
      %vm795 = vcmask 1042432
      %vm796 = vcmask 1046532
      %vm797 = vmor %vm795, %vm796
      %v798 = vrot.slane %v771, 5
      %v799 = vrot.slane %v798, 4
      %v800 = vrot.slane %v576, 5
      %v801 = vsel %vm797, %v799, %v800
      %v802 = vrot.slane %v772, 5
      %v803 = vrot.slane %v802, 4
      %v804 = vrot.slane %v577, 5
      %v805 = vsel %vm797, %v803, %v804
      %v806 = vrot.slane %v773, 5
      %v807 = vrot.slane %v806, 4
      %v808 = vrot.slane %v578, 5
      %v809 = vsel %vm797, %v807, %v808
      %v810 = vrot.slane %v774, 5
      %v811 = vrot.slane %v810, 4
      %v812 = vrot.slane %v579, 5
      %v813 = vsel %vm797, %v811, %v812
      %v814 = vrot.slane %v775, 5
      %v815 = vrot.slane %v814, 4
      %v816 = vrot.slane %v580, 5
      %v817 = vsel %vm797, %v815, %v816
      %v818 = vrot.slane %v776, 5
      %v819 = vrot.slane %v818, 4
      %v820 = vrot.slane %v581, 5
      %v821 = vsel %vm797, %v819, %v820
      %v822 = vrot.slane %v777, 5
      %v823 = vrot.slane %v822, 4
      %v824 = vrot.slane %v582, 5
      %v825 = vsel %vm797, %v823, %v824
      %v826 = vrot.slane %v778, 5
      %v827 = vrot.slane %v826, 4
      %v828 = vrot.slane %v583, 5
      %v829 = vsel %vm797, %v827, %v828
      %v830 = vld [vmem:[%s513] sm:$0xf]
      %v831 = vld [vmem:[%s513 + $0x8] sm:$0xf]
      %v832 = vld [vmem:[%s513 + $0x10] sm:$0xf]
      %v833 = vld [vmem:[%s513 + $0x18] sm:$0xf]
      %v834 = vld [vmem:[%s513 + $0x20] sm:$0xf]
      %v835 = vld [vmem:[%s513 + $0x28] sm:$0xf]
      %v836 = vld [vmem:[%s513 + $0x30] sm:$0xf]
      %v837 = vld [vmem:[%s513 + $0x38] sm:$0xf]
      %v838 = vunpack.c.l.b16 %v801
      %v839 = vunpack.c.l.b16 %v805
      %v840 = vunpack.c.l.b16 %v809
      %v841 = vunpack.c.l.b16 %v813
      %v842 = vunpack.c.l.b16 %v817
      %v843 = vunpack.c.l.b16 %v821
      %v844 = vunpack.c.l.b16 %v825
      %v845 = vunpack.c.l.b16 %v829
      %v846 = vpack.c.b16 %v839, %v838
      %v847 = vpack.c.b16 %v841, %v840
      %v848 = vpack.c.b16 %v843, %v842
      %v849 = vpack.c.b16 %v845, %v844
      %v862 = vunpack.c.l.b16 %v830
      %v863 = vunpack.c.l.b16 %v831
      %v864 = vunpack.c.l.b16 %v832
      %v865 = vunpack.c.l.b16 %v833
      %v866 = vunpack.c.l.b16 %v834
      %v867 = vunpack.c.l.b16 %v835
      %v868 = vunpack.c.l.b16 %v836
      %v869 = vunpack.c.l.b16 %v837
      %v870 = vpack.c.b16 %v863, %v862
      %v871 = vpack.c.b16 %v865, %v864
      %v872 = vpack.c.b16 %v867, %v866
      %v873 = vpack.c.b16 %v869, %v868
      %v878 = vld [vmem:[%s4 + $0x80] sm:$0xf]
      %v879 = vld [vmem:[%s4 + $0x84] sm:$0xf]
      %v880 = vld [vmem:[%s4 + $0x88] sm:$0xf]
      %v881 = vld [vmem:[%s4 + $0x8c] sm:$0xf]
      %v882 = vld [vmem:[%s4 + $0x90] sm:$0xf]
      %v883 = vld [vmem:[%s4 + $0x94] sm:$0xf]
      %v884 = vld [vmem:[%s4 + $0x98] sm:$0xf]
      %v885 = vld [vmem:[%s4 + $0x9c] sm:$0xf]
      %v886 = vld [vmem:[%s4 + $0xa0] sm:$0xf]
      %v887 = vld [vmem:[%s4 + $0xa4] sm:$0xf]
      %v888 = vld [vmem:[%s4 + $0xa8] sm:$0xf]
      %v889 = vld [vmem:[%s4 + $0xac] sm:$0xf]
      %v890 = vld [vmem:[%s4 + $0xb0] sm:$0xf]
      %v891 = vld [vmem:[%s4 + $0xb4] sm:$0xf]
      %v892 = vld [vmem:[%s4 + $0xb8] sm:$0xf]
      %v893 = vld [vmem:[%s4 + $0xbc] sm:$0xf]
      %v894 = vld [vmem:[%s4 + $0xc0] sm:$0xf]
      %v895 = vld [vmem:[%s4 + $0xc4] sm:$0xf]
      %v896 = vld [vmem:[%s4 + $0xc8] sm:$0xf]
      %v897 = vld [vmem:[%s4 + $0xcc] sm:$0xf]
      %v898 = vld [vmem:[%s4 + $0xd0] sm:$0xf]
      %v899 = vld [vmem:[%s4 + $0xd4] sm:$0xf]
      %v900 = vld [vmem:[%s4 + $0xd8] sm:$0xf]
      %v901 = vld [vmem:[%s4 + $0xdc] sm:$0xf]
      %v902 = vld [vmem:[%s4 + $0xe0] sm:$0xf]
      %v903 = vld [vmem:[%s4 + $0xe4] sm:$0xf]
      %v904 = vld [vmem:[%s4 + $0xe8] sm:$0xf]
      %v905 = vld [vmem:[%s4 + $0xec] sm:$0xf]
      %v906 = vld [vmem:[%s4 + $0xf0] sm:$0xf]
      %v907 = vld [vmem:[%s4 + $0xf4] sm:$0xf]
      %v908 = vld [vmem:[%s4 + $0xf8] sm:$0xf]
      %v909 = vld [vmem:[%s4 + $0xfc] sm:$0xf]
      %v942 = vunpack.c.l.b16 %v878
      %v943 = vunpack.c.l.b16 %v879
      %v944 = vunpack.c.l.b16 %v880
      %v945 = vunpack.c.l.b16 %v881
      %v946 = vunpack.c.l.b16 %v882
      %v947 = vunpack.c.l.b16 %v883
      %v948 = vunpack.c.l.b16 %v884
      %v949 = vunpack.c.l.b16 %v885
      %v950 = vunpack.c.l.b16 %v886
      %v951 = vunpack.c.l.b16 %v887
      %v952 = vunpack.c.l.b16 %v888
      %v953 = vunpack.c.l.b16 %v889
      %v954 = vunpack.c.l.b16 %v890
      %v955 = vunpack.c.l.b16 %v891
      %v956 = vunpack.c.l.b16 %v892
      %v957 = vunpack.c.l.b16 %v893
      %v958 = vunpack.c.l.b16 %v894
      %v959 = vunpack.c.l.b16 %v895
      %v960 = vunpack.c.l.b16 %v896
      %v961 = vunpack.c.l.b16 %v897
      %v962 = vunpack.c.l.b16 %v898
      %v963 = vunpack.c.l.b16 %v899
      %v964 = vunpack.c.l.b16 %v900
      %v965 = vunpack.c.l.b16 %v901
      %v966 = vunpack.c.l.b16 %v902
      %v967 = vunpack.c.l.b16 %v903
      %v968 = vunpack.c.l.b16 %v904
      %v969 = vunpack.c.l.b16 %v905
      %v970 = vunpack.c.l.b16 %v906
      %v971 = vunpack.c.l.b16 %v907
      %v972 = vunpack.c.l.b16 %v908
      %v973 = vunpack.c.l.b16 %v909
      %v974 = vpack.c.b16 %v943, %v942
      %v975 = vpack.c.b16 %v945, %v944
      %v976 = vpack.c.b16 %v947, %v946
      %v977 = vpack.c.b16 %v949, %v948
      %v978 = vpack.c.b16 %v951, %v950
      %v979 = vpack.c.b16 %v953, %v952
      %v980 = vpack.c.b16 %v955, %v954
      %v981 = vpack.c.b16 %v957, %v956
      %v982 = vpack.c.b16 %v959, %v958
      %v983 = vpack.c.b16 %v961, %v960
      %v984 = vpack.c.b16 %v963, %v962
      %v985 = vpack.c.b16 %v965, %v964
      %v986 = vpack.c.b16 %v967, %v966
      %v987 = vpack.c.b16 %v969, %v968
      %v988 = vpack.c.b16 %v971, %v970
      %v989 = vpack.c.b16 %v973, %v972
      %1006 = vmatprep.subr.bf16.mxu0 0
      %1007 = vmatpush1.bf16.msra.mxu0 %v974
      %1008 = vmatprep.subr.bf16.mxu0 0
      %1009 = vmatpush1.bf16.msra.mxu0 %v975
      %1010 = vmatprep.subr.bf16.mxu0 0
      %1011 = vmatpush1.bf16.msra.mxu0 %v976
      %1012 = vmatprep.subr.bf16.mxu0 0
      %1013 = vmatpush1.bf16.msra.mxu0 %v977
      %1014 = vmatprep.subr.bf16.mxu0 0
      %1015 = vmatpush1.bf16.msra.mxu0 %v978
      %1016 = vmatprep.subr.bf16.mxu0 0
      %1017 = vmatpush1.bf16.msra.mxu0 %v979
      %1018 = vmatprep.subr.bf16.mxu0 0
      %1019 = vmatpush1.bf16.msra.mxu0 %v980
      %1020 = vmatprep.subr.bf16.mxu0 0
      %1021 = vmatpush1.bf16.msra.mxu0 %v981
      %1022 = vmatprep.subr.bf16.mxu0 0
      %1023 = vmatpush1.bf16.msra.mxu0 %v982
      %1024 = vmatprep.subr.bf16.mxu0 0
      %1025 = vmatpush1.bf16.msra.mxu0 %v983
      %1026 = vmatprep.subr.bf16.mxu0 0
      %1027 = vmatpush1.bf16.msra.mxu0 %v984
      %1028 = vmatprep.subr.bf16.mxu0 0
      %1029 = vmatpush1.bf16.msra.mxu0 %v985
      %1030 = vmatprep.subr.bf16.mxu0 0
      %1031 = vmatpush1.bf16.msra.mxu0 %v986
      %1032 = vmatprep.subr.bf16.mxu0 0
      %1033 = vmatpush1.bf16.msra.mxu0 %v987
      %1034 = vmatprep.subr.bf16.mxu0 0
      %1035 = vmatpush1.bf16.msra.mxu0 %v988
      %1036 = vmatprep.subr.bf16.mxu0 0
      %1037 = vmatpush1.bf16.msra.mxu0 %v989
      %1038 = vmatprep.mubr.bf16.mxu0 %v870
      %1039 = vmatmul.mubr.bf16.gmra.mrb[0].mxu0 %v846
      %v1040 = vpop.f32.mrb[0].mxu0
      %v1041 = vadd.f32 0.0, %v1040
      %v1042 = vpop.f32.mrb[0].mxu0
      %v1043 = vpop.f32.mrb[0].mxu0
      %v1044 = vadd.f32 0.0, %v1043
      %v1045 = vpop.f32.mrb[0].mxu0
      %1046 = vmatprep.mubr.bf16.mxu0 %v871
      %1047 = vmatmul.mubr.bf16.gmra.mrb[0].mxu0 %v847
      %v1048 = vpop.f32.mrb[0].mxu0
      %v1049 = vadd.f32 0.0, %v1048
      %v1050 = vpop.f32.mrb[0].mxu0
      %v1051 = vpop.f32.mrb[0].mxu0
      %v1052 = vadd.f32 0.0, %v1051
      %v1053 = vpop.f32.mrb[0].mxu0
      %1054 = vmatprep.mubr.bf16.mxu0 %v872
      %1055 = vmatmul.mubr.bf16.gmra.mrb[0].mxu0 %v848
      %v1056 = vpop.f32.mrb[0].mxu0
      %v1057 = vadd.f32 0.0, %v1056
      %v1058 = vpop.f32.mrb[0].mxu0
      %v1059 = vpop.f32.mrb[0].mxu0
      %v1060 = vadd.f32 0.0, %v1059
      %v1061 = vpop.f32.mrb[0].mxu0
      %1062 = vmatprep.mubr.bf16.mxu0 %v873
      %1063 = vmatmul.mubr.bf16.gmra.mrb[0].mxu0 %v849
      %v1064 = vpop.f32.mrb[0].mxu0
      %v1065 = vadd.f32 0.0, %v1064
      %v1066 = vpop.f32.mrb[0].mxu0
      %v1067 = vpop.f32.mrb[0].mxu0
      %v1068 = vadd.f32 0.0, %v1067
      %v1069 = vpop.f32.mrb[0].mxu0
      %1070 = vdwg.mxu0
      %v1103 = vunpack.c.l.b16 %v739
      %v1104 = vunpack.c.l.b16 %v740
      %v1105 = vunpack.c.l.b16 %v741
      %v1106 = vunpack.c.l.b16 %v742
      %v1107 = vunpack.c.l.b16 %v743
      %v1108 = vunpack.c.l.b16 %v744
      %v1109 = vunpack.c.l.b16 %v745
      %v1110 = vunpack.c.l.b16 %v746
      %v1111 = vunpack.c.l.b16 %v747
      %v1112 = vunpack.c.l.b16 %v748
      %v1113 = vunpack.c.l.b16 %v749
      %v1114 = vunpack.c.l.b16 %v750
      %v1115 = vunpack.c.l.b16 %v751
      %v1116 = vunpack.c.l.b16 %v752
      %v1117 = vunpack.c.l.b16 %v753
      %v1118 = vunpack.c.l.b16 %v754
      %v1119 = vunpack.c.l.b16 %v755
      %v1120 = vunpack.c.l.b16 %v756
      %v1121 = vunpack.c.l.b16 %v757
      %v1122 = vunpack.c.l.b16 %v758
      %v1123 = vunpack.c.l.b16 %v759
      %v1124 = vunpack.c.l.b16 %v760
      %v1125 = vunpack.c.l.b16 %v761
      %v1126 = vunpack.c.l.b16 %v762
      %v1127 = vunpack.c.l.b16 %v763
      %v1128 = vunpack.c.l.b16 %v764
      %v1129 = vunpack.c.l.b16 %v765
      %v1130 = vunpack.c.l.b16 %v766
      %v1131 = vunpack.c.l.b16 %v767
      %v1132 = vunpack.c.l.b16 %v768
      %v1133 = vunpack.c.l.b16 %v769
      %v1134 = vunpack.c.l.b16 %v770
      %v1135 = vpack.c.b16 %v1104, %v1103
      %v1136 = vpack.c.b16 %v1106, %v1105
      %v1137 = vpack.c.b16 %v1108, %v1107
      %v1138 = vpack.c.b16 %v1110, %v1109
      %v1139 = vpack.c.b16 %v1112, %v1111
      %v1140 = vpack.c.b16 %v1114, %v1113
      %v1141 = vpack.c.b16 %v1116, %v1115
      %v1142 = vpack.c.b16 %v1118, %v1117
      %v1143 = vpack.c.b16 %v1120, %v1119
      %v1144 = vpack.c.b16 %v1122, %v1121
      %v1145 = vpack.c.b16 %v1124, %v1123
      %v1146 = vpack.c.b16 %v1126, %v1125
      %v1147 = vpack.c.b16 %v1128, %v1127
      %v1148 = vpack.c.b16 %v1130, %v1129
      %v1149 = vpack.c.b16 %v1132, %v1131
      %v1150 = vpack.c.b16 %v1134, %v1133
      %1167 = vmatprep.subr.bf16.mxu0 0
      %1168 = vmatpush1.bf16.msra.mxu0 %v1135
      %1169 = vmatprep.subr.bf16.mxu0 0
      %1170 = vmatpush1.bf16.msra.mxu0 %v1136
      %1171 = vmatprep.subr.bf16.mxu0 0
      %1172 = vmatpush1.bf16.msra.mxu0 %v1137
      %1173 = vmatprep.subr.bf16.mxu0 0
      %1174 = vmatpush1.bf16.msra.mxu0 %v1138
      %1175 = vmatprep.subr.bf16.mxu0 0
      %1176 = vmatpush1.bf16.msra.mxu0 %v1139
      %1177 = vmatprep.subr.bf16.mxu0 0
      %1178 = vmatpush1.bf16.msra.mxu0 %v1140
      %1179 = vmatprep.subr.bf16.mxu0 0
      %1180 = vmatpush1.bf16.msra.mxu0 %v1141
      %1181 = vmatprep.subr.bf16.mxu0 0
      %1182 = vmatpush1.bf16.msra.mxu0 %v1142
      %1183 = vmatprep.subr.bf16.mxu0 0
      %1184 = vmatpush1.bf16.msra.mxu0 %v1143
      %1185 = vmatprep.subr.bf16.mxu0 0
      %1186 = vmatpush1.bf16.msra.mxu0 %v1144
      %1187 = vmatprep.subr.bf16.mxu0 0
      %1188 = vmatpush1.bf16.msra.mxu0 %v1145
      %1189 = vmatprep.subr.bf16.mxu0 0
      %1190 = vmatpush1.bf16.msra.mxu0 %v1146
      %1191 = vmatprep.subr.bf16.mxu0 0
      %1192 = vmatpush1.bf16.msra.mxu0 %v1147
      %1193 = vmatprep.subr.bf16.mxu0 0
      %1194 = vmatpush1.bf16.msra.mxu0 %v1148
      %1195 = vmatprep.subr.bf16.mxu0 0
      %1196 = vmatpush1.bf16.msra.mxu0 %v1149
      %1197 = vmatprep.subr.bf16.mxu0 0
      %1198 = vmatpush1.bf16.msra.mxu0 %v1150
      %1199 = vmatprep.mubr.bf16.mxu0 %v731
      %1200 = vmatmul.mubr.bf16.gmra.mrb[0].mxu0 %v715
      %v1201 = vpop.f32.mrb[0].mxu0
      %v1202 = vadd.f32 %v1041, %v1201
      %v1203 = vpop.f32.mrb[0].mxu0
      %v1204 = vpop.f32.mrb[0].mxu0
      %v1205 = vadd.f32 %v1044, %v1204
      %v1206 = vpop.f32.mrb[0].mxu0
      %1207 = vmatprep.mubr.bf16.mxu0 %v732
      %1208 = vmatmul.mubr.bf16.gmra.mrb[0].mxu0 %v716
      %v1209 = vpop.f32.mrb[0].mxu0
      %v1210 = vadd.f32 %v1049, %v1209
      %v1211 = vpop.f32.mrb[0].mxu0
      %v1212 = vpop.f32.mrb[0].mxu0
      %v1213 = vadd.f32 %v1052, %v1212
      %v1214 = vpop.f32.mrb[0].mxu0
      %1215 = vmatprep.mubr.bf16.mxu0 %v733
      %1216 = vmatmul.mubr.bf16.gmra.mrb[0].mxu0 %v717
      %v1217 = vpop.f32.mrb[0].mxu0
      %v1218 = vadd.f32 %v1057, %v1217
      %v1219 = vpop.f32.mrb[0].mxu0
      %v1220 = vpop.f32.mrb[0].mxu0
      %v1221 = vadd.f32 %v1060, %v1220
      %v1222 = vpop.f32.mrb[0].mxu0
      %1223 = vmatprep.mubr.bf16.mxu0 %v734
      %1224 = vmatmul.mubr.bf16.gmra.mrb[0].mxu0 %v718
      %v1225 = vpop.f32.mrb[0].mxu0
      %v1226 = vadd.f32 %v1065, %v1225
      %v1227 = vpop.f32.mrb[0].mxu0
      %v1228 = vpop.f32.mrb[0].mxu0
      %v1229 = vadd.f32 %v1068, %v1228
      %v1230 = vpop.f32.mrb[0].mxu0
      %1231 = vdwg.mxu0
      %v1232 = vld [vmem:[%s513] sm:$0xf]
      %v1233 = vld [vmem:[%s513 + $0x4] sm:$0x1]
      %v1234 = vld [vmem:[%s513 + $0x8] sm:$0xf]
      %v1235 = vld [vmem:[%s513 + $0xc] sm:$0x1]
      %v1236 = vld [vmem:[%s513 + $0x10] sm:$0xf]
      %v1237 = vld [vmem:[%s513 + $0x14] sm:$0x1]
      %v1238 = vld [vmem:[%s513 + $0x18] sm:$0xf]
      %v1239 = vld [vmem:[%s513 + $0x1c] sm:$0x1]
      %v1240 = vld [vmem:[%s513 + $0x20] sm:$0xf]
      %v1241 = vld [vmem:[%s513 + $0x24] sm:$0x1]
      %v1242 = vld [vmem:[%s513 + $0x28] sm:$0xf]
      %v1243 = vld [vmem:[%s513 + $0x2c] sm:$0x1]
      %v1244 = vld [vmem:[%s513 + $0x30] sm:$0xf]
      %v1245 = vld [vmem:[%s513 + $0x34] sm:$0x1]
      %v1246 = vld [vmem:[%s513 + $0x38] sm:$0xf]
      %v1247 = vld [vmem:[%s513 + $0x3c] sm:$0x1]
      %v1249 = vshrl.u32 %v1232, 16
      %v1251 = vrot.slane %v1249, 4
      %v1252 = vshll.u32 %v1232, 16
      %v1254 = vrot.slane %v1252, 5
      %v1255 = vor.u32 %v1251, %v1254
      %v1256 = vrot.slane %v1255, 4
      %v1258 = vshll.u32 %v1233, 16
      %v1260 = vrot.slane %v1258, 5
      %v1261 = vsel %vm586, %v1256, %v1260
      %v1263 = vshrl.u32 %v1234, 16
      %v1265 = vrot.slane %v1263, 4
      %v1266 = vshll.u32 %v1234, 16
      %v1268 = vrot.slane %v1266, 5
      %v1269 = vor.u32 %v1265, %v1268
      %v1270 = vrot.slane %v1269, 4
      %v1272 = vshll.u32 %v1235, 16
      %v1274 = vrot.slane %v1272, 5
      %v1275 = vsel %vm586, %v1270, %v1274
      %v1277 = vshrl.u32 %v1236, 16
      %v1279 = vrot.slane %v1277, 4
      %v1280 = vshll.u32 %v1236, 16
      %v1282 = vrot.slane %v1280, 5
      %v1283 = vor.u32 %v1279, %v1282
      %v1284 = vrot.slane %v1283, 4
      %v1286 = vshll.u32 %v1237, 16
      %v1288 = vrot.slane %v1286, 5
      %v1289 = vsel %vm586, %v1284, %v1288
      %v1291 = vshrl.u32 %v1238, 16
      %v1293 = vrot.slane %v1291, 4
      %v1294 = vshll.u32 %v1238, 16
      %v1296 = vrot.slane %v1294, 5
      %v1297 = vor.u32 %v1293, %v1296
      %v1298 = vrot.slane %v1297, 4
      %v1300 = vshll.u32 %v1239, 16
      %v1302 = vrot.slane %v1300, 5
      %v1303 = vsel %vm586, %v1298, %v1302
      %v1305 = vshrl.u32 %v1240, 16
      %v1307 = vrot.slane %v1305, 4
      %v1308 = vshll.u32 %v1240, 16
      %v1310 = vrot.slane %v1308, 5
      %v1311 = vor.u32 %v1307, %v1310
      %v1312 = vrot.slane %v1311, 4
      %v1314 = vshll.u32 %v1241, 16
      %v1316 = vrot.slane %v1314, 5
      %v1317 = vsel %vm586, %v1312, %v1316
      %v1319 = vshrl.u32 %v1242, 16
      %v1321 = vrot.slane %v1319, 4
      %v1322 = vshll.u32 %v1242, 16
      %v1324 = vrot.slane %v1322, 5
      %v1325 = vor.u32 %v1321, %v1324
      %v1326 = vrot.slane %v1325, 4
      %v1328 = vshll.u32 %v1243, 16
      %v1330 = vrot.slane %v1328, 5
      %v1331 = vsel %vm586, %v1326, %v1330
      %v1333 = vshrl.u32 %v1244, 16
      %v1335 = vrot.slane %v1333, 4
      %v1336 = vshll.u32 %v1244, 16
      %v1338 = vrot.slane %v1336, 5
      %v1339 = vor.u32 %v1335, %v1338
      %v1340 = vrot.slane %v1339, 4
      %v1342 = vshll.u32 %v1245, 16
      %v1344 = vrot.slane %v1342, 5
      %v1345 = vsel %vm586, %v1340, %v1344
      %v1347 = vshrl.u32 %v1246, 16
      %v1349 = vrot.slane %v1347, 4
      %v1350 = vshll.u32 %v1246, 16
      %v1352 = vrot.slane %v1350, 5
      %v1353 = vor.u32 %v1349, %v1352
      %v1354 = vrot.slane %v1353, 4
      %v1356 = vshll.u32 %v1247, 16
      %v1358 = vrot.slane %v1356, 5
      %v1359 = vsel %vm586, %v1354, %v1358
      %v1360 = vld [vmem:[%s513] sm:$0xe]
      %v1361 = vld [vmem:[%s513 + $0x8] sm:$0xe]
      %v1362 = vld [vmem:[%s513 + $0x10] sm:$0xe]
      %v1363 = vld [vmem:[%s513 + $0x18] sm:$0xe]
      %v1364 = vld [vmem:[%s513 + $0x20] sm:$0xe]
      %v1365 = vld [vmem:[%s513 + $0x28] sm:$0xe]
      %v1366 = vld [vmem:[%s513 + $0x30] sm:$0xe]
      %v1367 = vld [vmem:[%s513 + $0x38] sm:$0xe]
      %v1384 = vrot.slane %v1360, 5
      %v1385 = vrot.slane %v1384, 4
      %v1386 = vrot.slane %v1233, 5
      %v1387 = vsel %vm797, %v1385, %v1386
      %v1388 = vrot.slane %v1361, 5
      %v1389 = vrot.slane %v1388, 4
      %v1390 = vrot.slane %v1235, 5
      %v1391 = vsel %vm797, %v1389, %v1390
      %v1392 = vrot.slane %v1362, 5
      %v1393 = vrot.slane %v1392, 4
      %v1394 = vrot.slane %v1237, 5
      %v1395 = vsel %vm797, %v1393, %v1394
      %v1396 = vrot.slane %v1363, 5
      %v1397 = vrot.slane %v1396, 4
      %v1398 = vrot.slane %v1239, 5
      %v1399 = vsel %vm797, %v1397, %v1398
      %v1400 = vrot.slane %v1364, 5
      %v1401 = vrot.slane %v1400, 4
      %v1402 = vrot.slane %v1241, 5
      %v1403 = vsel %vm797, %v1401, %v1402
      %v1404 = vrot.slane %v1365, 5
      %v1405 = vrot.slane %v1404, 4
      %v1406 = vrot.slane %v1243, 5
      %v1407 = vsel %vm797, %v1405, %v1406
      %v1408 = vrot.slane %v1366, 5
      %v1409 = vrot.slane %v1408, 4
      %v1410 = vrot.slane %v1245, 5
      %v1411 = vsel %vm797, %v1409, %v1410
      %v1412 = vrot.slane %v1367, 5
      %v1413 = vrot.slane %v1412, 4
      %v1414 = vrot.slane %v1247, 5
      %v1415 = vsel %vm797, %v1413, %v1414
      %v1416 = vunpack.c.l.b16 %v1261
      %v1417 = vunpack.c.l.b16 %v1275
      %v1418 = vunpack.c.l.b16 %v1289
      %v1419 = vunpack.c.l.b16 %v1303
      %v1420 = vunpack.c.l.b16 %v1317
      %v1421 = vunpack.c.l.b16 %v1331
      %v1422 = vunpack.c.l.b16 %v1345
      %v1423 = vunpack.c.l.b16 %v1359
      %v1424 = vpack.c.b16 %v1417, %v1416
      %v1425 = vpack.c.b16 %v1419, %v1418
      %v1426 = vpack.c.b16 %v1421, %v1420
      %v1427 = vpack.c.b16 %v1423, %v1422
      %v1432 = vunpack.c.l.b16 %v1387
      %v1433 = vunpack.c.l.b16 %v1391
      %v1434 = vunpack.c.l.b16 %v1395
      %v1435 = vunpack.c.l.b16 %v1399
      %v1436 = vunpack.c.l.b16 %v1403
      %v1437 = vunpack.c.l.b16 %v1407
      %v1438 = vunpack.c.l.b16 %v1411
      %v1439 = vunpack.c.l.b16 %v1415
      %v1440 = vpack.c.b16 %v1433, %v1432
      %v1441 = vpack.c.b16 %v1435, %v1434
      %v1442 = vpack.c.b16 %v1437, %v1436
      %v1443 = vpack.c.b16 %v1439, %v1438
      %v1448 = vld [vmem:[%s4 + $0x100] sm:$0xf]
      %v1449 = vld [vmem:[%s4 + $0x104] sm:$0xf]
      %v1450 = vld [vmem:[%s4 + $0x108] sm:$0xf]
      %v1451 = vld [vmem:[%s4 + $0x10c] sm:$0xf]
      %v1452 = vld [vmem:[%s4 + $0x110] sm:$0xf]
      %v1453 = vld [vmem:[%s4 + $0x114] sm:$0xf]
      %v1454 = vld [vmem:[%s4 + $0x118] sm:$0xf]
      %v1455 = vld [vmem:[%s4 + $0x11c] sm:$0xf]
      %v1456 = vld [vmem:[%s4 + $0x120] sm:$0xf]
      %v1457 = vld [vmem:[%s4 + $0x124] sm:$0xf]
      %v1458 = vld [vmem:[%s4 + $0x128] sm:$0xf]
      %v1459 = vld [vmem:[%s4 + $0x12c] sm:$0xf]
      %v1460 = vld [vmem:[%s4 + $0x130] sm:$0xf]
      %v1461 = vld [vmem:[%s4 + $0x134] sm:$0xf]
      %v1462 = vld [vmem:[%s4 + $0x138] sm:$0xf]
      %v1463 = vld [vmem:[%s4 + $0x13c] sm:$0xf]
      %v1464 = vld [vmem:[%s4 + $0x140] sm:$0xf]
      %v1465 = vld [vmem:[%s4 + $0x144] sm:$0xf]
      %v1466 = vld [vmem:[%s4 + $0x148] sm:$0xf]
      %v1467 = vld [vmem:[%s4 + $0x14c] sm:$0xf]
      %v1468 = vld [vmem:[%s4 + $0x150] sm:$0xf]
      %v1469 = vld [vmem:[%s4 + $0x154] sm:$0xf]
      %v1470 = vld [vmem:[%s4 + $0x158] sm:$0xf]
      %v1471 = vld [vmem:[%s4 + $0x15c] sm:$0xf]
      %v1472 = vld [vmem:[%s4 + $0x160] sm:$0xf]
      %v1473 = vld [vmem:[%s4 + $0x164] sm:$0xf]
      %v1474 = vld [vmem:[%s4 + $0x168] sm:$0xf]
      %v1475 = vld [vmem:[%s4 + $0x16c] sm:$0xf]
      %v1476 = vld [vmem:[%s4 + $0x170] sm:$0xf]
      %v1477 = vld [vmem:[%s4 + $0x174] sm:$0xf]
      %v1478 = vld [vmem:[%s4 + $0x178] sm:$0xf]
      %v1479 = vld [vmem:[%s4 + $0x17c] sm:$0xf]
      %v1512 = vunpack.c.l.b16 %v1448
      %v1513 = vunpack.c.l.b16 %v1449
      %v1514 = vunpack.c.l.b16 %v1450
      %v1515 = vunpack.c.l.b16 %v1451
      %v1516 = vunpack.c.l.b16 %v1452
      %v1517 = vunpack.c.l.b16 %v1453
      %v1518 = vunpack.c.l.b16 %v1454
      %v1519 = vunpack.c.l.b16 %v1455
      %v1520 = vunpack.c.l.b16 %v1456
      %v1521 = vunpack.c.l.b16 %v1457
      %v1522 = vunpack.c.l.b16 %v1458
      %v1523 = vunpack.c.l.b16 %v1459
      %v1524 = vunpack.c.l.b16 %v1460
      %v1525 = vunpack.c.l.b16 %v1461
      %v1526 = vunpack.c.l.b16 %v1462
      %v1527 = vunpack.c.l.b16 %v1463
      %v1528 = vunpack.c.l.b16 %v1464
      %v1529 = vunpack.c.l.b16 %v1465
      %v1530 = vunpack.c.l.b16 %v1466
      %v1531 = vunpack.c.l.b16 %v1467
      %v1532 = vunpack.c.l.b16 %v1468
      %v1533 = vunpack.c.l.b16 %v1469
      %v1534 = vunpack.c.l.b16 %v1470
      %v1535 = vunpack.c.l.b16 %v1471
      %v1536 = vunpack.c.l.b16 %v1472
      %v1537 = vunpack.c.l.b16 %v1473
      %v1538 = vunpack.c.l.b16 %v1474
      %v1539 = vunpack.c.l.b16 %v1475
      %v1540 = vunpack.c.l.b16 %v1476
      %v1541 = vunpack.c.l.b16 %v1477
      %v1542 = vunpack.c.l.b16 %v1478
      %v1543 = vunpack.c.l.b16 %v1479
      %v1544 = vpack.c.b16 %v1513, %v1512
      %v1545 = vpack.c.b16 %v1515, %v1514
      %v1546 = vpack.c.b16 %v1517, %v1516
      %v1547 = vpack.c.b16 %v1519, %v1518
      %v1548 = vpack.c.b16 %v1521, %v1520
      %v1549 = vpack.c.b16 %v1523, %v1522
      %v1550 = vpack.c.b16 %v1525, %v1524
      %v1551 = vpack.c.b16 %v1527, %v1526
      %v1552 = vpack.c.b16 %v1529, %v1528
      %v1553 = vpack.c.b16 %v1531, %v1530
      %v1554 = vpack.c.b16 %v1533, %v1532
      %v1555 = vpack.c.b16 %v1535, %v1534
      %v1556 = vpack.c.b16 %v1537, %v1536
      %v1557 = vpack.c.b16 %v1539, %v1538
      %v1558 = vpack.c.b16 %v1541, %v1540
      %v1559 = vpack.c.b16 %v1543, %v1542
      %1576 = vmatprep.subr.bf16.mxu0 0
      %1577 = vmatpush1.bf16.msra.mxu0 %v1544
      %1578 = vmatprep.subr.bf16.mxu0 0
      %1579 = vmatpush1.bf16.msra.mxu0 %v1545
      %1580 = vmatprep.subr.bf16.mxu0 0
      %1581 = vmatpush1.bf16.msra.mxu0 %v1546
      %1582 = vmatprep.subr.bf16.mxu0 0
      %1583 = vmatpush1.bf16.msra.mxu0 %v1547
      %1584 = vmatprep.subr.bf16.mxu0 0
      %1585 = vmatpush1.bf16.msra.mxu0 %v1548
      %1586 = vmatprep.subr.bf16.mxu0 0
      %1587 = vmatpush1.bf16.msra.mxu0 %v1549
      %1588 = vmatprep.subr.bf16.mxu0 0
      %1589 = vmatpush1.bf16.msra.mxu0 %v1550
      %1590 = vmatprep.subr.bf16.mxu0 0
      %1591 = vmatpush1.bf16.msra.mxu0 %v1551
      %1592 = vmatprep.subr.bf16.mxu0 0
      %1593 = vmatpush1.bf16.msra.mxu0 %v1552
      %1594 = vmatprep.subr.bf16.mxu0 0
      %1595 = vmatpush1.bf16.msra.mxu0 %v1553
      %1596 = vmatprep.subr.bf16.mxu0 0
      %1597 = vmatpush1.bf16.msra.mxu0 %v1554
      %1598 = vmatprep.subr.bf16.mxu0 0
      %1599 = vmatpush1.bf16.msra.mxu0 %v1555
      %1600 = vmatprep.subr.bf16.mxu0 0
      %1601 = vmatpush1.bf16.msra.mxu0 %v1556
      %1602 = vmatprep.subr.bf16.mxu0 0
      %1603 = vmatpush1.bf16.msra.mxu0 %v1557
      %1604 = vmatprep.subr.bf16.mxu0 0
      %1605 = vmatpush1.bf16.msra.mxu0 %v1558
      %1606 = vmatprep.subr.bf16.mxu0 0
      %1607 = vmatpush1.bf16.msra.mxu0 %v1559
      %1608 = vmatprep.mubr.bf16.mxu0 %v1440
      %1609 = vmatmul.mubr.bf16.gmra.mrb[0].mxu0 %v1424
      %v1610 = vpop.f32.mrb[0].mxu0
      %v1611 = vadd.f32 0.0, %v1610
      %v1612 = vpop.f32.mrb[0].mxu0
      %v1613 = vpop.f32.mrb[0].mxu0
      %v1614 = vadd.f32 0.0, %v1613
      %v1615 = vpop.f32.mrb[0].mxu0
      %1616 = vmatprep.mubr.bf16.mxu0 %v1441
      %1617 = vmatmul.mubr.bf16.gmra.mrb[0].mxu0 %v1425
      %v1618 = vpop.f32.mrb[0].mxu0
      %v1619 = vadd.f32 0.0, %v1618
      %v1620 = vpop.f32.mrb[0].mxu0
      %v1621 = vpop.f32.mrb[0].mxu0
      %v1622 = vadd.f32 0.0, %v1621
      %v1623 = vpop.f32.mrb[0].mxu0
      %1624 = vmatprep.mubr.bf16.mxu0 %v1442
      %1625 = vmatmul.mubr.bf16.gmra.mrb[0].mxu0 %v1426
      %v1626 = vpop.f32.mrb[0].mxu0
      %v1627 = vadd.f32 0.0, %v1626
      %v1628 = vpop.f32.mrb[0].mxu0
      %v1629 = vpop.f32.mrb[0].mxu0
      %v1630 = vadd.f32 0.0, %v1629
      %v1631 = vpop.f32.mrb[0].mxu0
      %1632 = vmatprep.mubr.bf16.mxu0 %v1443
      %1633 = vmatmul.mubr.bf16.gmra.mrb[0].mxu0 %v1427
      %v1634 = vpop.f32.mrb[0].mxu0
      %v1635 = vadd.f32 0.0, %v1634
      %v1636 = vpop.f32.mrb[0].mxu0
      %v1637 = vpop.f32.mrb[0].mxu0
      %v1638 = vadd.f32 0.0, %v1637
      %v1639 = vpop.f32.mrb[0].mxu0
      %1640 = vdwg.mxu0
      %v1641 = vadd.f32 %v1202, %v1611
      %v1642 = vadd.f32 %v1205, %v1614
      %v1643 = vadd.f32 %v1210, %v1619
      %v1644 = vadd.f32 %v1213, %v1622
      %v1645 = vadd.f32 %v1218, %v1627
      %v1646 = vadd.f32 %v1221, %v1630
      %v1647 = vadd.f32 %v1226, %v1635
      %v1648 = vadd.f32 %v1229, %v1638
      %s1649 = scalar_lea.vmem [#allocation2], 16
      %v1650 = vld [vmem:[%s1649] sm:$0xf]
      %v1651 = vld [vmem:[%s1649 + $0x8] sm:$0xf]
      %v1652 = vld [vmem:[%s1649 + $0x10] sm:$0xf]
      %v1653 = vld [vmem:[%s1649 + $0x18] sm:$0xf]
      %v1654 = vld [vmem:[%s1649 + $0x20] sm:$0xf]
      %v1655 = vld [vmem:[%s1649 + $0x28] sm:$0xf]
      %v1656 = vld [vmem:[%s1649 + $0x30] sm:$0xf]
      %v1657 = vld [vmem:[%s1649 + $0x38] sm:$0xf]
      %v1658 = vld [vmem:[%s1649 + $0x4] sm:$0x1]
      %v1659 = vld [vmem:[%s1649 + $0xc] sm:$0x1]
      %v1660 = vld [vmem:[%s1649 + $0x14] sm:$0x1]
      %v1661 = vld [vmem:[%s1649 + $0x1c] sm:$0x1]
      %v1662 = vld [vmem:[%s1649 + $0x24] sm:$0x1]
      %v1663 = vld [vmem:[%s1649 + $0x2c] sm:$0x1]
      %v1664 = vld [vmem:[%s1649 + $0x34] sm:$0x1]
      %v1665 = vld [vmem:[%s1649 + $0x3c] sm:$0x1]
      %v1667 = vshrl.u32 %v1650, 16
      %v1669 = vrot.slane %v1667, 4
      %v1670 = vshll.u32 %v1650, 16
      %v1672 = vrot.slane %v1670, 5
      %v1673 = vor.u32 %v1669, %v1672
      %v1674 = vrot.slane %v1673, 4
      %v1676 = vshll.u32 %v1658, 16
      %v1678 = vrot.slane %v1676, 5
      %v1679 = vsel %vm586, %v1674, %v1678
      %v1681 = vshrl.u32 %v1651, 16
      %v1683 = vrot.slane %v1681, 4
      %v1684 = vshll.u32 %v1651, 16
      %v1686 = vrot.slane %v1684, 5
      %v1687 = vor.u32 %v1683, %v1686
      %v1688 = vrot.slane %v1687, 4
      %v1690 = vshll.u32 %v1659, 16
      %v1692 = vrot.slane %v1690, 5
      %v1693 = vsel %vm586, %v1688, %v1692
      %v1695 = vshrl.u32 %v1652, 16
      %v1697 = vrot.slane %v1695, 4
      %v1698 = vshll.u32 %v1652, 16
      %v1700 = vrot.slane %v1698, 5
      %v1701 = vor.u32 %v1697, %v1700
      %v1702 = vrot.slane %v1701, 4
      %v1704 = vshll.u32 %v1660, 16
      %v1706 = vrot.slane %v1704, 5
      %v1707 = vsel %vm586, %v1702, %v1706
      %v1709 = vshrl.u32 %v1653, 16
      %v1711 = vrot.slane %v1709, 4
      %v1712 = vshll.u32 %v1653, 16
      %v1714 = vrot.slane %v1712, 5
      %v1715 = vor.u32 %v1711, %v1714
      %v1716 = vrot.slane %v1715, 4
      %v1718 = vshll.u32 %v1661, 16
      %v1720 = vrot.slane %v1718, 5
      %v1721 = vsel %vm586, %v1716, %v1720
      %v1723 = vshrl.u32 %v1654, 16
      %v1725 = vrot.slane %v1723, 4
      %v1726 = vshll.u32 %v1654, 16
      %v1728 = vrot.slane %v1726, 5
      %v1729 = vor.u32 %v1725, %v1728
      %v1730 = vrot.slane %v1729, 4
      %v1732 = vshll.u32 %v1662, 16
      %v1734 = vrot.slane %v1732, 5
      %v1735 = vsel %vm586, %v1730, %v1734
      %v1737 = vshrl.u32 %v1655, 16
      %v1739 = vrot.slane %v1737, 4
      %v1740 = vshll.u32 %v1655, 16
      %v1742 = vrot.slane %v1740, 5
      %v1743 = vor.u32 %v1739, %v1742
      %v1744 = vrot.slane %v1743, 4
      %v1746 = vshll.u32 %v1663, 16
      %v1748 = vrot.slane %v1746, 5
      %v1749 = vsel %vm586, %v1744, %v1748
      %v1751 = vshrl.u32 %v1656, 16
      %v1753 = vrot.slane %v1751, 4
      %v1754 = vshll.u32 %v1656, 16
      %v1756 = vrot.slane %v1754, 5
      %v1757 = vor.u32 %v1753, %v1756
      %v1758 = vrot.slane %v1757, 4
      %v1760 = vshll.u32 %v1664, 16
      %v1762 = vrot.slane %v1760, 5
      %v1763 = vsel %vm586, %v1758, %v1762
      %v1765 = vshrl.u32 %v1657, 16
      %v1767 = vrot.slane %v1765, 4
      %v1768 = vshll.u32 %v1657, 16
      %v1770 = vrot.slane %v1768, 5
      %v1771 = vor.u32 %v1767, %v1770
      %v1772 = vrot.slane %v1771, 4
      %v1774 = vshll.u32 %v1665, 16
      %v1776 = vrot.slane %v1774, 5
      %v1777 = vsel %vm586, %v1772, %v1776
      %v1786 = vunpack.c.l.b16 %v1650
      %v1787 = vunpack.c.l.b16 %v1651
      %v1788 = vunpack.c.l.b16 %v1652
      %v1789 = vunpack.c.l.b16 %v1653
      %v1790 = vunpack.c.l.b16 %v1654
      %v1791 = vunpack.c.l.b16 %v1655
      %v1792 = vunpack.c.l.b16 %v1656
      %v1793 = vunpack.c.l.b16 %v1657
      %v1794 = vpack.c.b16 %v1787, %v1786
      %v1795 = vpack.c.b16 %v1789, %v1788
      %v1796 = vpack.c.b16 %v1791, %v1790
      %v1797 = vpack.c.b16 %v1793, %v1792
      %v1802 = vunpack.c.l.b16 %v1679
      %v1803 = vunpack.c.l.b16 %v1693
      %v1804 = vunpack.c.l.b16 %v1707
      %v1805 = vunpack.c.l.b16 %v1721
      %v1806 = vunpack.c.l.b16 %v1735
      %v1807 = vunpack.c.l.b16 %v1749
      %v1808 = vunpack.c.l.b16 %v1763
      %v1809 = vunpack.c.l.b16 %v1777
      %v1810 = vpack.c.b16 %v1803, %v1802
      %v1811 = vpack.c.b16 %v1805, %v1804
      %v1812 = vpack.c.b16 %v1807, %v1806
      %v1813 = vpack.c.b16 %v1809, %v1808
      %v1818 = vld [vmem:[%s4 + $0x180] sm:$0xf]
      %v1819 = vld [vmem:[%s4 + $0x184] sm:$0xf]
      %v1820 = vld [vmem:[%s4 + $0x188] sm:$0xf]
      %v1821 = vld [vmem:[%s4 + $0x18c] sm:$0xf]
      %v1822 = vld [vmem:[%s4 + $0x190] sm:$0xf]
      %v1823 = vld [vmem:[%s4 + $0x194] sm:$0xf]
      %v1824 = vld [vmem:[%s4 + $0x198] sm:$0xf]
      %v1825 = vld [vmem:[%s4 + $0x19c] sm:$0xf]
      %v1826 = vld [vmem:[%s4 + $0x1a0] sm:$0xf]
      %v1827 = vld [vmem:[%s4 + $0x1a4] sm:$0xf]
      %v1828 = vld [vmem:[%s4 + $0x1a8] sm:$0xf]
      %v1829 = vld [vmem:[%s4 + $0x1ac] sm:$0xf]
      %v1830 = vld [vmem:[%s4 + $0x1b0] sm:$0xf]
      %v1831 = vld [vmem:[%s4 + $0x1b4] sm:$0xf]
      %v1832 = vld [vmem:[%s4 + $0x1b8] sm:$0xf]
      %v1833 = vld [vmem:[%s4 + $0x1bc] sm:$0xf]
      %v1834 = vld [vmem:[%s4 + $0x1c0] sm:$0xf]
      %v1835 = vld [vmem:[%s4 + $0x1c4] sm:$0xf]
      %v1836 = vld [vmem:[%s4 + $0x1c8] sm:$0xf]
      %v1837 = vld [vmem:[%s4 + $0x1cc] sm:$0xf]
      %v1838 = vld [vmem:[%s4 + $0x1d0] sm:$0xf]
      %v1839 = vld [vmem:[%s4 + $0x1d4] sm:$0xf]
      %v1840 = vld [vmem:[%s4 + $0x1d8] sm:$0xf]
      %v1841 = vld [vmem:[%s4 + $0x1dc] sm:$0xf]
      %v1842 = vld [vmem:[%s4 + $0x1e0] sm:$0xf]
      %v1843 = vld [vmem:[%s4 + $0x1e4] sm:$0xf]
      %v1844 = vld [vmem:[%s4 + $0x1e8] sm:$0xf]
      %v1845 = vld [vmem:[%s4 + $0x1ec] sm:$0xf]
      %v1846 = vld [vmem:[%s4 + $0x1f0] sm:$0xf]
      %v1847 = vld [vmem:[%s4 + $0x1f4] sm:$0xf]
      %v1848 = vld [vmem:[%s4 + $0x1f8] sm:$0xf]
      %v1849 = vld [vmem:[%s4 + $0x1fc] sm:$0xf]
      %v1882 = vunpack.c.l.b16 %v1818
      %v1883 = vunpack.c.l.b16 %v1819
      %v1884 = vunpack.c.l.b16 %v1820
      %v1885 = vunpack.c.l.b16 %v1821
      %v1886 = vunpack.c.l.b16 %v1822
      %v1887 = vunpack.c.l.b16 %v1823
      %v1888 = vunpack.c.l.b16 %v1824
      %v1889 = vunpack.c.l.b16 %v1825
      %v1890 = vunpack.c.l.b16 %v1826
      %v1891 = vunpack.c.l.b16 %v1827
      %v1892 = vunpack.c.l.b16 %v1828
      %v1893 = vunpack.c.l.b16 %v1829
      %v1894 = vunpack.c.l.b16 %v1830
      %v1895 = vunpack.c.l.b16 %v1831
      %v1896 = vunpack.c.l.b16 %v1832
      %v1897 = vunpack.c.l.b16 %v1833
      %v1898 = vunpack.c.l.b16 %v1834
      %v1899 = vunpack.c.l.b16 %v1835
      %v1900 = vunpack.c.l.b16 %v1836
      %v1901 = vunpack.c.l.b16 %v1837
      %v1902 = vunpack.c.l.b16 %v1838
      %v1903 = vunpack.c.l.b16 %v1839
      %v1904 = vunpack.c.l.b16 %v1840
      %v1905 = vunpack.c.l.b16 %v1841
      %v1906 = vunpack.c.l.b16 %v1842
      %v1907 = vunpack.c.l.b16 %v1843
      %v1908 = vunpack.c.l.b16 %v1844
      %v1909 = vunpack.c.l.b16 %v1845
      %v1910 = vunpack.c.l.b16 %v1846
      %v1911 = vunpack.c.l.b16 %v1847
      %v1912 = vunpack.c.l.b16 %v1848
      %v1913 = vunpack.c.l.b16 %v1849
      %v1914 = vpack.c.b16 %v1883, %v1882
      %v1915 = vpack.c.b16 %v1885, %v1884
      %v1916 = vpack.c.b16 %v1887, %v1886
      %v1917 = vpack.c.b16 %v1889, %v1888
      %v1918 = vpack.c.b16 %v1891, %v1890
      %v1919 = vpack.c.b16 %v1893, %v1892
      %v1920 = vpack.c.b16 %v1895, %v1894
      %v1921 = vpack.c.b16 %v1897, %v1896
      %v1922 = vpack.c.b16 %v1899, %v1898
      %v1923 = vpack.c.b16 %v1901, %v1900
      %v1924 = vpack.c.b16 %v1903, %v1902
      %v1925 = vpack.c.b16 %v1905, %v1904
      %v1926 = vpack.c.b16 %v1907, %v1906
      %v1927 = vpack.c.b16 %v1909, %v1908
      %v1928 = vpack.c.b16 %v1911, %v1910
      %v1929 = vpack.c.b16 %v1913, %v1912
      %1946 = vmatprep.subr.bf16.mxu0 0
      %1947 = vmatpush1.bf16.msra.mxu0 %v1914
      %1948 = vmatprep.subr.bf16.mxu0 0
      %1949 = vmatpush1.bf16.msra.mxu0 %v1915
      %1950 = vmatprep.subr.bf16.mxu0 0
      %1951 = vmatpush1.bf16.msra.mxu0 %v1916
      %1952 = vmatprep.subr.bf16.mxu0 0
      %1953 = vmatpush1.bf16.msra.mxu0 %v1917
      %1954 = vmatprep.subr.bf16.mxu0 0
      %1955 = vmatpush1.bf16.msra.mxu0 %v1918
      %1956 = vmatprep.subr.bf16.mxu0 0
      %1957 = vmatpush1.bf16.msra.mxu0 %v1919
      %1958 = vmatprep.subr.bf16.mxu0 0
      %1959 = vmatpush1.bf16.msra.mxu0 %v1920
      %1960 = vmatprep.subr.bf16.mxu0 0
      %1961 = vmatpush1.bf16.msra.mxu0 %v1921
      %1962 = vmatprep.subr.bf16.mxu0 0
      %1963 = vmatpush1.bf16.msra.mxu0 %v1922
      %1964 = vmatprep.subr.bf16.mxu0 0
      %1965 = vmatpush1.bf16.msra.mxu0 %v1923
      %1966 = vmatprep.subr.bf16.mxu0 0
      %1967 = vmatpush1.bf16.msra.mxu0 %v1924
      %1968 = vmatprep.subr.bf16.mxu0 0
      %1969 = vmatpush1.bf16.msra.mxu0 %v1925
      %1970 = vmatprep.subr.bf16.mxu0 0
      %1971 = vmatpush1.bf16.msra.mxu0 %v1926
      %1972 = vmatprep.subr.bf16.mxu0 0
      %1973 = vmatpush1.bf16.msra.mxu0 %v1927
      %1974 = vmatprep.subr.bf16.mxu0 0
      %1975 = vmatpush1.bf16.msra.mxu0 %v1928
      %1976 = vmatprep.subr.bf16.mxu0 0
      %1977 = vmatpush1.bf16.msra.mxu0 %v1929
      %1978 = vmatprep.mubr.bf16.mxu0 %v1810
      %1979 = vmatmul.mubr.bf16.gmra.mrb[0].mxu0 %v1794
      %v1980 = vpop.f32.mrb[0].mxu0
      %v1981 = vadd.f32 0.0, %v1980
      %v1982 = vpop.f32.mrb[0].mxu0
      %v1983 = vpop.f32.mrb[0].mxu0
      %v1984 = vadd.f32 0.0, %v1983
      %v1985 = vpop.f32.mrb[0].mxu0
      %1986 = vmatprep.mubr.bf16.mxu0 %v1811
      %1987 = vmatmul.mubr.bf16.gmra.mrb[0].mxu0 %v1795
      %v1988 = vpop.f32.mrb[0].mxu0
      %v1989 = vadd.f32 0.0, %v1988
      %v1990 = vpop.f32.mrb[0].mxu0
      %v1991 = vpop.f32.mrb[0].mxu0
      %v1992 = vadd.f32 0.0, %v1991
      %v1993 = vpop.f32.mrb[0].mxu0
      %1994 = vmatprep.mubr.bf16.mxu0 %v1812
      %1995 = vmatmul.mubr.bf16.gmra.mrb[0].mxu0 %v1796
      %v1996 = vpop.f32.mrb[0].mxu0
      %v1997 = vadd.f32 0.0, %v1996
      %v1998 = vpop.f32.mrb[0].mxu0
      %v1999 = vpop.f32.mrb[0].mxu0
      %v2000 = vadd.f32 0.0, %v1999
      %v2001 = vpop.f32.mrb[0].mxu0
      %2002 = vmatprep.mubr.bf16.mxu0 %v1813
      %2003 = vmatmul.mubr.bf16.gmra.mrb[0].mxu0 %v1797
      %v2004 = vpop.f32.mrb[0].mxu0
      %v2005 = vadd.f32 0.0, %v2004
      %v2006 = vpop.f32.mrb[0].mxu0
      %v2007 = vpop.f32.mrb[0].mxu0
      %v2008 = vadd.f32 0.0, %v2007
      %v2009 = vpop.f32.mrb[0].mxu0
      %2010 = vdwg.mxu0
      %v2011 = vadd.f32 %v1641, %v1981
      %v2012 = vadd.f32 %v1642, %v1984
      %v2013 = vadd.f32 %v1643, %v1989
      %v2014 = vadd.f32 %v1644, %v1992
      %v2015 = vadd.f32 %v1645, %v1997
      %v2016 = vadd.f32 %v1646, %v2000
      %v2017 = vadd.f32 %v1647, %v2005
      %v2018 = vadd.f32 %v1648, %v2008
      %v2019 = vld [vmem:[%s1649] sm:$0xe]
      %v2020 = vld [vmem:[%s1649 + $0x8] sm:$0xe]
      %v2021 = vld [vmem:[%s1649 + $0x10] sm:$0xe]
      %v2022 = vld [vmem:[%s1649 + $0x18] sm:$0xe]
      %v2023 = vld [vmem:[%s1649 + $0x20] sm:$0xe]
      %v2024 = vld [vmem:[%s1649 + $0x28] sm:$0xe]
      %v2025 = vld [vmem:[%s1649 + $0x30] sm:$0xe]
      %v2026 = vld [vmem:[%s1649 + $0x38] sm:$0xe]
      %v2043 = vrot.slane %v2019, 5
      %v2044 = vrot.slane %v2043, 4
      %v2045 = vrot.slane %v1658, 5
      %v2046 = vsel %vm797, %v2044, %v2045
      %v2047 = vrot.slane %v2020, 5
      %v2048 = vrot.slane %v2047, 4
      %v2049 = vrot.slane %v1659, 5
      %v2050 = vsel %vm797, %v2048, %v2049
      %v2051 = vrot.slane %v2021, 5
      %v2052 = vrot.slane %v2051, 4
      %v2053 = vrot.slane %v1660, 5
      %v2054 = vsel %vm797, %v2052, %v2053
      %v2055 = vrot.slane %v2022, 5
      %v2056 = vrot.slane %v2055, 4
      %v2057 = vrot.slane %v1661, 5
      %v2058 = vsel %vm797, %v2056, %v2057
      %v2059 = vrot.slane %v2023, 5
      %v2060 = vrot.slane %v2059, 4
      %v2061 = vrot.slane %v1662, 5
      %v2062 = vsel %vm797, %v2060, %v2061
      %v2063 = vrot.slane %v2024, 5
      %v2064 = vrot.slane %v2063, 4
      %v2065 = vrot.slane %v1663, 5
      %v2066 = vsel %vm797, %v2064, %v2065
      %v2067 = vrot.slane %v2025, 5
      %v2068 = vrot.slane %v2067, 4
      %v2069 = vrot.slane %v1664, 5
      %v2070 = vsel %vm797, %v2068, %v2069
      %v2071 = vrot.slane %v2026, 5
      %v2072 = vrot.slane %v2071, 4
      %v2073 = vrot.slane %v1665, 5
      %v2074 = vsel %vm797, %v2072, %v2073
      %v2075 = vld [vmem:[%s4 + $0x200] sm:$0xf]
      %v2076 = vld [vmem:[%s4 + $0x204] sm:$0xf]
      %v2077 = vld [vmem:[%s4 + $0x208] sm:$0xf]
      %v2078 = vld [vmem:[%s4 + $0x20c] sm:$0xf]
      %v2079 = vld [vmem:[%s4 + $0x210] sm:$0xf]
      %v2080 = vld [vmem:[%s4 + $0x214] sm:$0xf]
      %v2081 = vld [vmem:[%s4 + $0x218] sm:$0xf]
      %v2082 = vld [vmem:[%s4 + $0x21c] sm:$0xf]
      %v2083 = vld [vmem:[%s4 + $0x220] sm:$0xf]
      %v2084 = vld [vmem:[%s4 + $0x224] sm:$0xf]
      %v2085 = vld [vmem:[%s4 + $0x228] sm:$0xf]
      %v2086 = vld [vmem:[%s4 + $0x22c] sm:$0xf]
      %v2087 = vld [vmem:[%s4 + $0x230] sm:$0xf]
      %v2088 = vld [vmem:[%s4 + $0x234] sm:$0xf]
      %v2089 = vld [vmem:[%s4 + $0x238] sm:$0xf]
      %v2090 = vld [vmem:[%s4 + $0x23c] sm:$0xf]
      %v2091 = vunpack.c.l.b16 %v2046
      %v2092 = vunpack.c.l.b16 %v2050
      %v2093 = vunpack.c.l.b16 %v2054
      %v2094 = vunpack.c.l.b16 %v2058
      %v2095 = vunpack.c.l.b16 %v2062
      %v2096 = vunpack.c.l.b16 %v2066
      %v2097 = vunpack.c.l.b16 %v2070
      %v2098 = vunpack.c.l.b16 %v2074
      %v2099 = vpack.c.b16 %v2092, %v2091
      %v2100 = vpack.c.b16 %v2094, %v2093
      %v2101 = vpack.c.b16 %v2096, %v2095
      %v2102 = vpack.c.b16 %v2098, %v2097
      %v2123 = vunpack.c.l.b16 %v2075
      %v2124 = vunpack.c.l.b16 %v2076
      %v2125 = vunpack.c.l.b16 %v2077
      %v2126 = vunpack.c.l.b16 %v2078
      %v2127 = vunpack.c.l.b16 %v2079
      %v2128 = vunpack.c.l.b16 %v2080
      %v2129 = vunpack.c.l.b16 %v2081
      %v2130 = vunpack.c.l.b16 %v2082
      %v2131 = vunpack.c.l.b16 %v2083
      %v2132 = vunpack.c.l.b16 %v2084
      %v2133 = vunpack.c.l.b16 %v2085
      %v2134 = vunpack.c.l.b16 %v2086
      %v2135 = vunpack.c.l.b16 %v2087
      %v2136 = vunpack.c.l.b16 %v2088
      %v2137 = vunpack.c.l.b16 %v2089
      %v2138 = vunpack.c.l.b16 %v2090
      %v2139 = vpack.c.b16 %v2124, %v2123
      %v2140 = vpack.c.b16 %v2126, %v2125
      %v2141 = vpack.c.b16 %v2128, %v2127
      %v2142 = vpack.c.b16 %v2130, %v2129
      %v2143 = vpack.c.b16 %v2132, %v2131
      %v2144 = vpack.c.b16 %v2134, %v2133
      %v2145 = vpack.c.b16 %v2136, %v2135
      %v2146 = vpack.c.b16 %v2138, %v2137
      %2155 = vmatprep.subr.bf16.mxu0 0
      %2156 = vmatpush1.bf16.msra.mxu0 %v2139
      %2157 = vmatprep.subr.bf16.mxu0 0
      %2158 = vmatpush1.bf16.msra.mxu0 %v2140
      %2159 = vmatprep.subr.bf16.mxu0 0
      %2160 = vmatpush1.bf16.msra.mxu0 %v2141
      %2161 = vmatprep.subr.bf16.mxu0 0
      %2162 = vmatpush1.bf16.msra.mxu0 %v2142
      %2163 = vmatprep.subr.bf16.mxu0 0
      %2164 = vmatpush1.bf16.msra.mxu0 %v2143
      %2165 = vmatprep.subr.bf16.mxu0 0
      %2166 = vmatpush1.bf16.msra.mxu0 %v2144
      %2167 = vmatprep.subr.bf16.mxu0 0
      %2168 = vmatpush1.bf16.msra.mxu0 %v2145
      %2169 = vmatprep.subr.bf16.mxu0 0
      %2170 = vmatpush1.bf16.msra.mxu0 %v2146
      %2171 = vmatprep.subr.bf16.mxu0 0
      %2172 = vmatpush1.bf16.msra.mxu0 0
      %2173 = vmatprep.subr.bf16.mxu0 0
      %2174 = vmatpush1.bf16.msra.mxu0 0
      %2175 = vmatprep.subr.bf16.mxu0 0
      %2176 = vmatpush1.bf16.msra.mxu0 0
      %2177 = vmatprep.subr.bf16.mxu0 0
      %2178 = vmatpush1.bf16.msra.mxu0 0
      %2179 = vmatprep.subr.bf16.mxu0 0
      %2180 = vmatpush1.bf16.msra.mxu0 0
      %2181 = vmatprep.subr.bf16.mxu0 0
      %2182 = vmatpush1.bf16.msra.mxu0 0
      %2183 = vmatprep.subr.bf16.mxu0 0
      %2184 = vmatpush1.bf16.msra.mxu0 0
      %2185 = vmatprep.subr.bf16.mxu0 0
      %2186 = vmatpush1.bf16.msra.mxu0 0
      %2187 = vmatprep.mubr.bf16.mxu0 0
      %2188 = vmatmul.mubr.bf16.gmra.mrb[0].mxu0 %v2099
      %v2189 = vpop.f32.mrb[0].mxu0
      %v2190 = vadd.f32 0.0, %v2189
      %v2191 = vpop.f32.mrb[0].mxu0
      %v2192 = vpop.f32.mrb[0].mxu0
      %v2193 = vadd.f32 0.0, %v2192
      %v2194 = vpop.f32.mrb[0].mxu0
      %2195 = vmatprep.mubr.bf16.mxu0 0
      %2196 = vmatmul.mubr.bf16.gmra.mrb[0].mxu0 %v2100
      %v2197 = vpop.f32.mrb[0].mxu0
      %v2198 = vadd.f32 0.0, %v2197
      %v2199 = vpop.f32.mrb[0].mxu0
      %v2200 = vpop.f32.mrb[0].mxu0
      %v2201 = vadd.f32 0.0, %v2200
      %v2202 = vpop.f32.mrb[0].mxu0
      %2203 = vmatprep.mubr.bf16.mxu0 0
      %2204 = vmatmul.mubr.bf16.gmra.mrb[0].mxu0 %v2101
      %v2205 = vpop.f32.mrb[0].mxu0
      %v2206 = vadd.f32 0.0, %v2205
      %v2207 = vpop.f32.mrb[0].mxu0
      %v2208 = vpop.f32.mrb[0].mxu0
      %v2209 = vadd.f32 0.0, %v2208
      %v2210 = vpop.f32.mrb[0].mxu0
      %2211 = vmatprep.mubr.bf16.mxu0 0
      %2212 = vmatmul.mubr.bf16.gmra.mrb[0].mxu0 %v2102
      %v2213 = vpop.f32.mrb[0].mxu0
      %v2214 = vadd.f32 0.0, %v2213
      %v2215 = vpop.f32.mrb[0].mxu0
      %v2216 = vpop.f32.mrb[0].mxu0
      %v2217 = vadd.f32 0.0, %v2216
      %v2218 = vpop.f32.mrb[0].mxu0
      %2219 = vdwg.mxu0
      %v2220 = vadd.f32 %v2011, %v2190
      %v2221 = vadd.f32 %v2012, %v2193
      %v2222 = vadd.f32 %v2013, %v2198
      %v2223 = vadd.f32 %v2014, %v2201
      %v2224 = vadd.f32 %v2015, %v2206
      %v2225 = vadd.f32 %v2016, %v2209
      %v2226 = vadd.f32 %v2017, %v2214
      %v2227 = vadd.f32 %v2018, %v2217
      %2228 = vst [vmem:[%s251] sm:$0xff] %v2220
      %2229 = vst [vmem:[%s251 + $0x8] sm:$0xff] %v2221
      %2230 = vst [vmem:[%s251 + $0x10] sm:$0xff] %v2222
      %2231 = vst [vmem:[%s251 + $0x18] sm:$0xff] %v2223
      %2232 = vst [vmem:[%s251 + $0x20] sm:$0xff] %v2224
      %2233 = vst [vmem:[%s251 + $0x28] sm:$0xff] %v2225
      %2234 = vst [vmem:[%s251 + $0x30] sm:$0xff] %v2226
      %2235 = vst [vmem:[%s251 + $0x38] sm:$0xff] %v2227
      %v2236 = vld [vmem:[%s6] sm:$0x1]
      %v2237 = vadd.f32 %v2220, %v2221
      %v2238 = vadd.f32 %v2237, %v2222
      %v2239 = vadd.f32 %v2238, %v2223
      %v2240 = vadd.f32 %v2239, %v2224
      %v2241 = vadd.f32 %v2240, %v2225
      %v2242 = vadd.f32 %v2241, %v2226
      %v2243 = vadd.f32 %v2242, %v2227
      %v2244 = vrot.slane %v2243, 4
      %v2245 = vadd.f32 %v2243, %v2244
      %v2246 = vrot.slane %v2245, 2
      %v2247 = vadd.f32 %v2245, %v2246
      %v2248 = vrot.slane %v2247, 1
      %v2249 = vadd.f32 %v2247, %v2248
      %v2250 = vadd.f32 %v2236, %v2249
      %2251 = vst [vmem:[%s6] sm:$0x1] %v2250
      %v2252 = vld [vmem:[%s6 + $0x1] sm:$0x1]
      %v2253 = vmul.f32 %v2220, %v2220
      %v2254 = vmul.f32 %v2221, %v2221
      %v2255 = vmul.f32 %v2222, %v2222
      %v2256 = vmul.f32 %v2223, %v2223
      %v2257 = vmul.f32 %v2224, %v2224
      %v2258 = vmul.f32 %v2225, %v2225
      %v2259 = vmul.f32 %v2226, %v2226
      %v2260 = vmul.f32 %v2227, %v2227
      %v2261 = vadd.f32 %v2253, %v2254
      %v2262 = vadd.f32 %v2261, %v2255
      %v2263 = vadd.f32 %v2262, %v2256
      %v2264 = vadd.f32 %v2263, %v2257
      %v2265 = vadd.f32 %v2264, %v2258
      %v2266 = vadd.f32 %v2265, %v2259
      %v2267 = vadd.f32 %v2266, %v2260
      %v2268 = vrot.slane %v2267, 4
      %v2269 = vadd.f32 %v2267, %v2268
      %v2270 = vrot.slane %v2269, 2
      %v2271 = vadd.f32 %v2269, %v2270
      %v2272 = vrot.slane %v2271, 1
      %v2273 = vadd.f32 %v2271, %v2272
      %v2274 = vadd.f32 %v2252, %v2273
      %2275 = vst [vmem:[%s6 + $0x1] sm:$0x1] %v2274
      %p2276 = scmp.eq.s32.totalorder %s18, 1
      // Predicated region
      $region45: #{restnet_down_block.4} parent=39 // pred_check
        %p2277 = pneg %p2276
      $region46: #{restnet_down_block.4} parent=39 // pred_check_branch
        %2279 = sbr.rel (%p2277) target = $region48
      $region47: #{restnet_down_block.4} parent=39 // pred_region
        %v2280 = vld [vmem:[%s6] sm:$0x1]
        %v2281 = vld [vmem:[%s6 + $0x1] sm:$0x1]
        %v2282 = vmul.f32 %v2280, 0.0078125
        %v2283 = vmul.f32 %v2281, 0.0078125
        %v2284 = vmul.f32 %v2282, %v2282
        %v2285 = vsub.f32 %v2283, %v2284
        %v2286 = vmax.f32 %v2285, 0.0
        %2287 = vst [vmem:[%s6] sm:$0x1] %v2282
        %v2288 = vadd.f32 %v2286, 1e-05
        %v2289 = vrsqrt.pop %v2288
        %2290 = vst [vmem:[%s6 + $0x1] sm:$0x1] %v2289
      $region48: #{restnet_down_block.4} parent=39 // pred_fallthru
        _
      %s2291 = smul.u32 8, %s18
      %p2292 = scmp.lt.s32.totalorder %s2291, 15
      %s2293 = scalar_select %p2292, %s2291, 15
      %s2294 = smul.addr %s2293, 8
      %s2295 = scalar_lea.vmem %s5, %s2294
      // Predicated region
      $region49: #{restnet_down_block.4} parent=39 // pred_check
        %p2296 = pneg %p146
      $region50: #{restnet_down_block.4} parent=39 // pred_check_branch
        %2298 = sbr.rel (%p2296) target = $region52
      $region51: #{restnet_down_block.4} parent=39 // pred_region
        %s2299 = smul.u32 8, %s18
      $region52: #{restnet_down_block.4} parent=39 // pred_fallthru
        _
      // Predicated region
      $region53: #{restnet_down_block.4} parent=39 // pred_check
        %p2300 = pneg %p167
      $region54: #{restnet_down_block.4} parent=39 // pred_check_branch
        %2302 = sbr.rel (%p2300) target = $region56
      $region55: #{restnet_down_block.4} parent=39 // pred_region
        _
      $region56: #{restnet_down_block.4} parent=39 // pred_fallthru
        _
      // Predicated region
      $region57: #{restnet_down_block.4} parent=39 // pred_check
        %p2303 = pneg %p167
      $region58: #{restnet_down_block.4} parent=39 // pred_check_branch
        %2305 = sbr.rel (%p2303) target = $region60
      $region59: #{restnet_down_block.4} parent=39 // pred_region
        _
      $region60: #{restnet_down_block.4} parent=39 // pred_fallthru
        _
    $region40: #{restnet_down_block.4} parent=5 // pred_fallthru
      _
    %p2306 = scmp.le.s32.totalorder 2, %s13
    // Predicated region
    $region61: #{restnet_down_block.4} parent=5 // pred_check
      %p2307 = pneg %p2306
    $region62: #{restnet_down_block.4} parent=5 // pred_check_branch
      %2309 = sbr.rel (%p2307) target = $region64
    $region63: #{restnet_down_block.4} parent=5 // pred_region
      %s2310 = ssub.s32 %s13, 2
      // Predicated region
      $region65: #{restnet_down_block.4} parent=63 // pred_check
        %p2311 = pneg %p152
      $region66: #{restnet_down_block.4} parent=63 // pred_check_branch
        %2313 = sbr.rel (%p2311) target = $region68
      $region67: #{restnet_down_block.4} parent=63 // pred_region
        %s2314 = smul.u32 8, %s19
        %p2315 = scmp.lt.s32.totalorder %s2314, 15
        %s2316 = scalar_select %p2315, %s2314, 15
        %s2317 = smul.addr %s2316, 8
        %s2318 = scalar_lea.vmem %s5, %s2317
      $region68: #{restnet_down_block.4} parent=63 // pred_fallthru
        _
    $region64: #{restnet_down_block.4} parent=5 // pred_fallthru
      _
  $region6: #{restnet_down_block.4} parent=0 // loop_footer
    %s17 = sadd.s32 1, %s13
  $region7: #{restnet_down_block.4} parent=0 // loop_footer_branch
    %12 = sbr.rel target = $region3
  $region8: #{restnet_down_block.4} parent=0 // loop_exit
    _

</llo_original>
